<compile_context>
chip_gen: v5e
topology: v5e:2x2
jax: 0.10.0
libtpu: 0.0.40
codegen_flags: <defaults>
</compile_context>

<pallas_src>
import functools

import jax
import jax.numpy as jnp
import numpy as np
from jax.experimental import pallas as pl
from jax.experimental.pallas import tpu as pltpu

NEG_SLOPE = 0.2


def _leaky(v):
    return jnp.where(v >= 0, v, NEG_SLOPE * v)


# ---------------------------------------------------------------------------
# Pallas kernels.  One grid step = one (n, d) output plane.
#   x?_ref : (1, 1, H+2, (W+2)*Cin)   bf16  depth slices d, d+1, d+2 of the
#                                           zero-padded input
#   w_ref  : (3, 3, (W+2)*Cin, W*Nout) bf16 banded weights (depth-tap, h-tap)
#   b_ref  : (1, W*Nout)               f32
#   o_ref  : (1, 1, H, W*Nout)
# 3x3x3 gather: depth taps = the three refs, height taps = static row slices,
# width taps = folded into the banded weight columns -> 9 dots, no reshapes.
# ---------------------------------------------------------------------------
def _conv_kernel(x0_ref, x1_ref, x2_ref, w_ref, b_ref, o_ref):
    h = o_ref.shape[2]
    acc = jnp.zeros((h, o_ref.shape[3]), jnp.float32)
    for a, xr in enumerate((x0_ref, x1_ref, x2_ref)):
        xa = xr[0, 0, :, :].astype(jnp.float32)            # (H+2, (W+2)*Cin)
        for b in range(3):
            acc = acc + jnp.dot(xa[b:b + h, :].astype(jnp.bfloat16),
                                w_ref[a, b],
                                preferred_element_type=jnp.float32)
    o_ref[0, 0, :, :] = (acc + b_ref[...]).astype(o_ref.dtype)


def _resblock_kernel(ya_ref, yb_ref, yc_ref, res_ref,
                     w1_ref, b1_ref, w2_ref, b2_ref, o_ref):
    """Fused ResBlock + trailing LeakyReLU (blocks[1] and blocks[2]):
         t = LeakyReLU(y1)                     (computed in-kernel from bf16 y1)
         h = LeakyReLU(conv3x3x3(t) + b1)      (banded-weight dots, h stays in VMEM)
         o = LeakyReLU(y1 + conv1x1(h) + b2)   (block-diagonal 1x1 weight)"""
    h = o_ref.shape[2]
    acc = jnp.zeros((h, w1_ref.shape[3]), jnp.float32)      # (H, W*cr)
    for a, yr in enumerate((ya_ref, yb_ref, yc_ref)):
        t = _leaky(yr[0, 0, :, :].astype(jnp.float32))      # (H+2, (W+2)*ch)
        for b in range(3):
            acc = acc + jnp.dot(t[b:b + h, :].astype(jnp.bfloat16),
                                w1_ref[a, b],
                                preferred_element_type=jnp.float32)
    hact = _leaky(acc + b1_ref[...])                        # (H, W*cr) f32
    z = jnp.dot(hact.astype(jnp.bfloat16), w2_ref[...],
                preferred_element_type=jnp.float32)         # (H, W*ch)
    resid = res_ref[0, 0, :, :].astype(jnp.float32)
    o_ref[0, 0, :, :] = _leaky(resid + z + b2_ref[...]).astype(o_ref.dtype)


# ---------------------------------------------------------------------------
# pallas_call wrappers
# ---------------------------------------------------------------------------
def _conv_call(xp, wb, brow, *, out_dtype, cost=None):
    n, dp, hp, wcin = xp.shape
    d, h = dp - 2, hp - 2
    ncols = wb.shape[3]

    def x_spec(a):
        return pl.BlockSpec((1, 1, hp, wcin), lambda i, j, a=a: (i, j + a, 0, 0))

    return pl.pallas_call(
        _conv_kernel,
        grid=(n, d),
        in_specs=[x_spec(0), x_spec(1), x_spec(2),
                  pl.BlockSpec(wb.shape, lambda i, j: (0, 0, 0, 0)),
                  pl.BlockSpec(brow.shape, lambda i, j: (0, 0))],
        out_specs=pl.BlockSpec((1, 1, h, ncols), lambda i, j: (i, j, 0, 0)),
        out_shape=jax.ShapeDtypeStruct((n, d, h, ncols), out_dtype),
        compiler_params=pltpu.CompilerParams(
            dimension_semantics=("parallel", "parallel")),
        cost_estimate=cost,
    )(xp, xp, xp, wb, brow)


def _resblock_call(y1p, y1, w1b, b1r, w2bd, b2r, *, cost=None):
    n, dp, hp, wch = y1p.shape
    d, h = dp - 2, hp - 2
    ncols = y1.shape[3]                                     # W*ch

    def x_spec(a):
        return pl.BlockSpec((1, 1, hp, wch), lambda i, j, a=a: (i, j + a, 0, 0))

    return pl.pallas_call(
        _resblock_kernel,
        grid=(n, d),
        in_specs=[x_spec(0), x_spec(1), x_spec(2),
                  pl.BlockSpec((1, 1, h, ncols), lambda i, j: (i, j, 0, 0)),
                  pl.BlockSpec(w1b.shape, lambda i, j: (0, 0, 0, 0)),
                  pl.BlockSpec(b1r.shape, lambda i, j: (0, 0)),
                  pl.BlockSpec(w2bd.shape, lambda i, j: (0, 0)),
                  pl.BlockSpec(b2r.shape, lambda i, j: (0, 0))],
        out_specs=pl.BlockSpec((1, 1, h, ncols), lambda i, j: (i, j, 0, 0)),
        out_shape=jax.ShapeDtypeStruct((n, d, h, ncols), jnp.bfloat16),
        compiler_params=pltpu.CompilerParams(
            dimension_semantics=("parallel", "parallel")),
        cost_estimate=cost,
    )(y1p, y1p, y1p, y1, w1b, b1r, w2bd, b2r)


# ---------------------------------------------------------------------------
# Host-side (tiny) weight repacking and halo padding
# ---------------------------------------------------------------------------
def _conv_w_to_taps(w):
    """Torch Conv3d weight (Cout, Cin, 3, 3, 3) -> (3, 3, 3, Cin, Cout)."""
    return jnp.transpose(w, (2, 3, 4, 1, 0))


def _fold_w_axis(wtap, width):
    """Fold the width tap axis into a banded weight:
    (3, 3, 3, Cin, Nout) -> (3, 3, (width+2)*Cin, width*Nout) with
    M[a, b, wx*Cin+ci, w*Nout+o] = wtap[a, b, wx-w, ci, o] for 0<=wx-w<=2."""
    cin, nout = wtap.shape[3], wtap.shape[4]
    sel = np.zeros((3, width + 2, width), np.float32)
    for w in range(width):
        for c in range(3):
            sel[c, w + c, w] = 1.0
    m = jnp.einsum('cxw,abcio->abxiwo', sel, wtap.astype(jnp.float32),
                   precision=jax.lax.Precision.HIGHEST)
    return m.reshape(3, 3, (width + 2) * cin, width * nout)


def _block_diag_1x1(w2m, width):
    """(cr, ch) 1x1-conv weight -> (width*cr, width*ch) block-diagonal matrix."""
    eye = np.eye(width, dtype=np.float32)
    m = jnp.einsum('wx,io->wixo', eye, w2m.astype(jnp.float32))
    return m.reshape(width * w2m.shape[0], width * w2m.shape[1])


@functools.lru_cache(maxsize=None)
def _phase_selector():
    """0/1 tensor S[a,b,c, rd,rh,rw, kd,kh,kw]: tap (a,b,c) of a 3x3x3 window over
    the zero-padded ConvTranspose input feeds output phase (rd,rh,rw) through
    ConvTranspose3d(k=(4,8,8), s=(2,4,4), p=(1,2,2)) kernel element (kd,kh,kw).
    kd = rd+1-2(a-1), kh = rh+2-4(b-1), kw = rw+2-4(c-1)."""
    s = np.zeros((3, 3, 3, 2, 4, 4, 4, 8, 8), np.float32)
    for a in range(3):
        for rd in range(2):
            kd = rd + 1 - 2 * (a - 1)
            if not 0 <= kd < 4:
                continue
            for b in range(3):
                for rh in range(4):
                    kh = rh + 2 - 4 * (b - 1)
                    if not 0 <= kh < 8:
                        continue
                    for c in range(3):
                        for rw in range(4):
                            kw = rw + 2 - 4 * (c - 1)
                            if not 0 <= kw < 8:
                                continue
                            s[a, b, c, rd, rh, rw, kd, kh, kw] = 1.0
    return s


def _convT_phase_taps(wtp):
    """ConvTranspose3d weight (Cin, Coutp, 4, 8, 8) (Coutp already zero-padded)
    -> per-tap weights (3, 3, 3, Cin, 32*Coutp); column = ((rd*4+rh)*4+rw)*Coutp+co."""
    cin, coutp = wtp.shape[0], wtp.shape[1]
    s = jnp.asarray(_phase_selector())
    w3 = jnp.einsum('abcpqrdef,iodef->abcipqro', s, wtp.astype(jnp.float32),
                    precision=jax.lax.Precision.HIGHEST)
    return w3.reshape(3, 3, 3, cin, 32 * coutp)


def _pad_halo_flat(x):
    """(N, D, H, W, C) -> zero-halo (N, D+2, H+2, (W+2)*C)  (halo value 0,
    and LeakyReLU(0)=0, so the ResBlock's in-kernel activation keeps it valid)."""
    n, d, h, w, c = x.shape
    xp = jnp.pad(x, ((0, 0), (1, 1), (1, 1), (1, 1), (0, 0)))
    return xp.reshape(n, d + 2, h + 2, (w + 2) * c)


# ---------------------------------------------------------------------------
# Decoder forward (Pallas)
# ---------------------------------------------------------------------------
@jax.jit
def decoder_forward_pallas(x_ncdhw, params):
    n, _, d, h, w = x_ncdhw.shape
    ch = params['w0'].shape[0]
    cr = params['w_r1'].shape[0]
    cout = params['wt'].shape[1]
    coutp = -(-cout // 4) * 4          # pad so the phase matmul N = 32*coutp is 128-aligned

    x = jnp.transpose(x_ncdhw, (0, 2, 3, 4, 1)).astype(jnp.bfloat16)   # NCDHW -> NDHWC
    xp = _pad_halo_flat(x)

    def cost(kcols, ncols, in_bytes, out_bytes):
        return pl.CostEstimate(flops=2 * n * d * 9 * h * kcols * ncols,
                               transcendentals=0,
                               bytes_accessed=int(in_bytes + out_bytes))

    # blocks[0]: Conv3d(in_channel, channel, 3, padding=1)  -> bf16 y1
    w0b = _fold_w_axis(_conv_w_to_taps(params['w0']), w).astype(jnp.bfloat16)
    b0r = jnp.tile(params['b0'], w).reshape(1, w * ch).astype(jnp.float32)
    y1 = _conv_call(xp, w0b, b0r, out_dtype=jnp.bfloat16,
                    cost=cost(xp.shape[3], w * ch,
                              3 * xp.size * 2 + w0b.size * 2,
                              n * d * h * w * ch * 2))        # (N, D, H, W*ch) bf16

    # blocks[1..2]: ResBlock(channel, n_res_channel) + LeakyReLU, one fused kernel
    y1p = _pad_halo_flat(y1.reshape(n, d, h, w, ch))
    w1b = _fold_w_axis(_conv_w_to_taps(params['w_r1']), w).astype(jnp.bfloat16)
    b1r = jnp.tile(params['b_r1'], w).reshape(1, w * cr).astype(jnp.float32)
    w2m = jnp.transpose(params['w_r2'][:, :, 0, 0, 0], (1, 0))          # (cr, ch)
    w2bd = _block_diag_1x1(w2m, w).astype(jnp.bfloat16)
    b2r = jnp.tile(params['b_r2'], w).reshape(1, w * ch).astype(jnp.float32)
    y2 = _resblock_call(y1p, y1, w1b, b1r, w2bd, b2r,
                        cost=cost(y1p.shape[3], w * cr,
                                  4 * y1p.size * 2 + w1b.size * 2,
                                  n * d * h * w * ch * 2))    # (N, D, H, W*ch) bf16

    # blocks[3]: ConvTranspose3d(channel, out_channel, (4,8,8), (2,4,4), (1,2,2))
    # via stride-phase decomposition (a 3x3x3-window conv producing 32*coutp
    # lane-dense phase columns per voxel) + one fused depth-to-space transpose.
    y2p = _pad_halo_flat(y2.reshape(n, d, h, w, ch))
    wtp = jnp.pad(params['wt'], ((0, 0), (0, coutp - cout), (0, 0), (0, 0), (0, 0)))
    wphb = _fold_w_axis(_convT_phase_taps(wtp), w).astype(jnp.bfloat16)
    btp = jnp.pad(params['bt'], (0, coutp - cout))
    b3r = jnp.tile(btp, 32 * w).reshape(1, w * 32 * coutp).astype(jnp.float32)
    ph = _conv_call(y2p, wphb, b3r, out_dtype=jnp.float32,
                    cost=cost(y2p.shape[3], w * 32 * coutp,
                              3 * y2p.size * 2 + wphb.size * 2,
                              n * d * h * w * 32 * coutp * 4))  # (N, D, H, W*32*coutp)

    out = ph.reshape(n, d, h, w, 2, 4, 4, coutp)
    out = jnp.transpose(out, (0, 7, 1, 4, 2, 5, 3, 6))          # single fused transpose
    out = out.reshape(n, coutp, 2 * d, 4 * h, 4 * w)
    return out[:, :cout]                                        # drop the pad channel


# ---------------------------------------------------------------------------
# Pure-JAX references (lax convs) for verification
# ---------------------------------------------------------------------------
def _ref_conv3d(x, w, b, pad, precision):
    dn = jax.lax.conv_dimension_numbers(x.shape, w.shape, ("NCDHW", "OIDHW", "NCDHW"))
    y = jax.lax.conv_general_dilated(x, w, (1, 1, 1), [(p, p) for p in pad],
                                     dimension_numbers=dn, precision=precision)
    return y + b.reshape(1, -1, 1, 1, 1)


def _ref_convT3d(x, w, b, stride, pad, precision):
    k = w.shape[2:]
    w_oi = jnp.transpose(jnp.flip(w, (2, 3, 4)), (1, 0, 2, 3, 4))
    dn = jax.lax.conv_dimension_numbers(x.shape, w_oi.shape, ("NCDHW", "OIDHW", "NCDHW"))
    pads = [(kk - 1 - pp, kk - 1 - pp) for kk, pp in zip(k, pad)]
    y = jax.lax.conv_general_dilated(x, w_oi, (1, 1, 1), pads, lhs_dilation=stride,
                                     dimension_numbers=dn, precision=precision)
    return y + b.reshape(1, -1, 1, 1, 1)


def decoder_forward_ref(x, params, *, bf16_policy=False):
    """bf16_policy=False -> pure f32 reference; True -> mirrors the kernels'
    exact precision policy (bf16 matmul operands / stored activations,
    f32 accumulate and bias)."""
    hi = jax.lax.Precision.HIGHEST
    r = (lambda v: v.astype(jnp.bfloat16).astype(jnp.float32)) if bf16_policy \
        else (lambda v: v)
    y1 = r(_ref_conv3d(r(x), r(params['w0']), params['b0'], (1, 1, 1), hi))
    t = r(_leaky(y1))
    hh = _leaky(_ref_conv3d(t, r(params['w_r1']), params['b_r1'], (1, 1, 1), hi))
    hh = _ref_conv3d(r(hh), r(params['w_r2']), params['b_r2'], (0, 0, 0), hi)
    y2 = r(_leaky(y1 + hh))
    return _ref_convT3d(y2, r(params['wt']), params['bt'], (2, 4, 4), (1, 2, 2), hi)


# ---------------------------------------------------------------------------
if __name__ == "__main__":
    # Decoder(in_channel=4, out_channel=3, channel=8, n_res_block=1, n_res_channel=4)
    N, in_channel, out_channel, channel, n_res_channel = 2, 4, 3, 8, 4
    D, H, W = 2, 4, 4

    key = jax.random.PRNGKey(0)
    ks = jax.random.split(key, 9)
    params = {
        "w0": 0.1 * jax.random.normal(ks[0], (channel, in_channel, 3, 3, 3), jnp.float32),
        "b0": 0.1 * jax.random.normal(ks[1], (channel,), jnp.float32),
        "w_r1": 0.1 * jax.random.normal(ks[2], (n_res_channel, channel, 3, 3, 3), jnp.float32),
        "b_r1": 0.1 * jax.random.normal(ks[3], (n_res_channel,), jnp.float32),
        "w_r2": 0.1 * jax.random.normal(ks[4], (channel, n_res_channel, 1, 1, 1), jnp.float32),
        "b_r2": 0.1 * jax.random.normal(ks[5], (channel,), jnp.float32),
        "wt": 0.1 * jax.random.normal(ks[6], (channel, out_channel, 4, 8, 8), jnp.float32),
        "bt": 0.1 * jax.random.normal(ks[7], (out_channel,), jnp.float32),
    }
    x = jax.random.normal(ks[8], (N, in_channel, D, H, W), jnp.float32)

    out = jax.block_until_ready(decoder_forward_pallas(x, params))
    assert out.shape == (N, out_channel, 2 * D, 4 * H, 4 * W), out.shape

    ref_bf16 = jax.block_until_ready(decoder_forward_ref(x, params, bf16_policy=True))
    ref_f32 = jax.block_until_ready(decoder_forward_ref(x, params))

    # tight check vs a reference using the kernels' exact precision policy
    np.testing.assert_allclose(np.asarray(out), np.asarray(ref_bf16), rtol=5e-3, atol=5e-3)
    # loose sanity check vs the pure-f32 reference
    np.testing.assert_allclose(np.asarray(out), np.asarray(ref_f32), rtol=5e-2, atol=5e-2)
    print("KERNEL_OK")
</pallas_src>

<mosaic_0001>
module attributes {stable_mosaic.version = 11 : i64} {
  func.func @_conv_kernel(%arg0: i32, %arg1: i32, %arg2: memref<1x1x6x24xbf16, #tpu.memory_space<vmem>>, %arg3: memref<1x1x6x24xbf16, #tpu.memory_space<vmem>>, %arg4: memref<1x1x6x24xbf16, #tpu.memory_space<vmem>>, %arg5: memref<3x3x24x32xbf16, #tpu.memory_space<vmem>>, %arg6: memref<1x32xf32, #tpu.memory_space<vmem>>, %arg7: memref<1x1x4x32xbf16, #tpu.memory_space<vmem>>) attributes {dimension_semantics = [#tpu.dimension_semantics<parallel>, #tpu.dimension_semantics<parallel>], iteration_bounds = array<i64: 2, 2>, scalar_prefetch = 0 : i64, scratch_operands = 0 : i64, tpu.core_type = #tpu.core_type<tc>, window_params = [{transform_indices = @transform_0, window_bounds = array<i64: 1, 1, 6, 24>}, {transform_indices = @transform_1, window_bounds = array<i64: 1, 1, 6, 24>}, {transform_indices = @transform_2, window_bounds = array<i64: 1, 1, 6, 24>}, {pipeline_mode = #tpu.pipeline_mode<synchronous>, transform_indices = @transform_3, window_bounds = array<i64: 3, 3, 24, 32>}, {pipeline_mode = #tpu.pipeline_mode<synchronous>, transform_indices = @transform_4, window_bounds = array<i64: 1, 32>}, {transform_indices = @transform_5, window_bounds = array<i64: 1, 1, 4, 32>}]} {
    %cst = arith.constant 0.000000e+00 : f32
    %0 = vector.broadcast %cst : f32 to vector<4x32xf32>
    %c0 = arith.constant 0 : index
    %c0_0 = arith.constant 0 : index
    %c0_1 = arith.constant 0 : index
    %c0_2 = arith.constant 0 : index
    %1 = vector.load %arg2[%c0, %c0_0, %c0_1, %c0_2] : memref<1x1x6x24xbf16, #tpu.memory_space<vmem>>, vector<1x1x6x24xbf16>
    %2 = vector.shape_cast %1 : vector<1x1x6x24xbf16> to vector<6x24xbf16>
    %3 = arith.extf %2 : vector<6x24xbf16> to vector<6x24xf32>
    %4 = vector.extract_strided_slice %3 {offsets = [0, 0], sizes = [4, 24], strides = [1, 1]} : vector<6x24xf32> to vector<4x24xf32>
    %5 = arith.truncf %4 : vector<4x24xf32> to vector<4x24xbf16>
    %c0_3 = arith.constant 0 : index
    %c0_4 = arith.constant 0 : index
    %c0_5 = arith.constant 0 : index
    %c0_6 = arith.constant 0 : index
    %6 = vector.load %arg5[%c0_3, %c0_4, %c0_5, %c0_6] : memref<3x3x24x32xbf16, #tpu.memory_space<vmem>>, vector<1x1x24x32xbf16>
    %7 = vector.shape_cast %6 : vector<1x1x24x32xbf16> to vector<24x32xbf16>
    %cst_7 = arith.constant dense<0.000000e+00> : vector<4x32xf32>
    %8 = tpu.matmul %5, %7, %cst_7 {dimension_numbers = #tpu.dot_dimension_numbers<[1], [0], [0], [1], [0, 0, 1, 1], [], []>} : vector<4x24xbf16>, vector<24x32xbf16>, vector<4x32xf32> -> vector<4x32xf32>
    %9 = arith.addf %0, %8 : vector<4x32xf32>
    %10 = vector.extract_strided_slice %3 {offsets = [1, 0], sizes = [4, 24], strides = [1, 1]} : vector<6x24xf32> to vector<4x24xf32>
    %11 = arith.truncf %10 : vector<4x24xf32> to vector<4x24xbf16>
    %c0_8 = arith.constant 0 : index
    %c1 = arith.constant 1 : index
    %c0_9 = arith.constant 0 : index
    %c0_10 = arith.constant 0 : index
    %12 = vector.load %arg5[%c0_8, %c1, %c0_9, %c0_10] : memref<3x3x24x32xbf16, #tpu.memory_space<vmem>>, vector<1x1x24x32xbf16>
    %13 = vector.shape_cast %12 : vector<1x1x24x32xbf16> to vector<24x32xbf16>
    %cst_11 = arith.constant dense<0.000000e+00> : vector<4x32xf32>
    %14 = tpu.matmul %11, %13, %cst_11 {dimension_numbers = #tpu.dot_dimension_numbers<[1], [0], [0], [1], [0, 0, 1, 1], [], []>} : vector<4x24xbf16>, vector<24x32xbf16>, vector<4x32xf32> -> vector<4x32xf32>
    %15 = arith.addf %9, %14 : vector<4x32xf32>
    %16 = vector.extract_strided_slice %3 {offsets = [2, 0], sizes = [4, 24], strides = [1, 1]} : vector<6x24xf32> to vector<4x24xf32>
    %17 = arith.truncf %16 : vector<4x24xf32> to vector<4x24xbf16>
    %c0_12 = arith.constant 0 : index
    %c2 = arith.constant 2 : index
    %c0_13 = arith.constant 0 : index
    %c0_14 = arith.constant 0 : index
    %18 = vector.load %arg5[%c0_12, %c2, %c0_13, %c0_14] : memref<3x3x24x32xbf16, #tpu.memory_space<vmem>>, vector<1x1x24x32xbf16>
    %19 = vector.shape_cast %18 : vector<1x1x24x32xbf16> to vector<24x32xbf16>
    %cst_15 = arith.constant dense<0.000000e+00> : vector<4x32xf32>
    %20 = tpu.matmul %17, %19, %cst_15 {dimension_numbers = #tpu.dot_dimension_numbers<[1], [0], [0], [1], [0, 0, 1, 1], [], []>} : vector<4x24xbf16>, vector<24x32xbf16>, vector<4x32xf32> -> vector<4x32xf32>
    %21 = arith.addf %15, %20 : vector<4x32xf32>
    %c0_16 = arith.constant 0 : index
    %c0_17 = arith.constant 0 : index
    %c0_18 = arith.constant 0 : index
    %c0_19 = arith.constant 0 : index
    %22 = vector.load %arg3[%c0_16, %c0_17, %c0_18, %c0_19] : memref<1x1x6x24xbf16, #tpu.memory_space<vmem>>, vector<1x1x6x24xbf16>
    %23 = vector.shape_cast %22 : vector<1x1x6x24xbf16> to vector<6x24xbf16>
    %24 = arith.extf %23 : vector<6x24xbf16> to vector<6x24xf32>
    %25 = vector.extract_strided_slice %24 {offsets = [0, 0], sizes = [4, 24], strides = [1, 1]} : vector<6x24xf32> to vector<4x24xf32>
    %26 = arith.truncf %25 : vector<4x24xf32> to vector<4x24xbf16>
    %c1_20 = arith.constant 1 : index
    %c0_21 = arith.constant 0 : index
    %c0_22 = arith.constant 0 : index
    %c0_23 = arith.constant 0 : index
    %27 = vector.load %arg5[%c1_20, %c0_21, %c0_22, %c0_23] : memref<3x3x24x32xbf16, #tpu.memory_space<vmem>>, vector<1x1x24x32xbf16>
    %28 = vector.shape_cast %27 : vector<1x1x24x32xbf16> to vector<24x32xbf16>
    %cst_24 = arith.constant dense<0.000000e+00> : vector<4x32xf32>
    %29 = tpu.matmul %26, %28, %cst_24 {dimension_numbers = #tpu.dot_dimension_numbers<[1], [0], [0], [1], [0, 0, 1, 1], [], []>} : vector<4x24xbf16>, vector<24x32xbf16>, vector<4x32xf32> -> vector<4x32xf32>
    %30 = arith.addf %21, %29 : vector<4x32xf32>
    %31 = vector.extract_strided_slice %24 {offsets = [1, 0], sizes = [4, 24], strides = [1, 1]} : vector<6x24xf32> to vector<4x24xf32>
    %32 = arith.truncf %31 : vector<4x24xf32> to vector<4x24xbf16>
    %c1_25 = arith.constant 1 : index
    %c1_26 = arith.constant 1 : index
    %c0_27 = arith.constant 0 : index
    %c0_28 = arith.constant 0 : index
    %33 = vector.load %arg5[%c1_25, %c1_26, %c0_27, %c0_28] : memref<3x3x24x32xbf16, #tpu.memory_space<vmem>>, vector<1x1x24x32xbf16>
    %34 = vector.shape_cast %33 : vector<1x1x24x32xbf16> to vector<24x32xbf16>
    %cst_29 = arith.constant dense<0.000000e+00> : vector<4x32xf32>
    %35 = tpu.matmul %32, %34, %cst_29 {dimension_numbers = #tpu.dot_dimension_numbers<[1], [0], [0], [1], [0, 0, 1, 1], [], []>} : vector<4x24xbf16>, vector<24x32xbf16>, vector<4x32xf32> -> vector<4x32xf32>
    %36 = arith.addf %30, %35 : vector<4x32xf32>
    %37 = vector.extract_strided_slice %24 {offsets = [2, 0], sizes = [4, 24], strides = [1, 1]} : vector<6x24xf32> to vector<4x24xf32>
    %38 = arith.truncf %37 : vector<4x24xf32> to vector<4x24xbf16>
    %c1_30 = arith.constant 1 : index
    %c2_31 = arith.constant 2 : index
    %c0_32 = arith.constant 0 : index
    %c0_33 = arith.constant 0 : index
    %39 = vector.load %arg5[%c1_30, %c2_31, %c0_32, %c0_33] : memref<3x3x24x32xbf16, #tpu.memory_space<vmem>>, vector<1x1x24x32xbf16>
    %40 = vector.shape_cast %39 : vector<1x1x24x32xbf16> to vector<24x32xbf16>
    %cst_34 = arith.constant dense<0.000000e+00> : vector<4x32xf32>
    %41 = tpu.matmul %38, %40, %cst_34 {dimension_numbers = #tpu.dot_dimension_numbers<[1], [0], [0], [1], [0, 0, 1, 1], [], []>} : vector<4x24xbf16>, vector<24x32xbf16>, vector<4x32xf32> -> vector<4x32xf32>
    %42 = arith.addf %36, %41 : vector<4x32xf32>
    %c0_35 = arith.constant 0 : index
    %c0_36 = arith.constant 0 : index
    %c0_37 = arith.constant 0 : index
    %c0_38 = arith.constant 0 : index
    %43 = vector.load %arg4[%c0_35, %c0_36, %c0_37, %c0_38] : memref<1x1x6x24xbf16, #tpu.memory_space<vmem>>, vector<1x1x6x24xbf16>
    %44 = vector.shape_cast %43 : vector<1x1x6x24xbf16> to vector<6x24xbf16>
    %45 = arith.extf %44 : vector<6x24xbf16> to vector<6x24xf32>
    %46 = vector.extract_strided_slice %45 {offsets = [0, 0], sizes = [4, 24], strides = [1, 1]} : vector<6x24xf32> to vector<4x24xf32>
    %47 = arith.truncf %46 : vector<4x24xf32> to vector<4x24xbf16>
    %c2_39 = arith.constant 2 : index
    %c0_40 = arith.constant 0 : index
    %c0_41 = arith.constant 0 : index
    %c0_42 = arith.constant 0 : index
    %48 = vector.load %arg5[%c2_39, %c0_40, %c0_41, %c0_42] : memref<3x3x24x32xbf16, #tpu.memory_space<vmem>>, vector<1x1x24x32xbf16>
    %49 = vector.shape_cast %48 : vector<1x1x24x32xbf16> to vector<24x32xbf16>
    %cst_43 = arith.constant dense<0.000000e+00> : vector<4x32xf32>
    %50 = tpu.matmul %47, %49, %cst_43 {dimension_numbers = #tpu.dot_dimension_numbers<[1], [0], [0], [1], [0, 0, 1, 1], [], []>} : vector<4x24xbf16>, vector<24x32xbf16>, vector<4x32xf32> -> vector<4x32xf32>
    %51 = arith.addf %42, %50 : vector<4x32xf32>
    %52 = vector.extract_strided_slice %45 {offsets = [1, 0], sizes = [4, 24], strides = [1, 1]} : vector<6x24xf32> to vector<4x24xf32>
    %53 = arith.truncf %52 : vector<4x24xf32> to vector<4x24xbf16>
    %c2_44 = arith.constant 2 : index
    %c1_45 = arith.constant 1 : index
    %c0_46 = arith.constant 0 : index
    %c0_47 = arith.constant 0 : index
    %54 = vector.load %arg5[%c2_44, %c1_45, %c0_46, %c0_47] : memref<3x3x24x32xbf16, #tpu.memory_space<vmem>>, vector<1x1x24x32xbf16>
    %55 = vector.shape_cast %54 : vector<1x1x24x32xbf16> to vector<24x32xbf16>
    %cst_48 = arith.constant dense<0.000000e+00> : vector<4x32xf32>
    %56 = tpu.matmul %53, %55, %cst_48 {dimension_numbers = #tpu.dot_dimension_numbers<[1], [0], [0], [1], [0, 0, 1, 1], [], []>} : vector<4x24xbf16>, vector<24x32xbf16>, vector<4x32xf32> -> vector<4x32xf32>
    %57 = arith.addf %51, %56 : vector<4x32xf32>
    %58 = vector.extract_strided_slice %45 {offsets = [2, 0], sizes = [4, 24], strides = [1, 1]} : vector<6x24xf32> to vector<4x24xf32>
    %59 = arith.truncf %58 : vector<4x24xf32> to vector<4x24xbf16>
    %c2_49 = arith.constant 2 : index
    %c2_50 = arith.constant 2 : index
    %c0_51 = arith.constant 0 : index
    %c0_52 = arith.constant 0 : index
    %60 = vector.load %arg5[%c2_49, %c2_50, %c0_51, %c0_52] : memref<3x3x24x32xbf16, #tpu.memory_space<vmem>>, vector<1x1x24x32xbf16>
    %61 = vector.shape_cast %60 : vector<1x1x24x32xbf16> to vector<24x32xbf16>
    %cst_53 = arith.constant dense<0.000000e+00> : vector<4x32xf32>
    %62 = tpu.matmul %59, %61, %cst_53 {dimension_numbers = #tpu.dot_dimension_numbers<[1], [0], [0], [1], [0, 0, 1, 1], [], []>} : vector<4x24xbf16>, vector<24x32xbf16>, vector<4x32xf32> -> vector<4x32xf32>
    %63 = arith.addf %57, %62 : vector<4x32xf32>
    %c0_54 = arith.constant 0 : index
    %c0_55 = arith.constant 0 : index
    %64 = vector.load %arg6[%c0_54, %c0_55] : memref<1x32xf32, #tpu.memory_space<vmem>>, vector<1x32xf32>
    %65 = vector.broadcast %64 : vector<1x32xf32> to vector<4x32xf32>
    %66 = arith.addf %63, %65 : vector<4x32xf32>
    %67 = arith.truncf %66 : vector<4x32xf32> to vector<4x32xbf16>
    %c0_56 = arith.constant 0 : index
    %c0_57 = arith.constant 0 : index
    %c0_58 = arith.constant 0 : index
    %c0_59 = arith.constant 0 : index
    %68 = vector.load %arg7[%c0_56, %c0_57, %c0_58, %c0_59] : memref<1x1x4x32xbf16, #tpu.memory_space<vmem>>, vector<1x1x4x32xbf16>
    %69 = vector.shape_cast %68 : vector<1x1x4x32xbf16> to vector<4x32xbf16>
    %70 = vector.shape_cast %67 : vector<4x32xbf16> to vector<1x1x4x32xbf16>
    tpu.vector_store %arg7[%c0_56, %c0_57, %c0_58, %c0_59], %70 {strides = array<i32>} : memref<1x1x4x32xbf16, #tpu.memory_space<vmem>>, vector<1x1x4x32xbf16>,
    return
  }
  func.func @transform_0(%arg0: i32, %arg1: i32) -> (i32, i32, i32, i32) {
    %c0_i32 = arith.constant 0 : i32
    %0 = arith.addi %arg1, %c0_i32 : i32
    %c0_i32_0 = arith.constant 0 : i32
    %c0_i32_1 = arith.constant 0 : i32
    %c0_i32_2 = arith.constant 0 : i32
    return %arg0, %0, %c0_i32_0, %c0_i32_1 : i32, i32, i32, i32
  }
  func.func @transform_1(%arg0: i32, %arg1: i32) -> (i32, i32, i32, i32) {
    %c1_i32 = arith.constant 1 : i32
    %0 = arith.addi %arg1, %c1_i32 : i32
    %c0_i32 = arith.constant 0 : i32
    %c0_i32_0 = arith.constant 0 : i32
    %c0_i32_1 = arith.constant 0 : i32
    return %arg0, %0, %c0_i32, %c0_i32_0 : i32, i32, i32, i32
  }
  func.func @transform_2(%arg0: i32, %arg1: i32) -> (i32, i32, i32, i32) {
    %c2_i32 = arith.constant 2 : i32
    %0 = arith.addi %arg1, %c2_i32 : i32
    %c0_i32 = arith.constant 0 : i32
    %c0_i32_0 = arith.constant 0 : i32
    %c0_i32_1 = arith.constant 0 : i32
    return %arg0, %0, %c0_i32, %c0_i32_0 : i32, i32, i32, i32
  }
  func.func @transform_3(%arg0: i32, %arg1: i32) -> (i32, i32, i32, i32) {
    %c0_i32 = arith.constant 0 : i32
    %c0_i32_0 = arith.constant 0 : i32
    %c0_i32_1 = arith.constant 0 : i32
    %c0_i32_2 = arith.constant 0 : i32
    %c0_i32_3 = arith.constant 0 : i32
    return %c0_i32, %c0_i32_0, %c0_i32_1, %c0_i32_2 : i32, i32, i32, i32
  }
  func.func @transform_4(%arg0: i32, %arg1: i32) -> (i32, i32) {
    %c0_i32 = arith.constant 0 : i32
    %c0_i32_0 = arith.constant 0 : i32
    %c0_i32_1 = arith.constant 0 : i32
    return %c0_i32, %c0_i32_0 : i32, i32
  }
  func.func @transform_5(%arg0: i32, %arg1: i32) -> (i32, i32, i32, i32) {
    %c0_i32 = arith.constant 0 : i32
    %c0_i32_0 = arith.constant 0 : i32
    %c0_i32_1 = arith.constant 0 : i32
    return %arg0, %arg1, %c0_i32, %c0_i32_0 : i32, i32, i32, i32
  }
}

module attributes {stable_mosaic.version = 11 : i64} {
  func.func @_resblock_kernel(%arg0: i32, %arg1: i32, %arg2: memref<1x1x6x48xbf16, #tpu.memory_space<vmem>>, %arg3: memref<1x1x6x48xbf16, #tpu.memory_space<vmem>>, %arg4: memref<1x1x6x48xbf16, #tpu.memory_space<vmem>>, %arg5: memref<1x1x4x32xbf16, #tpu.memory_space<vmem>>, %arg6: memref<3x3x48x16xbf16, #tpu.memory_space<vmem>>, %arg7: memref<1x16xf32, #tpu.memory_space<vmem>>, %arg8: memref<16x32xbf16, #tpu.memory_space<vmem>>, %arg9: memref<1x32xf32, #tpu.memory_space<vmem>>, %arg10: memref<1x1x4x32xbf16, #tpu.memory_space<vmem>>) attributes {dimension_semantics = [#tpu.dimension_semantics<parallel>, #tpu.dimension_semantics<parallel>], iteration_bounds = array<i64: 2, 2>, scalar_prefetch = 0 : i64, scratch_operands = 0 : i64, tpu.core_type = #tpu.core_type<tc>, window_params = [{transform_indices = @transform_0, window_bounds = array<i64: 1, 1, 6, 48>}, {transform_indices = @transform_1, window_bounds = array<i64: 1, 1, 6, 48>}, {transform_indices = @transform_2, window_bounds = array<i64: 1, 1, 6, 48>}, {transform_indices = @transform_3, window_bounds = array<i64: 1, 1, 4, 32>}, {pipeline_mode = #tpu.pipeline_mode<synchronous>, transform_indices = @transform_4, window_bounds = array<i64: 3, 3, 48, 16>}, {pipeline_mode = #tpu.pipeline_mode<synchronous>, transform_indices = @transform_5, window_bounds = array<i64: 1, 16>}, {pipeline_mode = #tpu.pipeline_mode<synchronous>, transform_indices = @transform_6, window_bounds = array<i64: 16, 32>}, {pipeline_mode = #tpu.pipeline_mode<synchronous>, transform_indices = @transform_7, window_bounds = array<i64: 1, 32>}, {transform_indices = @transform_8, window_bounds = array<i64: 1, 1, 4, 32>}]} {
    %cst = arith.constant 0.000000e+00 : f32
    %0 = vector.broadcast %cst : f32 to vector<4x16xf32>
    %c0 = arith.constant 0 : index
    %c0_0 = arith.constant 0 : index
    %c0_1 = arith.constant 0 : index
    %c0_2 = arith.constant 0 : index
    %1 = vector.load %arg2[%c0, %c0_0, %c0_1, %c0_2] : memref<1x1x6x48xbf16, #tpu.memory_space<vmem>>, vector<1x1x6x48xbf16>
    %2 = vector.shape_cast %1 : vector<1x1x6x48xbf16> to vector<6x48xbf16>
    %3 = arith.extf %2 : vector<6x48xbf16> to vector<6x48xf32>
    %cst_3 = arith.constant 0.000000e+00 : f32
    %4 = vector.broadcast %cst_3 : f32 to vector<6x48xf32>
    %5 = arith.cmpf oge, %3, %4 : vector<6x48xf32>
    %cst_4 = arith.constant 2.000000e-01 : f32
    %6 = vector.broadcast %cst_4 : f32 to vector<6x48xf32>
    %7 = arith.mulf %6, %3 : vector<6x48xf32>
    %8 = arith.select %5, %3, %7 : vector<6x48xi1>, vector<6x48xf32>
    %9 = vector.extract_strided_slice %8 {offsets = [0, 0], sizes = [4, 48], strides = [1, 1]} : vector<6x48xf32> to vector<4x48xf32>
    %10 = arith.truncf %9 : vector<4x48xf32> to vector<4x48xbf16>
    %c0_5 = arith.constant 0 : index
    %c0_6 = arith.constant 0 : index
    %c0_7 = arith.constant 0 : index
    %c0_8 = arith.constant 0 : index
    %11 = vector.load %arg6[%c0_5, %c0_6, %c0_7, %c0_8] : memref<3x3x48x16xbf16, #tpu.memory_space<vmem>>, vector<1x1x48x16xbf16>
    %12 = vector.shape_cast %11 : vector<1x1x48x16xbf16> to vector<48x16xbf16>
    %cst_9 = arith.constant dense<0.000000e+00> : vector<4x16xf32>
    %13 = tpu.matmul %10, %12, %cst_9 {dimension_numbers = #tpu.dot_dimension_numbers<[1], [0], [0], [1], [0, 0, 1, 1], [], []>} : vector<4x48xbf16>, vector<48x16xbf16>, vector<4x16xf32> -> vector<4x16xf32>
    %14 = arith.addf %0, %13 : vector<4x16xf32>
    %15 = vector.extract_strided_slice %8 {offsets = [1, 0], sizes = [4, 48], strides = [1, 1]} : vector<6x48xf32> to vector<4x48xf32>
    %16 = arith.truncf %15 : vector<4x48xf32> to vector<4x48xbf16>
    %c0_10 = arith.constant 0 : index
    %c1 = arith.constant 1 : index
    %c0_11 = arith.constant 0 : index
    %c0_12 = arith.constant 0 : index
    %17 = vector.load %arg6[%c0_10, %c1, %c0_11, %c0_12] : memref<3x3x48x16xbf16, #tpu.memory_space<vmem>>, vector<1x1x48x16xbf16>
    %18 = vector.shape_cast %17 : vector<1x1x48x16xbf16> to vector<48x16xbf16>
    %cst_13 = arith.constant dense<0.000000e+00> : vector<4x16xf32>
    %19 = tpu.matmul %16, %18, %cst_13 {dimension_numbers = #tpu.dot_dimension_numbers<[1], [0], [0], [1], [0, 0, 1, 1], [], []>} : vector<4x48xbf16>, vector<48x16xbf16>, vector<4x16xf32> -> vector<4x16xf32>
    %20 = arith.addf %14, %19 : vector<4x16xf32>
    %21 = vector.extract_strided_slice %8 {offsets = [2, 0], sizes = [4, 48], strides = [1, 1]} : vector<6x48xf32> to vector<4x48xf32>
    %22 = arith.truncf %21 : vector<4x48xf32> to vector<4x48xbf16>
    %c0_14 = arith.constant 0 : index
    %c2 = arith.constant 2 : index
    %c0_15 = arith.constant 0 : index
    %c0_16 = arith.constant 0 : index
    %23 = vector.load %arg6[%c0_14, %c2, %c0_15, %c0_16] : memref<3x3x48x16xbf16, #tpu.memory_space<vmem>>, vector<1x1x48x16xbf16>
    %24 = vector.shape_cast %23 : vector<1x1x48x16xbf16> to vector<48x16xbf16>
    %cst_17 = arith.constant dense<0.000000e+00> : vector<4x16xf32>
    %25 = tpu.matmul %22, %24, %cst_17 {dimension_numbers = #tpu.dot_dimension_numbers<[1], [0], [0], [1], [0, 0, 1, 1], [], []>} : vector<4x48xbf16>, vector<48x16xbf16>, vector<4x16xf32> -> vector<4x16xf32>
    %26 = arith.addf %20, %25 : vector<4x16xf32>
    %c0_18 = arith.constant 0 : index
    %c0_19 = arith.constant 0 : index
    %c0_20 = arith.constant 0 : index
    %c0_21 = arith.constant 0 : index
    %27 = vector.load %arg3[%c0_18, %c0_19, %c0_20, %c0_21] : memref<1x1x6x48xbf16, #tpu.memory_space<vmem>>, vector<1x1x6x48xbf16>
    %28 = vector.shape_cast %27 : vector<1x1x6x48xbf16> to vector<6x48xbf16>
    %29 = arith.extf %28 : vector<6x48xbf16> to vector<6x48xf32>
    %cst_22 = arith.constant 0.000000e+00 : f32
    %30 = vector.broadcast %cst_22 : f32 to vector<6x48xf32>
    %31 = arith.cmpf oge, %29, %30 : vector<6x48xf32>
    %cst_23 = arith.constant 2.000000e-01 : f32
    %32 = vector.broadcast %cst_23 : f32 to vector<6x48xf32>
    %33 = arith.mulf %32, %29 : vector<6x48xf32>
    %34 = arith.select %31, %29, %33 : vector<6x48xi1>, vector<6x48xf32>
    %35 = vector.extract_strided_slice %34 {offsets = [0, 0], sizes = [4, 48], strides = [1, 1]} : vector<6x48xf32> to vector<4x48xf32>
    %36 = arith.truncf %35 : vector<4x48xf32> to vector<4x48xbf16>
    %c1_24 = arith.constant 1 : index
    %c0_25 = arith.constant 0 : index
    %c0_26 = arith.constant 0 : index
    %c0_27 = arith.constant 0 : index
    %37 = vector.load %arg6[%c1_24, %c0_25, %c0_26, %c0_27] : memref<3x3x48x16xbf16, #tpu.memory_space<vmem>>, vector<1x1x48x16xbf16>
    %38 = vector.shape_cast %37 : vector<1x1x48x16xbf16> to vector<48x16xbf16>
    %cst_28 = arith.constant dense<0.000000e+00> : vector<4x16xf32>
    %39 = tpu.matmul %36, %38, %cst_28 {dimension_numbers = #tpu.dot_dimension_numbers<[1], [0], [0], [1], [0, 0, 1, 1], [], []>} : vector<4x48xbf16>, vector<48x16xbf16>, vector<4x16xf32> -> vector<4x16xf32>
    %40 = arith.addf %26, %39 : vector<4x16xf32>
    %41 = vector.extract_strided_slice %34 {offsets = [1, 0], sizes = [4, 48], strides = [1, 1]} : vector<6x48xf32> to vector<4x48xf32>
    %42 = arith.truncf %41 : vector<4x48xf32> to vector<4x48xbf16>
    %c1_29 = arith.constant 1 : index
    %c1_30 = arith.constant 1 : index
    %c0_31 = arith.constant 0 : index
    %c0_32 = arith.constant 0 : index
    %43 = vector.load %arg6[%c1_29, %c1_30, %c0_31, %c0_32] : memref<3x3x48x16xbf16, #tpu.memory_space<vmem>>, vector<1x1x48x16xbf16>
    %44 = vector.shape_cast %43 : vector<1x1x48x16xbf16> to vector<48x16xbf16>
    %cst_33 = arith.constant dense<0.000000e+00> : vector<4x16xf32>
    %45 = tpu.matmul %42, %44, %cst_33 {dimension_numbers = #tpu.dot_dimension_numbers<[1], [0], [0], [1], [0, 0, 1, 1], [], []>} : vector<4x48xbf16>, vector<48x16xbf16>, vector<4x16xf32> -> vector<4x16xf32>
    %46 = arith.addf %40, %45 : vector<4x16xf32>
    %47 = vector.extract_strided_slice %34 {offsets = [2, 0], sizes = [4, 48], strides = [1, 1]} : vector<6x48xf32> to vector<4x48xf32>
    %48 = arith.truncf %47 : vector<4x48xf32> to vector<4x48xbf16>
    %c1_34 = arith.constant 1 : index
    %c2_35 = arith.constant 2 : index
    %c0_36 = arith.constant 0 : index
    %c0_37 = arith.constant 0 : index
    %49 = vector.load %arg6[%c1_34, %c2_35, %c0_36, %c0_37] : memref<3x3x48x16xbf16, #tpu.memory_space<vmem>>, vector<1x1x48x16xbf16>
    %50 = vector.shape_cast %49 : vector<1x1x48x16xbf16> to vector<48x16xbf16>
    %cst_38 = arith.constant dense<0.000000e+00> : vector<4x16xf32>
    %51 = tpu.matmul %48, %50, %cst_38 {dimension_numbers = #tpu.dot_dimension_numbers<[1], [0], [0], [1], [0, 0, 1, 1], [], []>} : vector<4x48xbf16>, vector<48x16xbf16>, vector<4x16xf32> -> vector<4x16xf32>
    %52 = arith.addf %46, %51 : vector<4x16xf32>
    %c0_39 = arith.constant 0 : index
    %c0_40 = arith.constant 0 : index
    %c0_41 = arith.constant 0 : index
    %c0_42 = arith.constant 0 : index
    %53 = vector.load %arg4[%c0_39, %c0_40, %c0_41, %c0_42] : memref<1x1x6x48xbf16, #tpu.memory_space<vmem>>, vector<1x1x6x48xbf16>
    %54 = vector.shape_cast %53 : vector<1x1x6x48xbf16> to vector<6x48xbf16>
    %55 = arith.extf %54 : vector<6x48xbf16> to vector<6x48xf32>
    %cst_43 = arith.constant 0.000000e+00 : f32
    %56 = vector.broadcast %cst_43 : f32 to vector<6x48xf32>
    %57 = arith.cmpf oge, %55, %56 : vector<6x48xf32>
    %cst_44 = arith.constant 2.000000e-01 : f32
    %58 = vector.broadcast %cst_44 : f32 to vector<6x48xf32>
    %59 = arith.mulf %58, %55 : vector<6x48xf32>
    %60 = arith.select %57, %55, %59 : vector<6x48xi1>, vector<6x48xf32>
    %61 = vector.extract_strided_slice %60 {offsets = [0, 0], sizes = [4, 48], strides = [1, 1]} : vector<6x48xf32> to vector<4x48xf32>
    %62 = arith.truncf %61 : vector<4x48xf32> to vector<4x48xbf16>
    %c2_45 = arith.constant 2 : index
    %c0_46 = arith.constant 0 : index
    %c0_47 = arith.constant 0 : index
    %c0_48 = arith.constant 0 : index
    %63 = vector.load %arg6[%c2_45, %c0_46, %c0_47, %c0_48] : memref<3x3x48x16xbf16, #tpu.memory_space<vmem>>, vector<1x1x48x16xbf16>
    %64 = vector.shape_cast %63 : vector<1x1x48x16xbf16> to vector<48x16xbf16>
    %cst_49 = arith.constant dense<0.000000e+00> : vector<4x16xf32>
    %65 = tpu.matmul %62, %64, %cst_49 {dimension_numbers = #tpu.dot_dimension_numbers<[1], [0], [0], [1], [0, 0, 1, 1], [], []>} : vector<4x48xbf16>, vector<48x16xbf16>, vector<4x16xf32> -> vector<4x16xf32>
    %66 = arith.addf %52, %65 : vector<4x16xf32>
    %67 = vector.extract_strided_slice %60 {offsets = [1, 0], sizes = [4, 48], strides = [1, 1]} : vector<6x48xf32> to vector<4x48xf32>
    %68 = arith.truncf %67 : vector<4x48xf32> to vector<4x48xbf16>
    %c2_50 = arith.constant 2 : index
    %c1_51 = arith.constant 1 : index
    %c0_52 = arith.constant 0 : index
    %c0_53 = arith.constant 0 : index
    %69 = vector.load %arg6[%c2_50, %c1_51, %c0_52, %c0_53] : memref<3x3x48x16xbf16, #tpu.memory_space<vmem>>, vector<1x1x48x16xbf16>
    %70 = vector.shape_cast %69 : vector<1x1x48x16xbf16> to vector<48x16xbf16>
    %cst_54 = arith.constant dense<0.000000e+00> : vector<4x16xf32>
    %71 = tpu.matmul %68, %70, %cst_54 {dimension_numbers = #tpu.dot_dimension_numbers<[1], [0], [0], [1], [0, 0, 1, 1], [], []>} : vector<4x48xbf16>, vector<48x16xbf16>, vector<4x16xf32> -> vector<4x16xf32>
    %72 = arith.addf %66, %71 : vector<4x16xf32>
    %73 = vector.extract_strided_slice %60 {offsets = [2, 0], sizes = [4, 48], strides = [1, 1]} : vector<6x48xf32> to vector<4x48xf32>
    %74 = arith.truncf %73 : vector<4x48xf32> to vector<4x48xbf16>
    %c2_55 = arith.constant 2 : index
    %c2_56 = arith.constant 2 : index
    %c0_57 = arith.constant 0 : index
    %c0_58 = arith.constant 0 : index
    %75 = vector.load %arg6[%c2_55, %c2_56, %c0_57, %c0_58] : memref<3x3x48x16xbf16, #tpu.memory_space<vmem>>, vector<1x1x48x16xbf16>
    %76 = vector.shape_cast %75 : vector<1x1x48x16xbf16> to vector<48x16xbf16>
    %cst_59 = arith.constant dense<0.000000e+00> : vector<4x16xf32>
    %77 = tpu.matmul %74, %76, %cst_59 {dimension_numbers = #tpu.dot_dimension_numbers<[1], [0], [0], [1], [0, 0, 1, 1], [], []>} : vector<4x48xbf16>, vector<48x16xbf16>, vector<4x16xf32> -> vector<4x16xf32>
    %78 = arith.addf %72, %77 : vector<4x16xf32>
    %c0_60 = arith.constant 0 : index
    %c0_61 = arith.constant 0 : index
    %79 = vector.load %arg7[%c0_60, %c0_61] : memref<1x16xf32, #tpu.memory_space<vmem>>, vector<1x16xf32>
    %80 = vector.broadcast %79 : vector<1x16xf32> to vector<4x16xf32>
    %81 = arith.addf %78, %80 : vector<4x16xf32>
    %cst_62 = arith.constant 0.000000e+00 : f32
    %82 = vector.broadcast %cst_62 : f32 to vector<4x16xf32>
    %83 = arith.cmpf oge, %81, %82 : vector<4x16xf32>
    %cst_63 = arith.constant 2.000000e-01 : f32
    %84 = vector.broadcast %cst_63 : f32 to vector<4x16xf32>
    %85 = arith.mulf %84, %81 : vector<4x16xf32>
    %86 = arith.select %83, %81, %85 : vector<4x16xi1>, vector<4x16xf32>
    %87 = arith.truncf %86 : vector<4x16xf32> to vector<4x16xbf16>
    %c0_64 = arith.constant 0 : index
    %c0_65 = arith.constant 0 : index
    %88 = vector.load %arg8[%c0_64, %c0_65] : memref<16x32xbf16, #tpu.memory_space<vmem>>, vector<16x32xbf16>
    %cst_66 = arith.constant dense<0.000000e+00> : vector<4x32xf32>
    %89 = tpu.matmul %87, %88, %cst_66 {dimension_numbers = #tpu.dot_dimension_numbers<[1], [0], [0], [1], [0, 0, 1, 1], [], []>} : vector<4x16xbf16>, vector<16x32xbf16>, vector<4x32xf32> -> vector<4x32xf32>
    %c0_67 = arith.constant 0 : index
    %c0_68 = arith.constant 0 : index
    %c0_69 = arith.constant 0 : index
    %c0_70 = arith.constant 0 : index
    %90 = vector.load %arg5[%c0_67, %c0_68, %c0_69, %c0_70] : memref<1x1x4x32xbf16, #tpu.memory_space<vmem>>, vector<1x1x4x32xbf16>
    %91 = vector.shape_cast %90 : vector<1x1x4x32xbf16> to vector<4x32xbf16>
    %92 = arith.extf %91 : vector<4x32xbf16> to vector<4x32xf32>
    %93 = arith.addf %92, %89 : vector<4x32xf32>
    %c0_71 = arith.constant 0 : index
    %c0_72 = arith.constant 0 : index
    %94 = vector.load %arg9[%c0_71, %c0_72] : memref<1x32xf32, #tpu.memory_space<vmem>>, vector<1x32xf32>
    %95 = vector.broadcast %94 : vector<1x32xf32> to vector<4x32xf32>
    %96 = arith.addf %93, %95 : vector<4x32xf32>
    %cst_73 = arith.constant 0.000000e+00 : f32
    %97 = vector.broadcast %cst_73 : f32 to vector<4x32xf32>
    %98 = arith.cmpf oge, %96, %97 : vector<4x32xf32>
    %cst_74 = arith.constant 2.000000e-01 : f32
    %99 = vector.broadcast %cst_74 : f32 to vector<4x32xf32>
    %100 = arith.mulf %99, %96 : vector<4x32xf32>
    %101 = arith.select %98, %96, %100 : vector<4x32xi1>, vector<4x32xf32>
    %102 = arith.truncf %101 : vector<4x32xf32> to vector<4x32xbf16>
    %c0_75 = arith.constant 0 : index
    %c0_76 = arith.constant 0 : index
    %c0_77 = arith.constant 0 : index
    %c0_78 = arith.constant 0 : index
    %103 = vector.load %arg10[%c0_75, %c0_76, %c0_77, %c0_78] : memref<1x1x4x32xbf16, #tpu.memory_space<vmem>>, vector<1x1x4x32xbf16>
    %104 = vector.shape_cast %103 : vector<1x1x4x32xbf16> to vector<4x32xbf16>
    %105 = vector.shape_cast %102 : vector<4x32xbf16> to vector<1x1x4x32xbf16>
    tpu.vector_store %arg10[%c0_75, %c0_76, %c0_77, %c0_78], %105 {strides = array<i32>} : memref<1x1x4x32xbf16, #tpu.memory_space<vmem>>, vector<1x1x4x32xbf16>,
    return
  }
  func.func @transform_0(%arg0: i32, %arg1: i32) -> (i32, i32, i32, i32) {
    %c0_i32 = arith.constant 0 : i32
    %0 = arith.addi %arg1, %c0_i32 : i32
    %c0_i32_0 = arith.constant 0 : i32
    %c0_i32_1 = arith.constant 0 : i32
    %c0_i32_2 = arith.constant 0 : i32
    return %arg0, %0, %c0_i32_0, %c0_i32_1 : i32, i32, i32, i32
  }
  func.func @transform_1(%arg0: i32, %arg1: i32) -> (i32, i32, i32, i32) {
    %c1_i32 = arith.constant 1 : i32
    %0 = arith.addi %arg1, %c1_i32 : i32
    %c0_i32 = arith.constant 0 : i32
    %c0_i32_0 = arith.constant 0 : i32
    %c0_i32_1 = arith.constant 0 : i32
    return %arg0, %0, %c0_i32, %c0_i32_0 : i32, i32, i32, i32
  }
  func.func @transform_2(%arg0: i32, %arg1: i32) -> (i32, i32, i32, i32) {
    %c2_i32 = arith.constant 2 : i32
    %0 = arith.addi %arg1, %c2_i32 : i32
    %c0_i32 = arith.constant 0 : i32
    %c0_i32_0 = arith.constant 0 : i32
    %c0_i32_1 = arith.constant 0 : i32
    return %arg0, %0, %c0_i32, %c0_i32_0 : i32, i32, i32, i32
  }
  func.func @transform_3(%arg0: i32, %arg1: i32) -> (i32, i32, i32, i32) {
    %c0_i32 = arith.constant 0 : i32
    %c0_i32_0 = arith.constant 0 : i32
    %c0_i32_1 = arith.constant 0 : i32
    return %arg0, %arg1, %c0_i32, %c0_i32_0 : i32, i32, i32, i32
  }
  func.func @transform_4(%arg0: i32, %arg1: i32) -> (i32, i32, i32, i32) {
    %c0_i32 = arith.constant 0 : i32
    %c0_i32_0 = arith.constant 0 : i32
    %c0_i32_1 = arith.constant 0 : i32
    %c0_i32_2 = arith.constant 0 : i32
    %c0_i32_3 = arith.constant 0 : i32
    return %c0_i32, %c0_i32_0, %c0_i32_1, %c0_i32_2 : i32, i32, i32, i32
  }
  func.func @transform_5(%arg0: i32, %arg1: i32) -> (i32, i32) {
    %c0_i32 = arith.constant 0 : i32
    %c0_i32_0 = arith.constant 0 : i32
    %c0_i32_1 = arith.constant 0 : i32
    return %c0_i32, %c0_i32_0 : i32, i32
  }
  func.func @transform_6(%arg0: i32, %arg1: i32) -> (i32, i32) {
    %c0_i32 = arith.constant 0 : i32
    %c0_i32_0 = arith.constant 0 : i32
    %c0_i32_1 = arith.constant 0 : i32
    return %c0_i32, %c0_i32_0 : i32, i32
  }
  func.func @transform_7(%arg0: i32, %arg1: i32) -> (i32, i32) {
    %c0_i32 = arith.constant 0 : i32
    %c0_i32_0 = arith.constant 0 : i32
    %c0_i32_1 = arith.constant 0 : i32
    return %c0_i32, %c0_i32_0 : i32, i32
  }
  func.func @transform_8(%arg0: i32, %arg1: i32) -> (i32, i32, i32, i32) {
    %c0_i32 = arith.constant 0 : i32
    %c0_i32_0 = arith.constant 0 : i32
    %c0_i32_1 = arith.constant 0 : i32
    return %arg0, %arg1, %c0_i32, %c0_i32_0 : i32, i32, i32, i32
  }
}

module attributes {stable_mosaic.version = 11 : i64} {
  func.func @_conv_kernel(%arg0: i32, %arg1: i32, %arg2: memref<1x1x6x48xbf16, #tpu.memory_space<vmem>>, %arg3: memref<1x1x6x48xbf16, #tpu.memory_space<vmem>>, %arg4: memref<1x1x6x48xbf16, #tpu.memory_space<vmem>>, %arg5: memref<3x3x48x512xbf16, #tpu.memory_space<vmem>>, %arg6: memref<1x512xf32, #tpu.memory_space<vmem>>, %arg7: memref<1x1x4x512xf32, #tpu.memory_space<vmem>>) attributes {dimension_semantics = [#tpu.dimension_semantics<parallel>, #tpu.dimension_semantics<parallel>], iteration_bounds = array<i64: 2, 2>, scalar_prefetch = 0 : i64, scratch_operands = 0 : i64, tpu.core_type = #tpu.core_type<tc>, window_params = [{transform_indices = @transform_0, window_bounds = array<i64: 1, 1, 6, 48>}, {transform_indices = @transform_1, window_bounds = array<i64: 1, 1, 6, 48>}, {transform_indices = @transform_2, window_bounds = array<i64: 1, 1, 6, 48>}, {pipeline_mode = #tpu.pipeline_mode<synchronous>, transform_indices = @transform_3, window_bounds = array<i64: 3, 3, 48, 512>}, {pipeline_mode = #tpu.pipeline_mode<synchronous>, transform_indices = @transform_4, window_bounds = array<i64: 1, 512>}, {transform_indices = @transform_5, window_bounds = array<i64: 1, 1, 4, 512>}]} {
    %cst = arith.constant 0.000000e+00 : f32
    %0 = vector.broadcast %cst : f32 to vector<4x512xf32>
    %c0 = arith.constant 0 : index
    %c0_0 = arith.constant 0 : index
    %c0_1 = arith.constant 0 : index
    %c0_2 = arith.constant 0 : index
    %1 = vector.load %arg2[%c0, %c0_0, %c0_1, %c0_2] : memref<1x1x6x48xbf16, #tpu.memory_space<vmem>>, vector<1x1x6x48xbf16>
    %2 = vector.shape_cast %1 : vector<1x1x6x48xbf16> to vector<6x48xbf16>
    %3 = arith.extf %2 : vector<6x48xbf16> to vector<6x48xf32>
    %4 = vector.extract_strided_slice %3 {offsets = [0, 0], sizes = [4, 48], strides = [1, 1]} : vector<6x48xf32> to vector<4x48xf32>
    %5 = arith.truncf %4 : vector<4x48xf32> to vector<4x48xbf16>
    %c0_3 = arith.constant 0 : index
    %c0_4 = arith.constant 0 : index
    %c0_5 = arith.constant 0 : index
    %c0_6 = arith.constant 0 : index
    %6 = vector.load %arg5[%c0_3, %c0_4, %c0_5, %c0_6] : memref<3x3x48x512xbf16, #tpu.memory_space<vmem>>, vector<1x1x48x512xbf16>
    %7 = vector.shape_cast %6 : vector<1x1x48x512xbf16> to vector<48x512xbf16>
    %cst_7 = arith.constant dense<0.000000e+00> : vector<4x512xf32>
    %8 = tpu.matmul %5, %7, %cst_7 {dimension_numbers = #tpu.dot_dimension_numbers<[1], [0], [0], [1], [0, 0, 1, 1], [], []>} : vector<4x48xbf16>, vector<48x512xbf16>, vector<4x512xf32> -> vector<4x512xf32>
    %9 = arith.addf %0, %8 : vector<4x512xf32>
    %10 = vector.extract_strided_slice %3 {offsets = [1, 0], sizes = [4, 48], strides = [1, 1]} : vector<6x48xf32> to vector<4x48xf32>
    %11 = arith.truncf %10 : vector<4x48xf32> to vector<4x48xbf16>
    %c0_8 = arith.constant 0 : index
    %c1 = arith.constant 1 : index
    %c0_9 = arith.constant 0 : index
    %c0_10 = arith.constant 0 : index
    %12 = vector.load %arg5[%c0_8, %c1, %c0_9, %c0_10] : memref<3x3x48x512xbf16, #tpu.memory_space<vmem>>, vector<1x1x48x512xbf16>
    %13 = vector.shape_cast %12 : vector<1x1x48x512xbf16> to vector<48x512xbf16>
    %cst_11 = arith.constant dense<0.000000e+00> : vector<4x512xf32>
    %14 = tpu.matmul %11, %13, %cst_11 {dimension_numbers = #tpu.dot_dimension_numbers<[1], [0], [0], [1], [0, 0, 1, 1], [], []>} : vector<4x48xbf16>, vector<48x512xbf16>, vector<4x512xf32> -> vector<4x512xf32>
    %15 = arith.addf %9, %14 : vector<4x512xf32>
    %16 = vector.extract_strided_slice %3 {offsets = [2, 0], sizes = [4, 48], strides = [1, 1]} : vector<6x48xf32> to vector<4x48xf32>
    %17 = arith.truncf %16 : vector<4x48xf32> to vector<4x48xbf16>
    %c0_12 = arith.constant 0 : index
    %c2 = arith.constant 2 : index
    %c0_13 = arith.constant 0 : index
    %c0_14 = arith.constant 0 : index
    %18 = vector.load %arg5[%c0_12, %c2, %c0_13, %c0_14] : memref<3x3x48x512xbf16, #tpu.memory_space<vmem>>, vector<1x1x48x512xbf16>
    %19 = vector.shape_cast %18 : vector<1x1x48x512xbf16> to vector<48x512xbf16>
    %cst_15 = arith.constant dense<0.000000e+00> : vector<4x512xf32>
    %20 = tpu.matmul %17, %19, %cst_15 {dimension_numbers = #tpu.dot_dimension_numbers<[1], [0], [0], [1], [0, 0, 1, 1], [], []>} : vector<4x48xbf16>, vector<48x512xbf16>, vector<4x512xf32> -> vector<4x512xf32>
    %21 = arith.addf %15, %20 : vector<4x512xf32>
    %c0_16 = arith.constant 0 : index
    %c0_17 = arith.constant 0 : index
    %c0_18 = arith.constant 0 : index
    %c0_19 = arith.constant 0 : index
    %22 = vector.load %arg3[%c0_16, %c0_17, %c0_18, %c0_19] : memref<1x1x6x48xbf16, #tpu.memory_space<vmem>>, vector<1x1x6x48xbf16>
    %23 = vector.shape_cast %22 : vector<1x1x6x48xbf16> to vector<6x48xbf16>
    %24 = arith.extf %23 : vector<6x48xbf16> to vector<6x48xf32>
    %25 = vector.extract_strided_slice %24 {offsets = [0, 0], sizes = [4, 48], strides = [1, 1]} : vector<6x48xf32> to vector<4x48xf32>
    %26 = arith.truncf %25 : vector<4x48xf32> to vector<4x48xbf16>
    %c1_20 = arith.constant 1 : index
    %c0_21 = arith.constant 0 : index
    %c0_22 = arith.constant 0 : index
    %c0_23 = arith.constant 0 : index
    %27 = vector.load %arg5[%c1_20, %c0_21, %c0_22, %c0_23] : memref<3x3x48x512xbf16, #tpu.memory_space<vmem>>, vector<1x1x48x512xbf16>
    %28 = vector.shape_cast %27 : vector<1x1x48x512xbf16> to vector<48x512xbf16>
    %cst_24 = arith.constant dense<0.000000e+00> : vector<4x512xf32>
    %29 = tpu.matmul %26, %28, %cst_24 {dimension_numbers = #tpu.dot_dimension_numbers<[1], [0], [0], [1], [0, 0, 1, 1], [], []>} : vector<4x48xbf16>, vector<48x512xbf16>, vector<4x512xf32> -> vector<4x512xf32>
    %30 = arith.addf %21, %29 : vector<4x512xf32>
    %31 = vector.extract_strided_slice %24 {offsets = [1, 0], sizes = [4, 48], strides = [1, 1]} : vector<6x48xf32> to vector<4x48xf32>
    %32 = arith.truncf %31 : vector<4x48xf32> to vector<4x48xbf16>
    %c1_25 = arith.constant 1 : index
    %c1_26 = arith.constant 1 : index
    %c0_27 = arith.constant 0 : index
    %c0_28 = arith.constant 0 : index
    %33 = vector.load %arg5[%c1_25, %c1_26, %c0_27, %c0_28] : memref<3x3x48x512xbf16, #tpu.memory_space<vmem>>, vector<1x1x48x512xbf16>
    %34 = vector.shape_cast %33 : vector<1x1x48x512xbf16> to vector<48x512xbf16>
    %cst_29 = arith.constant dense<0.000000e+00> : vector<4x512xf32>
    %35 = tpu.matmul %32, %34, %cst_29 {dimension_numbers = #tpu.dot_dimension_numbers<[1], [0], [0], [1], [0, 0, 1, 1], [], []>} : vector<4x48xbf16>, vector<48x512xbf16>, vector<4x512xf32> -> vector<4x512xf32>
    %36 = arith.addf %30, %35 : vector<4x512xf32>
    %37 = vector.extract_strided_slice %24 {offsets = [2, 0], sizes = [4, 48], strides = [1, 1]} : vector<6x48xf32> to vector<4x48xf32>
    %38 = arith.truncf %37 : vector<4x48xf32> to vector<4x48xbf16>
    %c1_30 = arith.constant 1 : index
    %c2_31 = arith.constant 2 : index
    %c0_32 = arith.constant 0 : index
    %c0_33 = arith.constant 0 : index
    %39 = vector.load %arg5[%c1_30, %c2_31, %c0_32, %c0_33] : memref<3x3x48x512xbf16, #tpu.memory_space<vmem>>, vector<1x1x48x512xbf16>
    %40 = vector.shape_cast %39 : vector<1x1x48x512xbf16> to vector<48x512xbf16>
    %cst_34 = arith.constant dense<0.000000e+00> : vector<4x512xf32>
    %41 = tpu.matmul %38, %40, %cst_34 {dimension_numbers = #tpu.dot_dimension_numbers<[1], [0], [0], [1], [0, 0, 1, 1], [], []>} : vector<4x48xbf16>, vector<48x512xbf16>, vector<4x512xf32> -> vector<4x512xf32>
    %42 = arith.addf %36, %41 : vector<4x512xf32>
    %c0_35 = arith.constant 0 : index
    %c0_36 = arith.constant 0 : index
    %c0_37 = arith.constant 0 : index
    %c0_38 = arith.constant 0 : index
    %43 = vector.load %arg4[%c0_35, %c0_36, %c0_37, %c0_38] : memref<1x1x6x48xbf16, #tpu.memory_space<vmem>>, vector<1x1x6x48xbf16>
    %44 = vector.shape_cast %43 : vector<1x1x6x48xbf16> to vector<6x48xbf16>
    %45 = arith.extf %44 : vector<6x48xbf16> to vector<6x48xf32>
    %46 = vector.extract_strided_slice %45 {offsets = [0, 0], sizes = [4, 48], strides = [1, 1]} : vector<6x48xf32> to vector<4x48xf32>
    %47 = arith.truncf %46 : vector<4x48xf32> to vector<4x48xbf16>
    %c2_39 = arith.constant 2 : index
    %c0_40 = arith.constant 0 : index
    %c0_41 = arith.constant 0 : index
    %c0_42 = arith.constant 0 : index
    %48 = vector.load %arg5[%c2_39, %c0_40, %c0_41, %c0_42] : memref<3x3x48x512xbf16, #tpu.memory_space<vmem>>, vector<1x1x48x512xbf16>
    %49 = vector.shape_cast %48 : vector<1x1x48x512xbf16> to vector<48x512xbf16>
    %cst_43 = arith.constant dense<0.000000e+00> : vector<4x512xf32>
    %50 = tpu.matmul %47, %49, %cst_43 {dimension_numbers = #tpu.dot_dimension_numbers<[1], [0], [0], [1], [0, 0, 1, 1], [], []>} : vector<4x48xbf16>, vector<48x512xbf16>, vector<4x512xf32> -> vector<4x512xf32>
    %51 = arith.addf %42, %50 : vector<4x512xf32>
    %52 = vector.extract_strided_slice %45 {offsets = [1, 0], sizes = [4, 48], strides = [1, 1]} : vector<6x48xf32> to vector<4x48xf32>
    %53 = arith.truncf %52 : vector<4x48xf32> to vector<4x48xbf16>
    %c2_44 = arith.constant 2 : index
    %c1_45 = arith.constant 1 : index
    %c0_46 = arith.constant 0 : index
    %c0_47 = arith.constant 0 : index
    %54 = vector.load %arg5[%c2_44, %c1_45, %c0_46, %c0_47] : memref<3x3x48x512xbf16, #tpu.memory_space<vmem>>, vector<1x1x48x512xbf16>
    %55 = vector.shape_cast %54 : vector<1x1x48x512xbf16> to vector<48x512xbf16>
    %cst_48 = arith.constant dense<0.000000e+00> : vector<4x512xf32>
    %56 = tpu.matmul %53, %55, %cst_48 {dimension_numbers = #tpu.dot_dimension_numbers<[1], [0], [0], [1], [0, 0, 1, 1], [], []>} : vector<4x48xbf16>, vector<48x512xbf16>, vector<4x512xf32> -> vector<4x512xf32>
    %57 = arith.addf %51, %56 : vector<4x512xf32>
    %58 = vector.extract_strided_slice %45 {offsets = [2, 0], sizes = [4, 48], strides = [1, 1]} : vector<6x48xf32> to vector<4x48xf32>
    %59 = arith.truncf %58 : vector<4x48xf32> to vector<4x48xbf16>
    %c2_49 = arith.constant 2 : index
    %c2_50 = arith.constant 2 : index
    %c0_51 = arith.constant 0 : index
    %c0_52 = arith.constant 0 : index
    %60 = vector.load %arg5[%c2_49, %c2_50, %c0_51, %c0_52] : memref<3x3x48x512xbf16, #tpu.memory_space<vmem>>, vector<1x1x48x512xbf16>
    %61 = vector.shape_cast %60 : vector<1x1x48x512xbf16> to vector<48x512xbf16>
    %cst_53 = arith.constant dense<0.000000e+00> : vector<4x512xf32>
    %62 = tpu.matmul %59, %61, %cst_53 {dimension_numbers = #tpu.dot_dimension_numbers<[1], [0], [0], [1], [0, 0, 1, 1], [], []>} : vector<4x48xbf16>, vector<48x512xbf16>, vector<4x512xf32> -> vector<4x512xf32>
    %63 = arith.addf %57, %62 : vector<4x512xf32>
    %c0_54 = arith.constant 0 : index
    %c0_55 = arith.constant 0 : index
    %64 = vector.load %arg6[%c0_54, %c0_55] : memref<1x512xf32, #tpu.memory_space<vmem>>, vector<1x512xf32>
    %65 = vector.broadcast %64 : vector<1x512xf32> to vector<4x512xf32>
    %66 = arith.addf %63, %65 : vector<4x512xf32>
    %c0_56 = arith.constant 0 : index
    %c0_57 = arith.constant 0 : index
    %c0_58 = arith.constant 0 : index
    %c0_59 = arith.constant 0 : index
    %67 = vector.load %arg7[%c0_56, %c0_57, %c0_58, %c0_59] : memref<1x1x4x512xf32, #tpu.memory_space<vmem>>, vector<1x1x4x512xf32>
    %68 = vector.shape_cast %67 : vector<1x1x4x512xf32> to vector<4x512xf32>
    %69 = vector.shape_cast %66 : vector<4x512xf32> to vector<1x1x4x512xf32>
    tpu.vector_store %arg7[%c0_56, %c0_57, %c0_58, %c0_59], %69 {strides = array<i32>} : memref<1x1x4x512xf32, #tpu.memory_space<vmem>>, vector<1x1x4x512xf32>,
    return
  }
  func.func @transform_0(%arg0: i32, %arg1: i32) -> (i32, i32, i32, i32) {
    %c0_i32 = arith.constant 0 : i32
    %0 = arith.addi %arg1, %c0_i32 : i32
    %c0_i32_0 = arith.constant 0 : i32
    %c0_i32_1 = arith.constant 0 : i32
    %c0_i32_2 = arith.constant 0 : i32
    return %arg0, %0, %c0_i32_0, %c0_i32_1 : i32, i32, i32, i32
  }
  func.func @transform_1(%arg0: i32, %arg1: i32) -> (i32, i32, i32, i32) {
    %c1_i32 = arith.constant 1 : i32
    %0 = arith.addi %arg1, %c1_i32 : i32
    %c0_i32 = arith.constant 0 : i32
    %c0_i32_0 = arith.constant 0 : i32
    %c0_i32_1 = arith.constant 0 : i32
    return %arg0, %0, %c0_i32, %c0_i32_0 : i32, i32, i32, i32
  }
  func.func @transform_2(%arg0: i32, %arg1: i32) -> (i32, i32, i32, i32) {
    %c2_i32 = arith.constant 2 : i32
    %0 = arith.addi %arg1, %c2_i32 : i32
    %c0_i32 = arith.constant 0 : i32
    %c0_i32_0 = arith.constant 0 : i32
    %c0_i32_1 = arith.constant 0 : i32
    return %arg0, %0, %c0_i32, %c0_i32_0 : i32, i32, i32, i32
  }
  func.func @transform_3(%arg0: i32, %arg1: i32) -> (i32, i32, i32, i32) {
    %c0_i32 = arith.constant 0 : i32
    %c0_i32_0 = arith.constant 0 : i32
    %c0_i32_1 = arith.constant 0 : i32
    %c0_i32_2 = arith.constant 0 : i32
    %c0_i32_3 = arith.constant 0 : i32
    return %c0_i32, %c0_i32_0, %c0_i32_1, %c0_i32_2 : i32, i32, i32, i32
  }
  func.func @transform_4(%arg0: i32, %arg1: i32) -> (i32, i32) {
    %c0_i32 = arith.constant 0 : i32
    %c0_i32_0 = arith.constant 0 : i32
    %c0_i32_1 = arith.constant 0 : i32
    return %c0_i32, %c0_i32_0 : i32, i32
  }
  func.func @transform_5(%arg0: i32, %arg1: i32) -> (i32, i32, i32, i32) {
    %c0_i32 = arith.constant 0 : i32
    %c0_i32_0 = arith.constant 0 : i32
    %c0_i32_1 = arith.constant 0 : i32
    return %arg0, %arg1, %c0_i32, %c0_i32_0 : i32, i32, i32, i32
  }
}

</mosaic_0001>

<llo_original>
// kernel: tile.23
$region0: #{tile.23}
  #allocation2 [shape = 's32[1]{0}', space=sflag, size = 0x4, scoped, tag = 'scoped memory for tile.23']
  %s0 = inlined_call_operand.hbm [shape: f32[8], index: 0, kind: input, shape index: {}]
  %s1 = inlined_call_operand.vmem [shape: f32[4,8], index: 1, kind: output, shape index: {}]
  $region1: #{tile.23} parent=0
    #allocation0 [shape = 'u8[512]{0}', space=vmem, size = 0x400, scoped, tag = 'operand span for operand 0']
    #allocation1 [shape = 's32[1]{0}', space=sflag, size = 0x4, scoped, tag = 'scoped memory for tile.23']
    %2 = vsyncpa [#allocation1], 0
    // Predicated region
    $region2: #{tile.23} parent=1 // pred_check
      _
    $region3: #{tile.23} parent=1 // pred_check_branch
      %4 = sbr.rel (0) target = $region5
    $region4: #{tile.23} parent=1 // pred_region
      %6 = vsyncadd [#allocation1], 0
      %s8 = sshll.u32 %s0, 4
      %s9 = int_to_ptr.hbm [resolvable:$true] %s8
      %s10 = sshll.u32 [#allocation0], 4
      %s11 = int_to_ptr.vmem [resolvable:$true] %s10
      %13 = dma.hbm_to_vmem [thread:$0]  %s9, 16, %s11, [#allocation1]
    $region5: #{tile.23} parent=1 // pred_fallthru
      _
    // Predicated region
    $region6: #{tile.23} parent=1 // pred_check
      _
    $region7: #{tile.23} parent=1 // pred_check_branch
      %15 = sbr.rel (0) target = $region9
    $region8: #{tile.23} parent=1 // pred_region
      %17 = dma.done [#allocation1], 16
    $region9: #{tile.23} parent=1 // pred_fallthru
      _
    %v18 = vld [vmem:[#allocation0] ss:$0 sm:$0xff]
    %19 = vst [vmem:[%s1] sm:$0xf] %v18
    %20 = vsyncpa [#allocation1], 1

// kernel: tile.24
$region0: #{tile.24}
  %s0 = inlined_call_operand.vmem [shape: f32[4,8], index: 0, kind: input, shape index: {}]
  %s1 = inlined_call_operand.vmem [shape: f32[1,32], index: 1, kind: output, shape index: {}]
  $region1: #{tile.24} parent=0
    #allocation0 [shape = 'u8[4096]{0}', space=vmem, size = 0x1000, scoped, tag = 'scoped mem for output reshape']
    #allocation1 [shape = 'u8[4096]{0}', space=vmem, size = 0x1000, scoped, tag = 'scoped mem for input reshape']
    %s3 = ssub.s32 16, 1
    %v4 = vld [vmem:[%s0] sm:%s3]
    %5 = vst [vmem:[#allocation1] sm:%s3] %v4
    %v6 = vld [vmem:[#allocation1] sm:$0x1]
    %vm7 = vcmask 64512
    %8 = vst.msk [vmem:[#allocation0] sm:$0x1] %vm7, %v6
    %s9 = scalar_lea.vmem [#allocation1], 3
    %v10 = vld [vmem:[%s9] sm:$0x1]
    %11 = vrot.lane.b32.xlu0 %v10, 24
    %v12 = vpop.permute.xlu0 %11
    %vm13 = vcmask 261312
    %14 = vst.msk [vmem:[#allocation0] sm:$0x1] %vm13, %v12
    %s15 = scalar_lea.vmem [#allocation1], 2
    %v16 = vld [vmem:[%s15] sm:$0x1]
    %17 = vrot.lane.b32.xlu0 %v16, 16
    %v18 = vpop.permute.xlu0 %17
    %vm19 = vcmask 195712
    %20 = vst.msk [vmem:[#allocation0] sm:$0x1] %vm19, %v18
    %s21 = scalar_lea.vmem [#allocation1], 1
    %v22 = vld [vmem:[%s21] sm:$0x1]
    %23 = vrot.lane.b32.xlu0 %v22, 8
    %v24 = vpop.permute.xlu0 %23
    %vm25 = vcmask 130112
    %26 = vst.msk [vmem:[#allocation0] sm:$0x1] %vm25, %v24
    %s28 = ssub.s32 2, 1
    %v29 = vld [vmem:[#allocation0] sm:%s28]
    %s31 = ssub.s32 2, 1
    %32 = vst [vmem:[%s1] sm:%s31] %v29

// kernel: tile.28
$region0: #{tile.28}
  #allocation2 [shape = 's32[1]{0}', space=sflag, size = 0x4, scoped, tag = 'scoped memory for tile.28']
  %s0 = inlined_call_operand.hbm [shape: f32[4], index: 0, kind: input, shape index: {}]
  %s1 = inlined_call_operand.vmem [shape: f32[4,4], index: 1, kind: output, shape index: {}]
  $region1: #{tile.28} parent=0
    #allocation0 [shape = 'u8[512]{0}', space=vmem, size = 0x400, scoped, tag = 'operand span for operand 0']
    #allocation1 [shape = 's32[1]{0}', space=sflag, size = 0x4, scoped, tag = 'scoped memory for tile.28']
    %2 = vsyncpa [#allocation1], 0
    // Predicated region
    $region2: #{tile.28} parent=1 // pred_check
      _
    $region3: #{tile.28} parent=1 // pred_check_branch
      %4 = sbr.rel (0) target = $region5
    $region4: #{tile.28} parent=1 // pred_region
      %6 = vsyncadd [#allocation1], 0
      %s8 = sshll.u32 %s0, 4
      %s9 = int_to_ptr.hbm [resolvable:$true] %s8
      %s10 = sshll.u32 [#allocation0], 4
      %s11 = int_to_ptr.vmem [resolvable:$true] %s10
      %13 = dma.hbm_to_vmem [thread:$0]  %s9, 16, %s11, [#allocation1]
    $region5: #{tile.28} parent=1 // pred_fallthru
      _
    // Predicated region
    $region6: #{tile.28} parent=1 // pred_check
      _
    $region7: #{tile.28} parent=1 // pred_check_branch
      %15 = sbr.rel (0) target = $region9
    $region8: #{tile.28} parent=1 // pred_region
      %17 = dma.done [#allocation1], 16
    $region9: #{tile.28} parent=1 // pred_fallthru
      _
    %v18 = vld [vmem:[#allocation0] ss:$0 sm:$0xff]
    %19 = vst [vmem:[%s1] sm:$0xf] %v18
    %20 = vsyncpa [#allocation1], 1

// kernel: tile.29
$region0: #{tile.29}
  %s0 = inlined_call_operand.vmem [shape: f32[4,4], index: 0, kind: input, shape index: {}]
  %s1 = inlined_call_operand.vmem [shape: f32[1,16], index: 1, kind: output, shape index: {}]
  $region1: #{tile.29} parent=0
    #allocation0 [shape = 'u8[4096]{0}', space=vmem, size = 0x1000, scoped, tag = 'scoped mem for output reshape']
    #allocation1 [shape = 'u8[4096]{0}', space=vmem, size = 0x1000, scoped, tag = 'scoped mem for input reshape']
    %s3 = ssub.s32 16, 1
    %v4 = vld [vmem:[%s0] sm:%s3]
    %5 = vst [vmem:[#allocation1] sm:%s3] %v4
    %v6 = vld [vmem:[#allocation1] sm:$0x1]
    %vm7 = vcmask 31744
    %8 = vst.msk [vmem:[#allocation0] sm:$0x1] %vm7, %v6
    %s9 = scalar_lea.vmem [#allocation1], 3
    %v10 = vld [vmem:[%s9] sm:$0x1]
    %11 = vrot.lane.b32.xlu0 %v10, 12
    %v12 = vpop.permute.xlu0 %11
    %vm13 = vcmask 130144
    %14 = vst.msk [vmem:[#allocation0] sm:$0x1] %vm13, %v12
    %s15 = scalar_lea.vmem [#allocation1], 2
    %v16 = vld [vmem:[%s15] sm:$0x1]
    %17 = vrot.lane.b32.xlu0 %v16, 8
    %v18 = vpop.permute.xlu0 %17
    %vm19 = vcmask 97344
    %20 = vst.msk [vmem:[#allocation0] sm:$0x1] %vm19, %v18
    %s21 = scalar_lea.vmem [#allocation1], 1
    %v22 = vld [vmem:[%s21] sm:$0x1]
    %23 = vrot.lane.b32.xlu0 %v22, 4
    %v24 = vpop.permute.xlu0 %23
    %vm25 = vcmask 64544
    %26 = vst.msk [vmem:[#allocation0] sm:$0x1] %vm25, %v24
    %s28 = ssub.s32 2, 1
    %v29 = vld [vmem:[#allocation0] sm:%s28]
    %s31 = ssub.s32 2, 1
    %32 = vst [vmem:[%s1] sm:%s31] %v29

// kernel: decoder_forward_pallas.3
$region0: #{decoder_forward_pallas.3}
  #allocation0 [shape = 'u32[]', space=smem, size = 0x4, offset = 0x4, fixed_abs, tag = 'smem constant byte address 0x4 - core index']
  #allocation1 [shape = 'u32[72,128]{1,0:T(1,128)}', space=vmem, size = 0x9000, scoped, tag = 'internal scratch']
  %s0 = inlined_call_operand.vmem [shape: bf16[2,4,6,24], index: 0, kind: input, shape index: {}, may-alias: {0,1,2}]
  %s1 = inlined_call_operand.vmem [shape: bf16[2,4,6,24], index: 1, kind: input, shape index: {}, may-alias: {0,1,2}]
  %s2 = inlined_call_operand.vmem [shape: bf16[2,4,6,24], index: 2, kind: input, shape index: {}, may-alias: {0,1,2}]
  %s3 = inlined_call_operand.vmem [shape: bf16[3,3,24,32], index: 3, kind: input, shape index: {}]
  %s4 = inlined_call_operand.vmem [shape: f32[1,32], index: 4, kind: input, shape index: {}]
  %s5 = inlined_call_operand.vmem [shape: bf16[2,2,4,32], index: 5, kind: output, shape index: {}]
  %s6 = sld [smem:[#allocation0]]
  $region53: #{decoder_forward_pallas.3} parent=0
    _
  %s8 = ssub.s32 1, %s6
  %s9 = scalar_select 0, %s8, %s6
  loop: start=0, step=1, limit=6
  $region2: #{decoder_forward_pallas.3} parent=0 // loop_pre_header
    _
  $region3: #{decoder_forward_pallas.3} parent=0 // loop_header
    %s11 = sphi 0, %s15
    %p12 = scmp.ge.s32.totalorder %s11, 6
    %s18 = sphi 0, %s30
    %s19 = sphi 0, %s26
    %s20 = sphi 0, %s18
    %s21 = sphi 0, %s19
    %s22 = sphi 0, %s20
    %s23 = sphi 0, %s21
    %s35 = sphi 0, %s37
    %s38 = sphi 0, %s35
    %s39 = sphi 0, %s38
    %s55 = sphi 0, %s39
    %s65 = sphi 0, %s67
    %s68 = sphi 0, %s65
    %s69 = sphi 0, %s68
    %s85 = sphi 0, %s69
    %s95 = sphi 0, %s97
    %s98 = sphi 0, %s95
    %s99 = sphi 0, %s98
    %s115 = sphi 0, %s99
    %s119 = sphi 0, %s119
    %s121 = sphi 0, %s119
    %s122 = sphi 0, %s121
    %s136 = sphi 0, %s122
    %s140 = sphi 0, %s140
    %s142 = sphi 0, %s140
    %s143 = sphi 0, %s142
    %s157 = sphi 0, %s143
    %s165 = sphi 0, %s167
    %s168 = sphi 0, %s165
    %s169 = sphi 0, %s168
    %s185 = sphi 0, %s169
  $region4: #{decoder_forward_pallas.3} parent=0 // loop_header_branch
    %14 = sbr.rel (%p12) target = $region8
  $region5: #{decoder_forward_pallas.3} parent=0 // loop_body
    %s16 = ssub.s32 %s11, 1
    %s17 = ssub.s32 %s11, 2
    %s24 = sadd.s32 1, %s19
    %p25 = scmp.ge.s32.totalorder %s24, 2
    %s26 = scalar_select %p25, 0, %s24
    %s27 = sadd.s32 1, %s18
    %s28 = scalar_select %p25, %s27, %s18
    %p29 = scmp.ge.s32.totalorder %s28, 2
    %s30 = scalar_select %p29, 0, %s28
    %s31 = ssub.s32 %s18, %s30
    %s32 = ssub.s32 %s19, %s26
    %s33 = sor.u32 %s31, %s32
    %p34 = scmp.eq.s32.totalorder %s33, 0
    %s36 = sadd.s32 %s35, 1
    %s37 = scalar_select %p34, %s35, %s36
    %p40 = pneg %p34
    %p41 = scmp.eq.s32.totalorder %s11, 3
    %p42 = por %p40, %p41
    %p43 = scmp.ne.s32.totalorder %s35, %s38
    %p44 = scmp.eq.s32.totalorder %s11, 0
    %p45 = por %p43, %p44
    %p46 = scmp.ne.s32.totalorder %s35, %s38
    %p47 = scmp.eq.s32.totalorder %s16, 3
    %p48 = por %p46, %p47
    %p49 = scmp.ne.s32.totalorder %s38, %s39
    %p50 = scmp.eq.s32.totalorder %s16, 0
    %p51 = por %p49, %p50
    %p52 = scmp.ne.s32.totalorder %s38, %s39
    %p53 = scmp.eq.s32.totalorder %s17, 3
    %p54 = por %p52, %p53
    %p56 = scmp.ne.s32.totalorder %s39, %s55
    %p57 = scmp.eq.s32.totalorder %s17, 0
    %p58 = por %p56, %p57
    %s59 = sadd.s32 %s19, 1
    %s60 = sadd.s32 %s26, 1
    %s61 = ssub.s32 %s18, %s30
    %s62 = ssub.s32 %s59, %s60
    %s63 = sor.u32 %s61, %s62
    %p64 = scmp.eq.s32.totalorder %s63, 0
    %s66 = sadd.s32 %s65, 1
    %s67 = scalar_select %p64, %s65, %s66
    %p70 = pneg %p64
    %p71 = scmp.eq.s32.totalorder %s11, 3
    %p72 = por %p70, %p71
    %p73 = scmp.ne.s32.totalorder %s65, %s68
    %p74 = scmp.eq.s32.totalorder %s11, 0
    %p75 = por %p73, %p74
    %p76 = scmp.ne.s32.totalorder %s65, %s68
    %p77 = scmp.eq.s32.totalorder %s16, 3
    %p78 = por %p76, %p77
    %p79 = scmp.ne.s32.totalorder %s68, %s69
    %p80 = scmp.eq.s32.totalorder %s16, 0
    %p81 = por %p79, %p80
    %p82 = scmp.ne.s32.totalorder %s68, %s69
    %p83 = scmp.eq.s32.totalorder %s17, 3
    %p84 = por %p82, %p83
    %p86 = scmp.ne.s32.totalorder %s69, %s85
    %p87 = scmp.eq.s32.totalorder %s17, 0
    %p88 = por %p86, %p87
    %s89 = sadd.s32 %s19, 2
    %s90 = sadd.s32 %s26, 2
    %s91 = ssub.s32 %s18, %s30
    %s92 = ssub.s32 %s89, %s90
    %s93 = sor.u32 %s91, %s92
    %p94 = scmp.eq.s32.totalorder %s93, 0
    %s96 = sadd.s32 %s95, 1
    %s97 = scalar_select %p94, %s95, %s96
    %p100 = pneg %p94
    %p101 = scmp.eq.s32.totalorder %s11, 3
    %p102 = por %p100, %p101
    %p103 = scmp.ne.s32.totalorder %s95, %s98
    %p104 = scmp.eq.s32.totalorder %s11, 0
    %p105 = por %p103, %p104
    %p106 = scmp.ne.s32.totalorder %s95, %s98
    %p107 = scmp.eq.s32.totalorder %s16, 3
    %p108 = por %p106, %p107
    %p109 = scmp.ne.s32.totalorder %s98, %s99
    %p110 = scmp.eq.s32.totalorder %s16, 0
    %p111 = por %p109, %p110
    %p112 = scmp.ne.s32.totalorder %s98, %s99
    %p113 = scmp.eq.s32.totalorder %s17, 3
    %p114 = por %p112, %p113
    %p116 = scmp.ne.s32.totalorder %s99, %s115
    %p117 = scmp.eq.s32.totalorder %s17, 0
    %p118 = por %p116, %p117
    %s120 = sadd.s32 %s119, 1
    %p123 = scmp.eq.s32.totalorder %s11, 3
    %p124 = scmp.ne.s32.totalorder %s119, %s121
    %p125 = scmp.eq.s32.totalorder %s11, 0
    %p126 = por %p124, %p125
    %p127 = scmp.ne.s32.totalorder %s119, %s121
    %p128 = scmp.eq.s32.totalorder %s16, 3
    %p129 = por %p127, %p128
    %p130 = scmp.ne.s32.totalorder %s121, %s122
    %p131 = scmp.eq.s32.totalorder %s16, 0
    %p132 = por %p130, %p131
    %p133 = scmp.ne.s32.totalorder %s121, %s122
    %p134 = scmp.eq.s32.totalorder %s17, 3
    %p135 = por %p133, %p134
    %p137 = scmp.ne.s32.totalorder %s122, %s136
    %p138 = scmp.eq.s32.totalorder %s17, 0
    %p139 = por %p137, %p138
    %s141 = sadd.s32 %s140, 1
    %p144 = scmp.eq.s32.totalorder %s11, 3
    %p145 = scmp.ne.s32.totalorder %s140, %s142
    %p146 = scmp.eq.s32.totalorder %s11, 0
    %p147 = por %p145, %p146
    %p148 = scmp.ne.s32.totalorder %s140, %s142
    %p149 = scmp.eq.s32.totalorder %s16, 3
    %p150 = por %p148, %p149
    %p151 = scmp.ne.s32.totalorder %s142, %s143
    %p152 = scmp.eq.s32.totalorder %s16, 0
    %p153 = por %p151, %p152
    %p154 = scmp.ne.s32.totalorder %s142, %s143
    %p155 = scmp.eq.s32.totalorder %s17, 3
    %p156 = por %p154, %p155
    %p158 = scmp.ne.s32.totalorder %s143, %s157
    %p159 = scmp.eq.s32.totalorder %s17, 0
    %p160 = por %p158, %p159
    %s161 = ssub.s32 %s18, %s30
    %s162 = ssub.s32 %s19, %s26
    %s163 = sor.u32 %s161, %s162
    %p164 = scmp.eq.s32.totalorder %s163, 0
    %s166 = sadd.s32 %s165, 1
    %s167 = scalar_select %p164, %s165, %s166
    %p170 = pneg %p164
    %p171 = scmp.eq.s32.totalorder %s11, 3
    %p172 = por %p170, %p171
    %p173 = scmp.ne.s32.totalorder %s165, %s168
    %p174 = scmp.eq.s32.totalorder %s11, 0
    %p175 = por %p173, %p174
    %p176 = scmp.ne.s32.totalorder %s165, %s168
    %p177 = scmp.eq.s32.totalorder %s16, 3
    %p178 = por %p176, %p177
    %p179 = scmp.ne.s32.totalorder %s168, %s169
    %p180 = scmp.eq.s32.totalorder %s16, 0
    %p181 = por %p179, %p180
    %p182 = scmp.ne.s32.totalorder %s168, %s169
    %p183 = scmp.eq.s32.totalorder %s17, 3
    %p184 = por %p182, %p183
    %p186 = scmp.ne.s32.totalorder %s169, %s185
    %p187 = scmp.eq.s32.totalorder %s17, 0
    %p188 = por %p186, %p187
    %p189 = scmp.le.s32.totalorder 1, %s11
    %p190 = scmp.lt.s32.totalorder %s11, 5
    %p191 = pnand %p189, %p190
    %p192 = pneg %p191
    // Predicated region
    $region9: #{decoder_forward_pallas.3} parent=5 // pred_check
      _
    $region10: #{decoder_forward_pallas.3} parent=5 // pred_check_branch
      %194 = sbr.rel (%p191) target = $region12
    $region11: #{decoder_forward_pallas.3} parent=5 // pred_region
      %s195 = ssub.s32 %s11, 1
      // Predicated region
      $region13: #{decoder_forward_pallas.3} parent=11 // pred_check
        %p196 = pneg %p132
      $region14: #{decoder_forward_pallas.3} parent=11 // pred_check_branch
        %198 = sbr.rel (%p196) target = $region16
      $region15: #{decoder_forward_pallas.3} parent=11 // pred_region
        _
      $region16: #{decoder_forward_pallas.3} parent=11 // pred_fallthru
        _
      // Predicated region
      $region17: #{decoder_forward_pallas.3} parent=11 // pred_check
        %p199 = pneg %p153
      $region18: #{decoder_forward_pallas.3} parent=11 // pred_check_branch
        %201 = sbr.rel (%p199) target = $region20
      $region19: #{decoder_forward_pallas.3} parent=11 // pred_region
        _
      $region20: #{decoder_forward_pallas.3} parent=11 // pred_fallthru
        _
    $region12: #{decoder_forward_pallas.3} parent=5 // pred_fallthru
      _
    %p202 = scmp.lt.s32.totalorder %s11, 4
    // Predicated region
    $region21: #{decoder_forward_pallas.3} parent=5 // pred_check
      %p203 = pneg %p202
    $region22: #{decoder_forward_pallas.3} parent=5 // pred_check_branch
      %205 = sbr.rel (%p203) target = $region24
    $region23: #{decoder_forward_pallas.3} parent=5 // pred_region
      // Predicated region
      $region25: #{decoder_forward_pallas.3} parent=23 // pred_check
        %p206 = pneg %p45
      $region26: #{decoder_forward_pallas.3} parent=23 // pred_check_branch
        %208 = sbr.rel (%p206) target = $region28
      $region27: #{decoder_forward_pallas.3} parent=23 // pred_region
        %p209 = scmp.lt.s32.totalorder %s18, 1
        %s210 = scalar_select %p209, %s18, 1
        %p211 = scmp.lt.s32.totalorder %s19, 3
        %s212 = scalar_select %p211, %s19, 3
        %s213 = smul.addr %s210, 4
        %s214 = sadd.s32 %s212, %s213
        %s215 = smul.addr %s214, 4
        %s216 = scalar_lea.vmem %s0, %s215
      $region28: #{decoder_forward_pallas.3} parent=23 // pred_fallthru
        _
      // Predicated region
      $region29: #{decoder_forward_pallas.3} parent=23 // pred_check
        %p217 = pneg %p75
      $region30: #{decoder_forward_pallas.3} parent=23 // pred_check_branch
        %219 = sbr.rel (%p217) target = $region32
      $region31: #{decoder_forward_pallas.3} parent=23 // pred_region
        %s220 = sadd.s32 %s19, 1
        %p221 = scmp.lt.s32.totalorder %s18, 1
        %s222 = scalar_select %p221, %s18, 1
        %p223 = scmp.lt.s32.totalorder %s220, 3
        %s224 = scalar_select %p223, %s220, 3
        %s225 = smul.addr %s222, 4
        %s226 = sadd.s32 %s224, %s225
        %s227 = smul.addr %s226, 4
        %s228 = scalar_lea.vmem %s1, %s227
        %s229 = sadd.s32 %s19, 1
      $region32: #{decoder_forward_pallas.3} parent=23 // pred_fallthru
        _
      // Predicated region
      $region33: #{decoder_forward_pallas.3} parent=23 // pred_check
        %p230 = pneg %p105
      $region34: #{decoder_forward_pallas.3} parent=23 // pred_check_branch
        %232 = sbr.rel (%p230) target = $region36
      $region35: #{decoder_forward_pallas.3} parent=23 // pred_region
        %s233 = sadd.s32 %s19, 2
        %p234 = scmp.lt.s32.totalorder %s18, 1
        %s235 = scalar_select %p234, %s18, 1
        %p236 = scmp.lt.s32.totalorder %s233, 3
        %s237 = scalar_select %p236, %s233, 3
        %s238 = smul.addr %s235, 4
        %s239 = sadd.s32 %s237, %s238
        %s240 = smul.addr %s239, 4
        %s241 = scalar_lea.vmem %s2, %s240
        %s242 = sadd.s32 %s19, 2
      $region36: #{decoder_forward_pallas.3} parent=23 // pred_fallthru
        _
    $region24: #{decoder_forward_pallas.3} parent=5 // pred_fallthru
      _
    %p243 = scmp.le.s32.totalorder 1, %s11
    %p244 = scmp.lt.s32.totalorder %s11, 5
    %p245 = pnand %p243, %p244
    %p246 = pneg %p245
    // Predicated region
    $region37: #{decoder_forward_pallas.3} parent=5 // pred_check
      _
    $region38: #{decoder_forward_pallas.3} parent=5 // pred_check_branch
      %248 = sbr.rel (%p245) target = $region40
    $region39: #{decoder_forward_pallas.3} parent=5 // pred_region
      %s249 = ssub.s32 %s11, 1
      %p250 = scmp.lt.s32.totalorder %s20, 1
      %s251 = scalar_select %p250, %s20, 1
      %p252 = scmp.lt.s32.totalorder %s21, 3
      %s253 = scalar_select %p252, %s21, 3
      %s254 = smul.addr %s251, 4
      %s255 = sadd.s32 %s253, %s254
      %s256 = smul.addr %s255, 4
      %s257 = scalar_lea.vmem %s0, %s256
      %p258 = pneg %p51
      %p259 = pneg %p48
      %s260 = sadd.s32 %s21, 1
      %p261 = scmp.lt.s32.totalorder %s20, 1
      %s262 = scalar_select %p261, %s20, 1
      %p263 = scmp.lt.s32.totalorder %s260, 3
      %s264 = scalar_select %p263, %s260, 3
      %s265 = smul.addr %s262, 4
      %s266 = sadd.s32 %s264, %s265
      %s267 = smul.addr %s266, 4
      %s268 = scalar_lea.vmem %s1, %s267
      %p269 = pneg %p81
      %p270 = pneg %p78
      %s271 = sadd.s32 %s21, 2
      %p272 = scmp.lt.s32.totalorder %s20, 1
      %s273 = scalar_select %p272, %s20, 1
      %p274 = scmp.lt.s32.totalorder %s271, 3
      %s275 = scalar_select %p274, %s271, 3
      %s276 = smul.addr %s273, 4
      %s277 = sadd.s32 %s275, %s276
      %s278 = smul.addr %s277, 4
      %s279 = scalar_lea.vmem %s2, %s278
      %p280 = pneg %p111
      %p281 = pneg %p108
      %p282 = pneg %p132
      %p283 = pneg %p129
      %p284 = pneg %p153
      %p285 = pneg %p150
      %p286 = pneg %p181
      %p287 = pneg %p178
      %p288 = scmp.lt.s32.totalorder %s20, 1
      %s289 = scalar_select %p288, %s20, 1
      %p290 = scmp.lt.s32.totalorder %s21, 1
      %s291 = scalar_select %p290, %s21, 1
      %s292 = smul.addr %s289, 2
      %s293 = sadd.s32 %s291, %s292
      %s294 = smul.addr %s293, 2
      %s295 = scalar_lea.vmem %s5, %s294
      %p296 = scmp.lt.s32.totalorder %s20, 1
      %s297 = scalar_select %p296, %s20, 1
      %p298 = scmp.lt.s32.totalorder %s21, 3
      %s299 = scalar_select %p298, %s21, 3
      %s300 = smul.addr %s297, 4
      %s301 = sadd.s32 %s299, %s300
      %s302 = smul.addr %s301, 4
      %s303 = scalar_lea.vmem %s0, %s302
      %s304 = sadd.s32 %s21, 1
      %p305 = scmp.lt.s32.totalorder %s20, 1
      %s306 = scalar_select %p305, %s20, 1
      %p307 = scmp.lt.s32.totalorder %s304, 3
      %s308 = scalar_select %p307, %s304, 3
      %s309 = smul.addr %s306, 4
      %s310 = sadd.s32 %s308, %s309
      %s311 = smul.addr %s310, 4
      %s312 = scalar_lea.vmem %s1, %s311
      %s313 = sadd.s32 %s21, 1
      %s314 = sadd.s32 %s21, 2
      %p315 = scmp.lt.s32.totalorder %s20, 1
      %s316 = scalar_select %p315, %s20, 1
      %p317 = scmp.lt.s32.totalorder %s314, 3
      %s318 = scalar_select %p317, %s314, 3
      %s319 = smul.addr %s316, 4
      %s320 = sadd.s32 %s318, %s319
      %s321 = smul.addr %s320, 4
      %s322 = scalar_lea.vmem %s2, %s321
      %s323 = sadd.s32 %s21, 2
      %p324 = scmp.lt.s32.totalorder %s20, 1
      %s325 = scalar_select %p324, %s20, 1
      %p326 = scmp.lt.s32.totalorder %s21, 1
      %s327 = scalar_select %p326, %s21, 1
      %s328 = smul.addr %s325, 2
      %s329 = sadd.s32 %s327, %s328
      %s330 = smul.addr %s329, 2
      %s331 = scalar_lea.vmem %s5, %s330
      %v333 = vld [vmem:[%s303] sm:$0x7]
      %v334 = vunpack.c.l.bf16 %v333
      %v335 = vpack.c.bf16 %v334, %v334
      %v336 = vld [vmem:[%s3] sm:$0xf]
      %v337 = vld [vmem:[%s3 + $0x4] sm:$0xf]
      %v338 = vld [vmem:[%s3 + $0x8] sm:$0xf]
      %s339 = scalar_lea.vmem %s3, 12
      %v340 = vld [vmem:[%s339] sm:$0xf]
      %v341 = vld [vmem:[%s339 + $0x4] sm:$0xf]
      %v342 = vld [vmem:[%s339 + $0x8] sm:$0xf]
      %v344 = vshrl.u32 %v335, 16
      %v346 = vshll.u32 %v335, 16
      %v348 = vrot.slane %v346, 1
      %v349 = vor.u32 %v344, %v348
      %v353 = vunpack.c.l.b16 %v340
      %v354 = vunpack.c.l.b16 %v341
      %v355 = vunpack.c.l.b16 %v342
      %v356 = vpack.c.b16 %v354, %v353
      %v357 = vpack.c.b16 %v355, %v355
      %vm359 = vcmask 195584
      %v361 = vsel %vm359, %v349, 0
      %vm363 = vcmask 1043456
      %v365 = vsel %vm363, %v357, 0
      %367 = vmatpush.bf16.msra.mxu0 0
      %368 = vmatpush.bf16.msra.mxu0 0
      %369 = vmatpush.bf16.msra.mxu0 0
      %370 = vmatpush.bf16.msra.mxu0 0
      %371 = vmatpush.bf16.msra.mxu0 0
      %372 = vmatpush.bf16.msra.mxu0 0
      %373 = vmatpush.bf16.msra.mxu0 %v365
      %374 = vmatpush.bf16.msra.mxu0 %v356
      %375 = vmatmul.bf16.gmra.mxu0 %v361
      %v376 = vpop.f32.mrf.mxu0
      %v377 = vadd.f32 0.0, %v376
      %v378 = vpop.f32.mrf.mxu0
      %379 = vdwg.mxu0
      %v383 = vunpack.c.l.b16 %v336
      %v384 = vunpack.c.l.b16 %v337
      %v385 = vunpack.c.l.b16 %v338
      %v386 = vpack.c.b16 %v384, %v383
      %v387 = vpack.c.b16 %v385, %v385
      %v389 = vsel %vm359, %v335, 0
      %v392 = vsel %vm363, %v387, 0
      %394 = vmatpush.bf16.msra.mxu0 0
      %395 = vmatpush.bf16.msra.mxu0 0
      %396 = vmatpush.bf16.msra.mxu0 0
      %397 = vmatpush.bf16.msra.mxu0 0
      %398 = vmatpush.bf16.msra.mxu0 0
      %399 = vmatpush.bf16.msra.mxu0 0
      %400 = vmatpush.bf16.msra.mxu0 %v392
      %401 = vmatpush.bf16.msra.mxu0 %v386
      %402 = vmatmul.bf16.gmra.mxu0 %v389
      %v403 = vpop.f32.mrf.mxu0
      %v404 = vadd.f32 %v377, %v403
      %v405 = vpop.f32.mrf.mxu0
      %406 = vdwg.mxu0
      %s407 = scalar_lea.vmem %s3, 24
      %v408 = vld [vmem:[%s407] sm:$0xf]
      %v409 = vld [vmem:[%s407 + $0x4] sm:$0xf]
      %v410 = vld [vmem:[%s407 + $0x8] sm:$0xf]
      %v412 = vrot.slane %v335, 1
      %v416 = vunpack.c.l.b16 %v408
      %v417 = vunpack.c.l.b16 %v409
      %v418 = vunpack.c.l.b16 %v410
      %v419 = vpack.c.b16 %v417, %v416
      %v420 = vpack.c.b16 %v418, %v418
      %v423 = vsel %vm359, %v412, 0
      %v426 = vsel %vm363, %v420, 0
      %428 = vmatpush.bf16.msra.mxu0 0
      %429 = vmatpush.bf16.msra.mxu0 0
      %430 = vmatpush.bf16.msra.mxu0 0
      %431 = vmatpush.bf16.msra.mxu0 0
      %432 = vmatpush.bf16.msra.mxu0 0
      %433 = vmatpush.bf16.msra.mxu0 0
      %434 = vmatpush.bf16.msra.mxu0 %v426
      %435 = vmatpush.bf16.msra.mxu0 %v419
      %436 = vmatmul.bf16.gmra.mxu0 %v423
      %v437 = vpop.f32.mrf.mxu0
      %v438 = vadd.f32 0.0, %v437
      %v439 = vpop.f32.mrf.mxu0
      %440 = vdwg.mxu0
      %v441 = vadd.f32 %v404, %v438
      %v442 = vld [vmem:[%s312] sm:$0x7]
      %v443 = vunpack.c.l.bf16 %v442
      %v444 = vpack.c.bf16 %v443, %v443
      %s445 = scalar_lea.vmem %s3, 36
      %v446 = vld [vmem:[%s445] sm:$0xf]
      %v447 = vld [vmem:[%s445 + $0x4] sm:$0xf]
      %v448 = vld [vmem:[%s445 + $0x8] sm:$0xf]
      %v452 = vunpack.c.l.b16 %v446
      %v453 = vunpack.c.l.b16 %v447
      %v454 = vunpack.c.l.b16 %v448
      %v455 = vpack.c.b16 %v453, %v452
      %v456 = vpack.c.b16 %v454, %v454
      %v459 = vsel %vm359, %v444, 0
      %v462 = vsel %vm363, %v456, 0
      %464 = vmatpush.bf16.msra.mxu0 0
      %465 = vmatpush.bf16.msra.mxu0 0
      %466 = vmatpush.bf16.msra.mxu0 0
      %467 = vmatpush.bf16.msra.mxu0 0
      %468 = vmatpush.bf16.msra.mxu0 0
      %469 = vmatpush.bf16.msra.mxu0 0
      %470 = vmatpush.bf16.msra.mxu0 %v462
      %471 = vmatpush.bf16.msra.mxu0 %v455
      %472 = vmatmul.bf16.gmra.mxu0 %v459
      %v473 = vpop.f32.mrf.mxu0
      %v474 = vadd.f32 0.0, %v473
      %v475 = vpop.f32.mrf.mxu0
      %476 = vdwg.mxu0
      %v477 = vadd.f32 %v441, %v474
      %s478 = scalar_lea.vmem %s3, 48
      %v479 = vld [vmem:[%s478] sm:$0xf]
      %v480 = vld [vmem:[%s478 + $0x4] sm:$0xf]
      %v481 = vld [vmem:[%s478 + $0x8] sm:$0xf]
      %v482 = vshrl.u32 %v444, 16
      %v484 = vshll.u32 %v444, 16
      %v486 = vrot.slane %v484, 1
      %v487 = vor.u32 %v482, %v486
      %v491 = vunpack.c.l.b16 %v479
      %v492 = vunpack.c.l.b16 %v480
      %v493 = vunpack.c.l.b16 %v481
      %v494 = vpack.c.b16 %v492, %v491
      %v495 = vpack.c.b16 %v493, %v493
      %v498 = vsel %vm359, %v487, 0
      %v501 = vsel %vm363, %v495, 0
      %503 = vmatpush.bf16.msra.mxu0 0
      %504 = vmatpush.bf16.msra.mxu0 0
      %505 = vmatpush.bf16.msra.mxu0 0
      %506 = vmatpush.bf16.msra.mxu0 0
      %507 = vmatpush.bf16.msra.mxu0 0
      %508 = vmatpush.bf16.msra.mxu0 0
      %509 = vmatpush.bf16.msra.mxu0 %v501
      %510 = vmatpush.bf16.msra.mxu0 %v494
      %511 = vmatmul.bf16.gmra.mxu0 %v498
      %v512 = vpop.f32.mrf.mxu0
      %v513 = vadd.f32 0.0, %v512
      %v514 = vpop.f32.mrf.mxu0
      %515 = vdwg.mxu0
      %v516 = vadd.f32 %v477, %v513
      %s517 = scalar_lea.vmem %s3, 60
      %v518 = vld [vmem:[%s517] sm:$0xf]
      %v519 = vld [vmem:[%s517 + $0x4] sm:$0xf]
      %v520 = vld [vmem:[%s517 + $0x8] sm:$0xf]
      %v522 = vrot.slane %v444, 1
      %v526 = vunpack.c.l.b16 %v518
      %v527 = vunpack.c.l.b16 %v519
      %v528 = vunpack.c.l.b16 %v520
      %v529 = vpack.c.b16 %v527, %v526
      %v530 = vpack.c.b16 %v528, %v528
      %v533 = vsel %vm359, %v522, 0
      %v536 = vsel %vm363, %v530, 0
      %538 = vmatpush.bf16.msra.mxu0 0
      %539 = vmatpush.bf16.msra.mxu0 0
      %540 = vmatpush.bf16.msra.mxu0 0
      %541 = vmatpush.bf16.msra.mxu0 0
      %542 = vmatpush.bf16.msra.mxu0 0
      %543 = vmatpush.bf16.msra.mxu0 0
      %544 = vmatpush.bf16.msra.mxu0 %v536
      %545 = vmatpush.bf16.msra.mxu0 %v529
      %546 = vmatmul.bf16.gmra.mxu0 %v533
      %v547 = vpop.f32.mrf.mxu0
      %v548 = vadd.f32 0.0, %v547
      %v549 = vpop.f32.mrf.mxu0
      %550 = vdwg.mxu0
      %v551 = vadd.f32 %v516, %v548
      %v552 = vld [vmem:[%s322] sm:$0x7]
      %v553 = vunpack.c.l.bf16 %v552
      %v554 = vpack.c.bf16 %v553, %v553
      %s555 = scalar_lea.vmem %s3, 72
      %v556 = vld [vmem:[%s555] sm:$0xf]
      %v557 = vld [vmem:[%s555 + $0x4] sm:$0xf]
      %v558 = vld [vmem:[%s555 + $0x8] sm:$0xf]
      %v562 = vunpack.c.l.b16 %v556
      %v563 = vunpack.c.l.b16 %v557
      %v564 = vunpack.c.l.b16 %v558
      %v565 = vpack.c.b16 %v563, %v562
      %v566 = vpack.c.b16 %v564, %v564
      %v569 = vsel %vm359, %v554, 0
      %v572 = vsel %vm363, %v566, 0
      %574 = vmatpush.bf16.msra.mxu0 0
      %575 = vmatpush.bf16.msra.mxu0 0
      %576 = vmatpush.bf16.msra.mxu0 0
      %577 = vmatpush.bf16.msra.mxu0 0
      %578 = vmatpush.bf16.msra.mxu0 0
      %579 = vmatpush.bf16.msra.mxu0 0
      %580 = vmatpush.bf16.msra.mxu0 %v572
      %581 = vmatpush.bf16.msra.mxu0 %v565
      %582 = vmatmul.bf16.gmra.mxu0 %v569
      %v583 = vpop.f32.mrf.mxu0
      %v584 = vadd.f32 0.0, %v583
      %v585 = vpop.f32.mrf.mxu0
      %586 = vdwg.mxu0
      %v587 = vadd.f32 %v551, %v584
      %s588 = scalar_lea.vmem %s3, 84
      %v589 = vld [vmem:[%s588] sm:$0xf]
      %v590 = vld [vmem:[%s588 + $0x4] sm:$0xf]
      %v591 = vld [vmem:[%s588 + $0x8] sm:$0xf]
      %v592 = vshrl.u32 %v554, 16
      %v594 = vshll.u32 %v554, 16
      %v596 = vrot.slane %v594, 1
      %v597 = vor.u32 %v592, %v596
      %v601 = vunpack.c.l.b16 %v589
      %v602 = vunpack.c.l.b16 %v590
      %v603 = vunpack.c.l.b16 %v591
      %v604 = vpack.c.b16 %v602, %v601
      %v605 = vpack.c.b16 %v603, %v603
      %v608 = vsel %vm359, %v597, 0
      %v611 = vsel %vm363, %v605, 0
      %613 = vmatpush.bf16.msra.mxu0 0
      %614 = vmatpush.bf16.msra.mxu0 0
      %615 = vmatpush.bf16.msra.mxu0 0
      %616 = vmatpush.bf16.msra.mxu0 0
      %617 = vmatpush.bf16.msra.mxu0 0
      %618 = vmatpush.bf16.msra.mxu0 0
      %619 = vmatpush.bf16.msra.mxu0 %v611
      %620 = vmatpush.bf16.msra.mxu0 %v604
      %621 = vmatmul.bf16.gmra.mxu0 %v608
      %v622 = vpop.f32.mrf.mxu0
      %v623 = vadd.f32 0.0, %v622
      %v624 = vpop.f32.mrf.mxu0
      %625 = vdwg.mxu0
      %v626 = vadd.f32 %v587, %v623
      %s627 = scalar_lea.vmem %s3, 96
      %v628 = vld [vmem:[%s627] sm:$0xf]
      %v629 = vld [vmem:[%s627 + $0x4] sm:$0xf]
      %v630 = vld [vmem:[%s627 + $0x8] sm:$0xf]
      %v632 = vrot.slane %v554, 1
      %v636 = vunpack.c.l.b16 %v628
      %v637 = vunpack.c.l.b16 %v629
      %v638 = vunpack.c.l.b16 %v630
      %v639 = vpack.c.b16 %v637, %v636
      %v640 = vpack.c.b16 %v638, %v638
      %v643 = vsel %vm359, %v632, 0
      %v646 = vsel %vm363, %v640, 0
      %648 = vmatpush.bf16.msra.mxu0 0
      %649 = vmatpush.bf16.msra.mxu0 0
      %650 = vmatpush.bf16.msra.mxu0 0
      %651 = vmatpush.bf16.msra.mxu0 0
      %652 = vmatpush.bf16.msra.mxu0 0
      %653 = vmatpush.bf16.msra.mxu0 0
      %654 = vmatpush.bf16.msra.mxu0 %v646
      %655 = vmatpush.bf16.msra.mxu0 %v639
      %656 = vmatmul.bf16.gmra.mxu0 %v643
      %v657 = vpop.f32.mrf.mxu0
      %v658 = vadd.f32 0.0, %v657
      %v659 = vpop.f32.mrf.mxu0
      %660 = vdwg.mxu0
      %v661 = vadd.f32 %v626, %v658
      %v662 = vld [vmem:[%s4] sm:$0x1]
      %v664 = vperm.slane %v662, 0
      %v666 = vadd.f32 %v661, %v664
      %v667 = vpack.c.bf16 %v666, %v666
      %vm668 = vcmask 254976
      %669 = vst.msk [vmem:[%s331] sm:$0x3] %vm668, %v667
      %p670 = scmp.lt.s32.totalorder %s20, 1
      %s671 = scalar_select %p670, %s20, 1
      %p672 = scmp.lt.s32.totalorder %s21, 1
      %s673 = scalar_select %p672, %s21, 1
      %s674 = smul.addr %s671, 2
      %s675 = sadd.s32 %s673, %s674
      %s676 = smul.addr %s675, 2
      %s677 = scalar_lea.vmem %s5, %s676
      // Predicated region
      $region41: #{decoder_forward_pallas.3} parent=39 // pred_check
        %p678 = pneg %p178
      $region42: #{decoder_forward_pallas.3} parent=39 // pred_check_branch
        %680 = sbr.rel (%p678) target = $region44
      $region43: #{decoder_forward_pallas.3} parent=39 // pred_region
        _
      $region44: #{decoder_forward_pallas.3} parent=39 // pred_fallthru
        _
    $region40: #{decoder_forward_pallas.3} parent=5 // pred_fallthru
      _
    %p681 = scmp.le.s32.totalorder 2, %s11
    // Predicated region
    $region45: #{decoder_forward_pallas.3} parent=5 // pred_check
      %p682 = pneg %p681
    $region46: #{decoder_forward_pallas.3} parent=5 // pred_check_branch
      %684 = sbr.rel (%p682) target = $region48
    $region47: #{decoder_forward_pallas.3} parent=5 // pred_region
      %s685 = ssub.s32 %s11, 2
      // Predicated region
      $region49: #{decoder_forward_pallas.3} parent=47 // pred_check
        %p686 = pneg %p184
      $region50: #{decoder_forward_pallas.3} parent=47 // pred_check_branch
        %688 = sbr.rel (%p686) target = $region52
      $region51: #{decoder_forward_pallas.3} parent=47 // pred_region
        %p689 = scmp.lt.s32.totalorder %s22, 1
        %s690 = scalar_select %p689, %s22, 1
        %p691 = scmp.lt.s32.totalorder %s23, 1
        %s692 = scalar_select %p691, %s23, 1
        %s693 = smul.addr %s690, 2
        %s694 = sadd.s32 %s692, %s693
        %s695 = smul.addr %s694, 2
        %s696 = scalar_lea.vmem %s5, %s695
      $region52: #{decoder_forward_pallas.3} parent=47 // pred_fallthru
        _
    $region48: #{decoder_forward_pallas.3} parent=5 // pred_fallthru
      _
  $region6: #{decoder_forward_pallas.3} parent=0 // loop_footer
    %s15 = sadd.s32 1, %s11
  $region7: #{decoder_forward_pallas.3} parent=0 // loop_footer_branch
    %10 = sbr.rel target = $region3
  $region8: #{decoder_forward_pallas.3} parent=0 // loop_exit
    _

// kernel: decoder_forward_pallas.4
$region0: #{decoder_forward_pallas.4}
  #allocation0 [shape = 'u32[]', space=smem, size = 0x4, offset = 0x4, fixed_abs, tag = 'smem constant byte address 0x4 - core index']
  #allocation1 [shape = 'u32[72,128]{1,0:T(1,128)}', space=vmem, size = 0x9000, scoped, tag = 'internal scratch']
  %s0 = inlined_call_operand.vmem [shape: bf16[2,4,6,48], index: 0, kind: input, shape index: {}, may-alias: {0,1,2}]
  %s1 = inlined_call_operand.vmem [shape: bf16[2,4,6,48], index: 1, kind: input, shape index: {}, may-alias: {0,1,2}]
  %s2 = inlined_call_operand.vmem [shape: bf16[2,4,6,48], index: 2, kind: input, shape index: {}, may-alias: {0,1,2}]
  %s3 = inlined_call_operand.vmem [shape: bf16[2,2,4,32], index: 3, kind: input, shape index: {}]
  %s4 = inlined_call_operand.vmem [shape: bf16[3,3,48,16], index: 4, kind: input, shape index: {}]
  %s5 = inlined_call_operand.vmem [shape: f32[1,16], index: 5, kind: input, shape index: {}]
  %s6 = inlined_call_operand.vmem [shape: bf16[16,32], index: 6, kind: input, shape index: {}]
  %s7 = inlined_call_operand.vmem [shape: f32[1,32], index: 7, kind: input, shape index: {}]
  %s8 = inlined_call_operand.vmem [shape: bf16[2,2,4,32], index: 8, kind: output, shape index: {}]
  %s9 = sld [smem:[#allocation0]]
  $region65: #{decoder_forward_pallas.4} parent=0
    _
  %s11 = ssub.s32 1, %s9
  %s12 = scalar_select 0, %s11, %s9
  loop: start=0, step=1, limit=6
  $region2: #{decoder_forward_pallas.4} parent=0 // loop_pre_header
    _
  $region3: #{decoder_forward_pallas.4} parent=0 // loop_header
    %s14 = sphi 0, %s18
    %p15 = scmp.ge.s32.totalorder %s14, 6
    %s21 = sphi 0, %s33
    %s22 = sphi 0, %s29
    %s23 = sphi 0, %s21
    %s24 = sphi 0, %s22
    %s25 = sphi 0, %s23
    %s26 = sphi 0, %s24
    %s38 = sphi 0, %s40
    %s41 = sphi 0, %s38
    %s42 = sphi 0, %s41
    %s58 = sphi 0, %s42
    %s68 = sphi 0, %s70
    %s71 = sphi 0, %s68
    %s72 = sphi 0, %s71
    %s88 = sphi 0, %s72
    %s98 = sphi 0, %s100
    %s101 = sphi 0, %s98
    %s102 = sphi 0, %s101
    %s118 = sphi 0, %s102
    %s126 = sphi 0, %s128
    %s129 = sphi 0, %s126
    %s130 = sphi 0, %s129
    %s146 = sphi 0, %s130
    %s150 = sphi 0, %s150
    %s152 = sphi 0, %s150
    %s153 = sphi 0, %s152
    %s167 = sphi 0, %s153
    %s171 = sphi 0, %s171
    %s173 = sphi 0, %s171
    %s174 = sphi 0, %s173
    %s188 = sphi 0, %s174
    %s192 = sphi 0, %s192
    %s194 = sphi 0, %s192
    %s195 = sphi 0, %s194
    %s209 = sphi 0, %s195
    %s213 = sphi 0, %s213
    %s215 = sphi 0, %s213
    %s216 = sphi 0, %s215
    %s230 = sphi 0, %s216
    %s238 = sphi 0, %s240
    %s241 = sphi 0, %s238
    %s242 = sphi 0, %s241
    %s258 = sphi 0, %s242
  $region4: #{decoder_forward_pallas.4} parent=0 // loop_header_branch
    %17 = sbr.rel (%p15) target = $region8
  $region5: #{decoder_forward_pallas.4} parent=0 // loop_body
    %s19 = ssub.s32 %s14, 1
    %s20 = ssub.s32 %s14, 2
    %s27 = sadd.s32 1, %s22
    %p28 = scmp.ge.s32.totalorder %s27, 2
    %s29 = scalar_select %p28, 0, %s27
    %s30 = sadd.s32 1, %s21
    %s31 = scalar_select %p28, %s30, %s21
    %p32 = scmp.ge.s32.totalorder %s31, 2
    %s33 = scalar_select %p32, 0, %s31
    %s34 = ssub.s32 %s21, %s33
    %s35 = ssub.s32 %s22, %s29
    %s36 = sor.u32 %s34, %s35
    %p37 = scmp.eq.s32.totalorder %s36, 0
    %s39 = sadd.s32 %s38, 1
    %s40 = scalar_select %p37, %s38, %s39
    %p43 = pneg %p37
    %p44 = scmp.eq.s32.totalorder %s14, 3
    %p45 = por %p43, %p44
    %p46 = scmp.ne.s32.totalorder %s38, %s41
    %p47 = scmp.eq.s32.totalorder %s14, 0
    %p48 = por %p46, %p47
    %p49 = scmp.ne.s32.totalorder %s38, %s41
    %p50 = scmp.eq.s32.totalorder %s19, 3
    %p51 = por %p49, %p50
    %p52 = scmp.ne.s32.totalorder %s41, %s42
    %p53 = scmp.eq.s32.totalorder %s19, 0
    %p54 = por %p52, %p53
    %p55 = scmp.ne.s32.totalorder %s41, %s42
    %p56 = scmp.eq.s32.totalorder %s20, 3
    %p57 = por %p55, %p56
    %p59 = scmp.ne.s32.totalorder %s42, %s58
    %p60 = scmp.eq.s32.totalorder %s20, 0
    %p61 = por %p59, %p60
    %s62 = sadd.s32 %s22, 1
    %s63 = sadd.s32 %s29, 1
    %s64 = ssub.s32 %s21, %s33
    %s65 = ssub.s32 %s62, %s63
    %s66 = sor.u32 %s64, %s65
    %p67 = scmp.eq.s32.totalorder %s66, 0
    %s69 = sadd.s32 %s68, 1
    %s70 = scalar_select %p67, %s68, %s69
    %p73 = pneg %p67
    %p74 = scmp.eq.s32.totalorder %s14, 3
    %p75 = por %p73, %p74
    %p76 = scmp.ne.s32.totalorder %s68, %s71
    %p77 = scmp.eq.s32.totalorder %s14, 0
    %p78 = por %p76, %p77
    %p79 = scmp.ne.s32.totalorder %s68, %s71
    %p80 = scmp.eq.s32.totalorder %s19, 3
    %p81 = por %p79, %p80
    %p82 = scmp.ne.s32.totalorder %s71, %s72
    %p83 = scmp.eq.s32.totalorder %s19, 0
    %p84 = por %p82, %p83
    %p85 = scmp.ne.s32.totalorder %s71, %s72
    %p86 = scmp.eq.s32.totalorder %s20, 3
    %p87 = por %p85, %p86
    %p89 = scmp.ne.s32.totalorder %s72, %s88
    %p90 = scmp.eq.s32.totalorder %s20, 0
    %p91 = por %p89, %p90
    %s92 = sadd.s32 %s22, 2
    %s93 = sadd.s32 %s29, 2
    %s94 = ssub.s32 %s21, %s33
    %s95 = ssub.s32 %s92, %s93
    %s96 = sor.u32 %s94, %s95
    %p97 = scmp.eq.s32.totalorder %s96, 0
    %s99 = sadd.s32 %s98, 1
    %s100 = scalar_select %p97, %s98, %s99
    %p103 = pneg %p97
    %p104 = scmp.eq.s32.totalorder %s14, 3
    %p105 = por %p103, %p104
    %p106 = scmp.ne.s32.totalorder %s98, %s101
    %p107 = scmp.eq.s32.totalorder %s14, 0
    %p108 = por %p106, %p107
    %p109 = scmp.ne.s32.totalorder %s98, %s101
    %p110 = scmp.eq.s32.totalorder %s19, 3
    %p111 = por %p109, %p110
    %p112 = scmp.ne.s32.totalorder %s101, %s102
    %p113 = scmp.eq.s32.totalorder %s19, 0
    %p114 = por %p112, %p113
    %p115 = scmp.ne.s32.totalorder %s101, %s102
    %p116 = scmp.eq.s32.totalorder %s20, 3
    %p117 = por %p115, %p116
    %p119 = scmp.ne.s32.totalorder %s102, %s118
    %p120 = scmp.eq.s32.totalorder %s20, 0
    %p121 = por %p119, %p120
    %s122 = ssub.s32 %s21, %s33
    %s123 = ssub.s32 %s22, %s29
    %s124 = sor.u32 %s122, %s123
    %p125 = scmp.eq.s32.totalorder %s124, 0
    %s127 = sadd.s32 %s126, 1
    %s128 = scalar_select %p125, %s126, %s127
    %p131 = pneg %p125
    %p132 = scmp.eq.s32.totalorder %s14, 3
    %p133 = por %p131, %p132
    %p134 = scmp.ne.s32.totalorder %s126, %s129
    %p135 = scmp.eq.s32.totalorder %s14, 0
    %p136 = por %p134, %p135
    %p137 = scmp.ne.s32.totalorder %s126, %s129
    %p138 = scmp.eq.s32.totalorder %s19, 3
    %p139 = por %p137, %p138
    %p140 = scmp.ne.s32.totalorder %s129, %s130
    %p141 = scmp.eq.s32.totalorder %s19, 0
    %p142 = por %p140, %p141
    %p143 = scmp.ne.s32.totalorder %s129, %s130
    %p144 = scmp.eq.s32.totalorder %s20, 3
    %p145 = por %p143, %p144
    %p147 = scmp.ne.s32.totalorder %s130, %s146
    %p148 = scmp.eq.s32.totalorder %s20, 0
    %p149 = por %p147, %p148
    %s151 = sadd.s32 %s150, 1
    %p154 = scmp.eq.s32.totalorder %s14, 3
    %p155 = scmp.ne.s32.totalorder %s150, %s152
    %p156 = scmp.eq.s32.totalorder %s14, 0
    %p157 = por %p155, %p156
    %p158 = scmp.ne.s32.totalorder %s150, %s152
    %p159 = scmp.eq.s32.totalorder %s19, 3
    %p160 = por %p158, %p159
    %p161 = scmp.ne.s32.totalorder %s152, %s153
    %p162 = scmp.eq.s32.totalorder %s19, 0
    %p163 = por %p161, %p162
    %p164 = scmp.ne.s32.totalorder %s152, %s153
    %p165 = scmp.eq.s32.totalorder %s20, 3
    %p166 = por %p164, %p165
    %p168 = scmp.ne.s32.totalorder %s153, %s167
    %p169 = scmp.eq.s32.totalorder %s20, 0
    %p170 = por %p168, %p169
    %s172 = sadd.s32 %s171, 1
    %p175 = scmp.eq.s32.totalorder %s14, 3
    %p176 = scmp.ne.s32.totalorder %s171, %s173
    %p177 = scmp.eq.s32.totalorder %s14, 0
    %p178 = por %p176, %p177
    %p179 = scmp.ne.s32.totalorder %s171, %s173
    %p180 = scmp.eq.s32.totalorder %s19, 3
    %p181 = por %p179, %p180
    %p182 = scmp.ne.s32.totalorder %s173, %s174
    %p183 = scmp.eq.s32.totalorder %s19, 0
    %p184 = por %p182, %p183
    %p185 = scmp.ne.s32.totalorder %s173, %s174
    %p186 = scmp.eq.s32.totalorder %s20, 3
    %p187 = por %p185, %p186
    %p189 = scmp.ne.s32.totalorder %s174, %s188
    %p190 = scmp.eq.s32.totalorder %s20, 0
    %p191 = por %p189, %p190
    %s193 = sadd.s32 %s192, 1
    %p196 = scmp.eq.s32.totalorder %s14, 3
    %p197 = scmp.ne.s32.totalorder %s192, %s194
    %p198 = scmp.eq.s32.totalorder %s14, 0
    %p199 = por %p197, %p198
    %p200 = scmp.ne.s32.totalorder %s192, %s194
    %p201 = scmp.eq.s32.totalorder %s19, 3
    %p202 = por %p200, %p201
    %p203 = scmp.ne.s32.totalorder %s194, %s195
    %p204 = scmp.eq.s32.totalorder %s19, 0
    %p205 = por %p203, %p204
    %p206 = scmp.ne.s32.totalorder %s194, %s195
    %p207 = scmp.eq.s32.totalorder %s20, 3
    %p208 = por %p206, %p207
    %p210 = scmp.ne.s32.totalorder %s195, %s209
    %p211 = scmp.eq.s32.totalorder %s20, 0
    %p212 = por %p210, %p211
    %s214 = sadd.s32 %s213, 1
    %p217 = scmp.eq.s32.totalorder %s14, 3
    %p218 = scmp.ne.s32.totalorder %s213, %s215
    %p219 = scmp.eq.s32.totalorder %s14, 0
    %p220 = por %p218, %p219
    %p221 = scmp.ne.s32.totalorder %s213, %s215
    %p222 = scmp.eq.s32.totalorder %s19, 3
    %p223 = por %p221, %p222
    %p224 = scmp.ne.s32.totalorder %s215, %s216
    %p225 = scmp.eq.s32.totalorder %s19, 0
    %p226 = por %p224, %p225
    %p227 = scmp.ne.s32.totalorder %s215, %s216
    %p228 = scmp.eq.s32.totalorder %s20, 3
    %p229 = por %p227, %p228
    %p231 = scmp.ne.s32.totalorder %s216, %s230
    %p232 = scmp.eq.s32.totalorder %s20, 0
    %p233 = por %p231, %p232
    %s234 = ssub.s32 %s21, %s33
    %s235 = ssub.s32 %s22, %s29
    %s236 = sor.u32 %s234, %s235
    %p237 = scmp.eq.s32.totalorder %s236, 0
    %s239 = sadd.s32 %s238, 1
    %s240 = scalar_select %p237, %s238, %s239
    %p243 = pneg %p237
    %p244 = scmp.eq.s32.totalorder %s14, 3
    %p245 = por %p243, %p244
    %p246 = scmp.ne.s32.totalorder %s238, %s241
    %p247 = scmp.eq.s32.totalorder %s14, 0
    %p248 = por %p246, %p247
    %p249 = scmp.ne.s32.totalorder %s238, %s241
    %p250 = scmp.eq.s32.totalorder %s19, 3
    %p251 = por %p249, %p250
    %p252 = scmp.ne.s32.totalorder %s241, %s242
    %p253 = scmp.eq.s32.totalorder %s19, 0
    %p254 = por %p252, %p253
    %p255 = scmp.ne.s32.totalorder %s241, %s242
    %p256 = scmp.eq.s32.totalorder %s20, 3
    %p257 = por %p255, %p256
    %p259 = scmp.ne.s32.totalorder %s242, %s258
    %p260 = scmp.eq.s32.totalorder %s20, 0
    %p261 = por %p259, %p260
    %p262 = scmp.le.s32.totalorder 1, %s14
    %p263 = scmp.lt.s32.totalorder %s14, 5
    %p264 = pnand %p262, %p263
    %p265 = pneg %p264
    // Predicated region
    $region9: #{decoder_forward_pallas.4} parent=5 // pred_check
      _
    $region10: #{decoder_forward_pallas.4} parent=5 // pred_check_branch
      %267 = sbr.rel (%p264) target = $region12
    $region11: #{decoder_forward_pallas.4} parent=5 // pred_region
      %s268 = ssub.s32 %s14, 1
      // Predicated region
      $region13: #{decoder_forward_pallas.4} parent=11 // pred_check
        %p269 = pneg %p163
      $region14: #{decoder_forward_pallas.4} parent=11 // pred_check_branch
        %271 = sbr.rel (%p269) target = $region16
      $region15: #{decoder_forward_pallas.4} parent=11 // pred_region
        _
      $region16: #{decoder_forward_pallas.4} parent=11 // pred_fallthru
        _
      // Predicated region
      $region17: #{decoder_forward_pallas.4} parent=11 // pred_check
        %p272 = pneg %p184
      $region18: #{decoder_forward_pallas.4} parent=11 // pred_check_branch
        %274 = sbr.rel (%p272) target = $region20
      $region19: #{decoder_forward_pallas.4} parent=11 // pred_region
        _
      $region20: #{decoder_forward_pallas.4} parent=11 // pred_fallthru
        _
      // Predicated region
      $region21: #{decoder_forward_pallas.4} parent=11 // pred_check
        %p275 = pneg %p205
      $region22: #{decoder_forward_pallas.4} parent=11 // pred_check_branch
        %277 = sbr.rel (%p275) target = $region24
      $region23: #{decoder_forward_pallas.4} parent=11 // pred_region
        _
      $region24: #{decoder_forward_pallas.4} parent=11 // pred_fallthru
        _
      // Predicated region
      $region25: #{decoder_forward_pallas.4} parent=11 // pred_check
        %p278 = pneg %p226
      $region26: #{decoder_forward_pallas.4} parent=11 // pred_check_branch
        %280 = sbr.rel (%p278) target = $region28
      $region27: #{decoder_forward_pallas.4} parent=11 // pred_region
        _
      $region28: #{decoder_forward_pallas.4} parent=11 // pred_fallthru
        _
    $region12: #{decoder_forward_pallas.4} parent=5 // pred_fallthru
      _
    %p281 = scmp.lt.s32.totalorder %s14, 4
    // Predicated region
    $region29: #{decoder_forward_pallas.4} parent=5 // pred_check
      %p282 = pneg %p281
    $region30: #{decoder_forward_pallas.4} parent=5 // pred_check_branch
      %284 = sbr.rel (%p282) target = $region32
    $region31: #{decoder_forward_pallas.4} parent=5 // pred_region
      // Predicated region
      $region33: #{decoder_forward_pallas.4} parent=31 // pred_check
        %p285 = pneg %p48
      $region34: #{decoder_forward_pallas.4} parent=31 // pred_check_branch
        %287 = sbr.rel (%p285) target = $region36
      $region35: #{decoder_forward_pallas.4} parent=31 // pred_region
        %p288 = scmp.lt.s32.totalorder %s21, 1
        %s289 = scalar_select %p288, %s21, 1
        %p290 = scmp.lt.s32.totalorder %s22, 3
        %s291 = scalar_select %p290, %s22, 3
        %s292 = smul.addr %s289, 4
        %s293 = sadd.s32 %s291, %s292
        %s294 = smul.addr %s293, 4
        %s295 = scalar_lea.vmem %s0, %s294
      $region36: #{decoder_forward_pallas.4} parent=31 // pred_fallthru
        _
      // Predicated region
      $region37: #{decoder_forward_pallas.4} parent=31 // pred_check
        %p296 = pneg %p78
      $region38: #{decoder_forward_pallas.4} parent=31 // pred_check_branch
        %298 = sbr.rel (%p296) target = $region40
      $region39: #{decoder_forward_pallas.4} parent=31 // pred_region
        %s299 = sadd.s32 %s22, 1
        %p300 = scmp.lt.s32.totalorder %s21, 1
        %s301 = scalar_select %p300, %s21, 1
        %p302 = scmp.lt.s32.totalorder %s299, 3
        %s303 = scalar_select %p302, %s299, 3
        %s304 = smul.addr %s301, 4
        %s305 = sadd.s32 %s303, %s304
        %s306 = smul.addr %s305, 4
        %s307 = scalar_lea.vmem %s1, %s306
        %s308 = sadd.s32 %s22, 1
      $region40: #{decoder_forward_pallas.4} parent=31 // pred_fallthru
        _
      // Predicated region
      $region41: #{decoder_forward_pallas.4} parent=31 // pred_check
        %p309 = pneg %p108
      $region42: #{decoder_forward_pallas.4} parent=31 // pred_check_branch
        %311 = sbr.rel (%p309) target = $region44
      $region43: #{decoder_forward_pallas.4} parent=31 // pred_region
        %s312 = sadd.s32 %s22, 2
        %p313 = scmp.lt.s32.totalorder %s21, 1
        %s314 = scalar_select %p313, %s21, 1
        %p315 = scmp.lt.s32.totalorder %s312, 3
        %s316 = scalar_select %p315, %s312, 3
        %s317 = smul.addr %s314, 4
        %s318 = sadd.s32 %s316, %s317
        %s319 = smul.addr %s318, 4
        %s320 = scalar_lea.vmem %s2, %s319
        %s321 = sadd.s32 %s22, 2
      $region44: #{decoder_forward_pallas.4} parent=31 // pred_fallthru
        _
      // Predicated region
      $region45: #{decoder_forward_pallas.4} parent=31 // pred_check
        %p322 = pneg %p136
      $region46: #{decoder_forward_pallas.4} parent=31 // pred_check_branch
        %324 = sbr.rel (%p322) target = $region48
      $region47: #{decoder_forward_pallas.4} parent=31 // pred_region
        %p325 = scmp.lt.s32.totalorder %s21, 1
        %s326 = scalar_select %p325, %s21, 1
        %p327 = scmp.lt.s32.totalorder %s22, 1
        %s328 = scalar_select %p327, %s22, 1
        %s329 = smul.addr %s326, 2
        %s330 = sadd.s32 %s328, %s329
        %s331 = smul.addr %s330, 2
        %s332 = scalar_lea.vmem %s3, %s331
      $region48: #{decoder_forward_pallas.4} parent=31 // pred_fallthru
        _
    $region32: #{decoder_forward_pallas.4} parent=5 // pred_fallthru
      _
    %p333 = scmp.le.s32.totalorder 1, %s14
    %p334 = scmp.lt.s32.totalorder %s14, 5
    %p335 = pnand %p333, %p334
    %p336 = pneg %p335
    // Predicated region
    $region49: #{decoder_forward_pallas.4} parent=5 // pred_check
      _
    $region50: #{decoder_forward_pallas.4} parent=5 // pred_check_branch
      %338 = sbr.rel (%p335) target = $region52
    $region51: #{decoder_forward_pallas.4} parent=5 // pred_region
      %s339 = ssub.s32 %s14, 1
      %p340 = scmp.lt.s32.totalorder %s23, 1
      %s341 = scalar_select %p340, %s23, 1
      %p342 = scmp.lt.s32.totalorder %s24, 3
      %s343 = scalar_select %p342, %s24, 3
      %s344 = smul.addr %s341, 4
      %s345 = sadd.s32 %s343, %s344
      %s346 = smul.addr %s345, 4
      %s347 = scalar_lea.vmem %s0, %s346
      %p348 = pneg %p54
      %p349 = pneg %p51
      %s350 = sadd.s32 %s24, 1
      %p351 = scmp.lt.s32.totalorder %s23, 1
      %s352 = scalar_select %p351, %s23, 1
      %p353 = scmp.lt.s32.totalorder %s350, 3
      %s354 = scalar_select %p353, %s350, 3
      %s355 = smul.addr %s352, 4
      %s356 = sadd.s32 %s354, %s355
      %s357 = smul.addr %s356, 4
      %s358 = scalar_lea.vmem %s1, %s357
      %p359 = pneg %p84
      %p360 = pneg %p81
      %s361 = sadd.s32 %s24, 2
      %p362 = scmp.lt.s32.totalorder %s23, 1
      %s363 = scalar_select %p362, %s23, 1
      %p364 = scmp.lt.s32.totalorder %s361, 3
      %s365 = scalar_select %p364, %s361, 3
      %s366 = smul.addr %s363, 4
      %s367 = sadd.s32 %s365, %s366
      %s368 = smul.addr %s367, 4
      %s369 = scalar_lea.vmem %s2, %s368
      %p370 = pneg %p114
      %p371 = pneg %p111
      %p372 = scmp.lt.s32.totalorder %s23, 1
      %s373 = scalar_select %p372, %s23, 1
      %p374 = scmp.lt.s32.totalorder %s24, 1
      %s375 = scalar_select %p374, %s24, 1
      %s376 = smul.addr %s373, 2
      %s377 = sadd.s32 %s375, %s376
      %s378 = smul.addr %s377, 2
      %s379 = scalar_lea.vmem %s3, %s378
      %p380 = pneg %p142
      %p381 = pneg %p139
      %p382 = pneg %p163
      %p383 = pneg %p160
      %p384 = pneg %p184
      %p385 = pneg %p181
      %p386 = pneg %p205
      %p387 = pneg %p202
      %p388 = pneg %p226
      %p389 = pneg %p223
      %p390 = pneg %p254
      %p391 = pneg %p251
      %p392 = scmp.lt.s32.totalorder %s23, 1
      %s393 = scalar_select %p392, %s23, 1
      %p394 = scmp.lt.s32.totalorder %s24, 1
      %s395 = scalar_select %p394, %s24, 1
      %s396 = smul.addr %s393, 2
      %s397 = sadd.s32 %s395, %s396
      %s398 = smul.addr %s397, 2
      %s399 = scalar_lea.vmem %s8, %s398
      %p400 = scmp.lt.s32.totalorder %s23, 1
      %s401 = scalar_select %p400, %s23, 1
      %p402 = scmp.lt.s32.totalorder %s24, 3
      %s403 = scalar_select %p402, %s24, 3
      %s404 = smul.addr %s401, 4
      %s405 = sadd.s32 %s403, %s404
      %s406 = smul.addr %s405, 4
      %s407 = scalar_lea.vmem %s0, %s406
      %s408 = sadd.s32 %s24, 1
      %p409 = scmp.lt.s32.totalorder %s23, 1
      %s410 = scalar_select %p409, %s23, 1
      %p411 = scmp.lt.s32.totalorder %s408, 3
      %s412 = scalar_select %p411, %s408, 3
      %s413 = smul.addr %s410, 4
      %s414 = sadd.s32 %s412, %s413
      %s415 = smul.addr %s414, 4
      %s416 = scalar_lea.vmem %s1, %s415
      %s417 = sadd.s32 %s24, 1
      %s418 = sadd.s32 %s24, 2
      %p419 = scmp.lt.s32.totalorder %s23, 1
      %s420 = scalar_select %p419, %s23, 1
      %p421 = scmp.lt.s32.totalorder %s418, 3
      %s422 = scalar_select %p421, %s418, 3
      %s423 = smul.addr %s420, 4
      %s424 = sadd.s32 %s422, %s423
      %s425 = smul.addr %s424, 4
      %s426 = scalar_lea.vmem %s2, %s425
      %s427 = sadd.s32 %s24, 2
      %p428 = scmp.lt.s32.totalorder %s23, 1
      %s429 = scalar_select %p428, %s23, 1
      %p430 = scmp.lt.s32.totalorder %s24, 1
      %s431 = scalar_select %p430, %s24, 1
      %s432 = smul.addr %s429, 2
      %s433 = sadd.s32 %s431, %s432
      %s434 = smul.addr %s433, 2
      %s435 = scalar_lea.vmem %s3, %s434
      %p436 = scmp.lt.s32.totalorder %s23, 1
      %s437 = scalar_select %p436, %s23, 1
      %p438 = scmp.lt.s32.totalorder %s24, 1
      %s439 = scalar_select %p438, %s24, 1
      %s440 = smul.addr %s437, 2
      %s441 = sadd.s32 %s439, %s440
      %s442 = smul.addr %s441, 2
      %s443 = scalar_lea.vmem %s8, %s442
      %v445 = vld [vmem:[%s407] sm:$0x7]
      %v446 = vunpack.c.l.bf16 %v445
      %vm447 = vcmp.ge.f32.partialorder %v446, 0.0
      %v448 = vmul.f32 %v446, 0.2
      %v449 = vsel %vm447, %v446, %v448
      %v450 = vpack.c.bf16 %v449, %v449
      %v451 = vld [vmem:[%s4] sm:$0xf]
      %v452 = vld [vmem:[%s4 + $0x4] sm:$0xf]
      %v453 = vld [vmem:[%s4 + $0x8] sm:$0xf]
      %v454 = vld [vmem:[%s4 + $0xc] sm:$0xf]
      %v455 = vld [vmem:[%s4 + $0x10] sm:$0xf]
      %v456 = vld [vmem:[%s4 + $0x14] sm:$0xf]
      %s457 = scalar_lea.vmem %s4, 24
      %v458 = vld [vmem:[%s457] sm:$0xf]
      %v459 = vld [vmem:[%s457 + $0x4] sm:$0xf]
      %v460 = vld [vmem:[%s457 + $0x8] sm:$0xf]
      %v461 = vld [vmem:[%s457 + $0xc] sm:$0xf]
      %v462 = vld [vmem:[%s457 + $0x10] sm:$0xf]
      %v463 = vld [vmem:[%s457 + $0x14] sm:$0xf]
      %v465 = vshrl.u32 %v450, 16
      %v467 = vshll.u32 %v450, 16
      %v469 = vrot.slane %v467, 1
      %v470 = vor.u32 %v465, %v469
      %v477 = vunpack.c.l.b16 %v458
      %v478 = vunpack.c.l.b16 %v459
      %v479 = vunpack.c.l.b16 %v460
      %v480 = vunpack.c.l.b16 %v461
      %v481 = vunpack.c.l.b16 %v462
      %v482 = vunpack.c.l.b16 %v463
      %v483 = vpack.c.b16 %v478, %v477
      %v484 = vpack.c.b16 %v480, %v479
      %v485 = vpack.c.b16 %v482, %v481
      %vm489 = vcmask 392192
      %v491 = vsel %vm489, %v470, 0
      %493 = vmatpush.bf16.msra.mxu0 0
      %494 = vmatpush.bf16.msra.mxu0 0
      %495 = vmatpush.bf16.msra.mxu0 0
      %496 = vmatpush.bf16.msra.mxu0 0
      %497 = vmatpush.bf16.msra.mxu0 0
      %498 = vmatpush.bf16.msra.mxu0 %v485
      %499 = vmatpush.bf16.msra.mxu0 %v484
      %500 = vmatpush.bf16.msra.mxu0 %v483
      %501 = vmatmul.bf16.gmra.mxu0 %v491
      %v502 = vpop.f32.mrf.mxu0
      %v503 = vadd.f32 0.0, %v502
      %v504 = vpop.f32.mrf.mxu0
      %505 = vdwg.mxu0
      %v512 = vunpack.c.l.b16 %v451
      %v513 = vunpack.c.l.b16 %v452
      %v514 = vunpack.c.l.b16 %v453
      %v515 = vunpack.c.l.b16 %v454
      %v516 = vunpack.c.l.b16 %v455
      %v517 = vunpack.c.l.b16 %v456
      %v518 = vpack.c.b16 %v513, %v512
      %v519 = vpack.c.b16 %v515, %v514
      %v520 = vpack.c.b16 %v517, %v516
      %v524 = vsel %vm489, %v450, 0
      %526 = vmatpush.bf16.msra.mxu0 0
      %527 = vmatpush.bf16.msra.mxu0 0
      %528 = vmatpush.bf16.msra.mxu0 0
      %529 = vmatpush.bf16.msra.mxu0 0
      %530 = vmatpush.bf16.msra.mxu0 0
      %531 = vmatpush.bf16.msra.mxu0 %v520
      %532 = vmatpush.bf16.msra.mxu0 %v519
      %533 = vmatpush.bf16.msra.mxu0 %v518
      %534 = vmatmul.bf16.gmra.mxu0 %v524
      %v535 = vpop.f32.mrf.mxu0
      %v536 = vadd.f32 %v503, %v535
      %v537 = vpop.f32.mrf.mxu0
      %538 = vdwg.mxu0
      %s539 = scalar_lea.vmem %s4, 48
      %v540 = vld [vmem:[%s539] sm:$0xf]
      %v541 = vld [vmem:[%s539 + $0x4] sm:$0xf]
      %v542 = vld [vmem:[%s539 + $0x8] sm:$0xf]
      %v543 = vld [vmem:[%s539 + $0xc] sm:$0xf]
      %v544 = vld [vmem:[%s539 + $0x10] sm:$0xf]
      %v545 = vld [vmem:[%s539 + $0x14] sm:$0xf]
      %v547 = vrot.slane %v450, 1
      %v554 = vunpack.c.l.b16 %v540
      %v555 = vunpack.c.l.b16 %v541
      %v556 = vunpack.c.l.b16 %v542
      %v557 = vunpack.c.l.b16 %v543
      %v558 = vunpack.c.l.b16 %v544
      %v559 = vunpack.c.l.b16 %v545
      %v560 = vpack.c.b16 %v555, %v554
      %v561 = vpack.c.b16 %v557, %v556
      %v562 = vpack.c.b16 %v559, %v558
      %v567 = vsel %vm489, %v547, 0
      %569 = vmatpush.bf16.msra.mxu0 0
      %570 = vmatpush.bf16.msra.mxu0 0
      %571 = vmatpush.bf16.msra.mxu0 0
      %572 = vmatpush.bf16.msra.mxu0 0
      %573 = vmatpush.bf16.msra.mxu0 0
      %574 = vmatpush.bf16.msra.mxu0 %v562
      %575 = vmatpush.bf16.msra.mxu0 %v561
      %576 = vmatpush.bf16.msra.mxu0 %v560
      %577 = vmatmul.bf16.gmra.mxu0 %v567
      %v578 = vpop.f32.mrf.mxu0
      %v579 = vadd.f32 0.0, %v578
      %v580 = vpop.f32.mrf.mxu0
      %581 = vdwg.mxu0
      %v582 = vadd.f32 %v536, %v579
      %v583 = vld [vmem:[%s416] sm:$0x7]
      %v584 = vunpack.c.l.bf16 %v583
      %vm585 = vcmp.ge.f32.partialorder %v584, 0.0
      %v586 = vmul.f32 %v584, 0.2
      %v587 = vsel %vm585, %v584, %v586
      %v588 = vpack.c.bf16 %v587, %v587
      %s589 = scalar_lea.vmem %s4, 72
      %v590 = vld [vmem:[%s589] sm:$0xf]
      %v591 = vld [vmem:[%s589 + $0x4] sm:$0xf]
      %v592 = vld [vmem:[%s589 + $0x8] sm:$0xf]
      %v593 = vld [vmem:[%s589 + $0xc] sm:$0xf]
      %v594 = vld [vmem:[%s589 + $0x10] sm:$0xf]
      %v595 = vld [vmem:[%s589 + $0x14] sm:$0xf]
      %v602 = vunpack.c.l.b16 %v590
      %v603 = vunpack.c.l.b16 %v591
      %v604 = vunpack.c.l.b16 %v592
      %v605 = vunpack.c.l.b16 %v593
      %v606 = vunpack.c.l.b16 %v594
      %v607 = vunpack.c.l.b16 %v595
      %v608 = vpack.c.b16 %v603, %v602
      %v609 = vpack.c.b16 %v605, %v604
      %v610 = vpack.c.b16 %v607, %v606
      %v615 = vsel %vm489, %v588, 0
      %617 = vmatpush.bf16.msra.mxu0 0
      %618 = vmatpush.bf16.msra.mxu0 0
      %619 = vmatpush.bf16.msra.mxu0 0
      %620 = vmatpush.bf16.msra.mxu0 0
      %621 = vmatpush.bf16.msra.mxu0 0
      %622 = vmatpush.bf16.msra.mxu0 %v610
      %623 = vmatpush.bf16.msra.mxu0 %v609
      %624 = vmatpush.bf16.msra.mxu0 %v608
      %625 = vmatmul.bf16.gmra.mxu0 %v615
      %v626 = vpop.f32.mrf.mxu0
      %v627 = vadd.f32 0.0, %v626
      %v628 = vpop.f32.mrf.mxu0
      %629 = vdwg.mxu0
      %v630 = vadd.f32 %v582, %v627
      %s631 = scalar_lea.vmem %s4, 96
      %v632 = vld [vmem:[%s631] sm:$0xf]
      %v633 = vld [vmem:[%s631 + $0x4] sm:$0xf]
      %v634 = vld [vmem:[%s631 + $0x8] sm:$0xf]
      %v635 = vld [vmem:[%s631 + $0xc] sm:$0xf]
      %v636 = vld [vmem:[%s631 + $0x10] sm:$0xf]
      %v637 = vld [vmem:[%s631 + $0x14] sm:$0xf]
      %v638 = vshrl.u32 %v588, 16
      %v640 = vshll.u32 %v588, 16
      %v642 = vrot.slane %v640, 1
      %v643 = vor.u32 %v638, %v642
      %v650 = vunpack.c.l.b16 %v632
      %v651 = vunpack.c.l.b16 %v633
      %v652 = vunpack.c.l.b16 %v634
      %v653 = vunpack.c.l.b16 %v635
      %v654 = vunpack.c.l.b16 %v636
      %v655 = vunpack.c.l.b16 %v637
      %v656 = vpack.c.b16 %v651, %v650
      %v657 = vpack.c.b16 %v653, %v652
      %v658 = vpack.c.b16 %v655, %v654
      %v663 = vsel %vm489, %v643, 0
      %665 = vmatpush.bf16.msra.mxu0 0
      %666 = vmatpush.bf16.msra.mxu0 0
      %667 = vmatpush.bf16.msra.mxu0 0
      %668 = vmatpush.bf16.msra.mxu0 0
      %669 = vmatpush.bf16.msra.mxu0 0
      %670 = vmatpush.bf16.msra.mxu0 %v658
      %671 = vmatpush.bf16.msra.mxu0 %v657
      %672 = vmatpush.bf16.msra.mxu0 %v656
      %673 = vmatmul.bf16.gmra.mxu0 %v663
      %v674 = vpop.f32.mrf.mxu0
      %v675 = vadd.f32 0.0, %v674
      %v676 = vpop.f32.mrf.mxu0
      %677 = vdwg.mxu0
      %v678 = vadd.f32 %v630, %v675
      %s679 = scalar_lea.vmem %s4, 120
      %v680 = vld [vmem:[%s679] sm:$0xf]
      %v681 = vld [vmem:[%s679 + $0x4] sm:$0xf]
      %v682 = vld [vmem:[%s679 + $0x8] sm:$0xf]
      %v683 = vld [vmem:[%s679 + $0xc] sm:$0xf]
      %v684 = vld [vmem:[%s679 + $0x10] sm:$0xf]
      %v685 = vld [vmem:[%s679 + $0x14] sm:$0xf]
      %v687 = vrot.slane %v588, 1
      %v694 = vunpack.c.l.b16 %v680
      %v695 = vunpack.c.l.b16 %v681
      %v696 = vunpack.c.l.b16 %v682
      %v697 = vunpack.c.l.b16 %v683
      %v698 = vunpack.c.l.b16 %v684
      %v699 = vunpack.c.l.b16 %v685
      %v700 = vpack.c.b16 %v695, %v694
      %v701 = vpack.c.b16 %v697, %v696
      %v702 = vpack.c.b16 %v699, %v698
      %v707 = vsel %vm489, %v687, 0
      %709 = vmatpush.bf16.msra.mxu0 0
      %710 = vmatpush.bf16.msra.mxu0 0
      %711 = vmatpush.bf16.msra.mxu0 0
      %712 = vmatpush.bf16.msra.mxu0 0
      %713 = vmatpush.bf16.msra.mxu0 0
      %714 = vmatpush.bf16.msra.mxu0 %v702
      %715 = vmatpush.bf16.msra.mxu0 %v701
      %716 = vmatpush.bf16.msra.mxu0 %v700
      %717 = vmatmul.bf16.gmra.mxu0 %v707
      %v718 = vpop.f32.mrf.mxu0
      %v719 = vadd.f32 0.0, %v718
      %v720 = vpop.f32.mrf.mxu0
      %721 = vdwg.mxu0
      %v722 = vadd.f32 %v678, %v719
      %v723 = vld [vmem:[%s426] sm:$0x7]
      %v724 = vunpack.c.l.bf16 %v723
      %vm725 = vcmp.ge.f32.partialorder %v724, 0.0
      %v726 = vmul.f32 %v724, 0.2
      %v727 = vsel %vm725, %v724, %v726
      %v728 = vpack.c.bf16 %v727, %v727
      %s729 = scalar_lea.vmem %s4, 144
      %v730 = vld [vmem:[%s729] sm:$0xf]
      %v731 = vld [vmem:[%s729 + $0x4] sm:$0xf]
      %v732 = vld [vmem:[%s729 + $0x8] sm:$0xf]
      %v733 = vld [vmem:[%s729 + $0xc] sm:$0xf]
      %v734 = vld [vmem:[%s729 + $0x10] sm:$0xf]
      %v735 = vld [vmem:[%s729 + $0x14] sm:$0xf]
      %v742 = vunpack.c.l.b16 %v730
      %v743 = vunpack.c.l.b16 %v731
      %v744 = vunpack.c.l.b16 %v732
      %v745 = vunpack.c.l.b16 %v733
      %v746 = vunpack.c.l.b16 %v734
      %v747 = vunpack.c.l.b16 %v735
      %v748 = vpack.c.b16 %v743, %v742
      %v749 = vpack.c.b16 %v745, %v744
      %v750 = vpack.c.b16 %v747, %v746
      %v755 = vsel %vm489, %v728, 0
      %757 = vmatpush.bf16.msra.mxu0 0
      %758 = vmatpush.bf16.msra.mxu0 0
      %759 = vmatpush.bf16.msra.mxu0 0
      %760 = vmatpush.bf16.msra.mxu0 0
      %761 = vmatpush.bf16.msra.mxu0 0
      %762 = vmatpush.bf16.msra.mxu0 %v750
      %763 = vmatpush.bf16.msra.mxu0 %v749
      %764 = vmatpush.bf16.msra.mxu0 %v748
      %765 = vmatmul.bf16.gmra.mxu0 %v755
      %v766 = vpop.f32.mrf.mxu0
      %v767 = vadd.f32 0.0, %v766
      %v768 = vpop.f32.mrf.mxu0
      %769 = vdwg.mxu0
      %v770 = vadd.f32 %v722, %v767
      %s771 = scalar_lea.vmem %s4, 168
      %v772 = vld [vmem:[%s771] sm:$0xf]
      %v773 = vld [vmem:[%s771 + $0x4] sm:$0xf]
      %v774 = vld [vmem:[%s771 + $0x8] sm:$0xf]
      %v775 = vld [vmem:[%s771 + $0xc] sm:$0xf]
      %v776 = vld [vmem:[%s771 + $0x10] sm:$0xf]
      %v777 = vld [vmem:[%s771 + $0x14] sm:$0xf]
      %v778 = vshrl.u32 %v728, 16
      %v780 = vshll.u32 %v728, 16
      %v782 = vrot.slane %v780, 1
      %v783 = vor.u32 %v778, %v782
      %v790 = vunpack.c.l.b16 %v772
      %v791 = vunpack.c.l.b16 %v773
      %v792 = vunpack.c.l.b16 %v774
      %v793 = vunpack.c.l.b16 %v775
      %v794 = vunpack.c.l.b16 %v776
      %v795 = vunpack.c.l.b16 %v777
      %v796 = vpack.c.b16 %v791, %v790
      %v797 = vpack.c.b16 %v793, %v792
      %v798 = vpack.c.b16 %v795, %v794
      %v803 = vsel %vm489, %v783, 0
      %805 = vmatpush.bf16.msra.mxu0 0
      %806 = vmatpush.bf16.msra.mxu0 0
      %807 = vmatpush.bf16.msra.mxu0 0
      %808 = vmatpush.bf16.msra.mxu0 0
      %809 = vmatpush.bf16.msra.mxu0 0
      %810 = vmatpush.bf16.msra.mxu0 %v798
      %811 = vmatpush.bf16.msra.mxu0 %v797
      %812 = vmatpush.bf16.msra.mxu0 %v796
      %813 = vmatmul.bf16.gmra.mxu0 %v803
      %v814 = vpop.f32.mrf.mxu0
      %v815 = vadd.f32 0.0, %v814
      %v816 = vpop.f32.mrf.mxu0
      %817 = vdwg.mxu0
      %v818 = vadd.f32 %v770, %v815
      %s819 = scalar_lea.vmem %s4, 192
      %v820 = vld [vmem:[%s819] sm:$0xf]
      %v821 = vld [vmem:[%s819 + $0x4] sm:$0xf]
      %v822 = vld [vmem:[%s819 + $0x8] sm:$0xf]
      %v823 = vld [vmem:[%s819 + $0xc] sm:$0xf]
      %v824 = vld [vmem:[%s819 + $0x10] sm:$0xf]
      %v825 = vld [vmem:[%s819 + $0x14] sm:$0xf]
      %v827 = vrot.slane %v728, 1
      %v834 = vunpack.c.l.b16 %v820
      %v835 = vunpack.c.l.b16 %v821
      %v836 = vunpack.c.l.b16 %v822
      %v837 = vunpack.c.l.b16 %v823
      %v838 = vunpack.c.l.b16 %v824
      %v839 = vunpack.c.l.b16 %v825
      %v840 = vpack.c.b16 %v835, %v834
      %v841 = vpack.c.b16 %v837, %v836
      %v842 = vpack.c.b16 %v839, %v838
      %v847 = vsel %vm489, %v827, 0
      %849 = vmatpush.bf16.msra.mxu0 0
      %850 = vmatpush.bf16.msra.mxu0 0
      %851 = vmatpush.bf16.msra.mxu0 0
      %852 = vmatpush.bf16.msra.mxu0 0
      %853 = vmatpush.bf16.msra.mxu0 0
      %854 = vmatpush.bf16.msra.mxu0 %v842
      %855 = vmatpush.bf16.msra.mxu0 %v841
      %856 = vmatpush.bf16.msra.mxu0 %v840
      %857 = vmatmul.bf16.gmra.mxu0 %v847
      %v858 = vpop.f32.mrf.mxu0
      %v859 = vadd.f32 0.0, %v858
      %v860 = vpop.f32.mrf.mxu0
      %861 = vdwg.mxu0
      %v862 = vadd.f32 %v818, %v859
      %v863 = vld [vmem:[%s5] sm:$0x1]
      %v865 = vperm.slane %v863, 0
      %v867 = vadd.f32 %v862, %v865
      %vm868 = vcmp.ge.f32.partialorder %v867, 0.0
      %v869 = vmul.f32 %v867, 0.2
      %v870 = vsel %vm868, %v867, %v869
      %v871 = vpack.c.bf16 %v870, %v870
      %v872 = vld [vmem:[%s6] sm:$0xf]
      %v873 = vld [vmem:[%s6 + $0x4] sm:$0xf]
      %v876 = vunpack.c.l.b16 %v872
      %v877 = vunpack.c.l.b16 %v873
      %v878 = vpack.c.b16 %v877, %v876
      %vm880 = vcmask 130048
      %v882 = vsel %vm880, %v871, 0
      %884 = vmatpush.bf16.msra.mxu0 0
      %885 = vmatpush.bf16.msra.mxu0 0
      %886 = vmatpush.bf16.msra.mxu0 0
      %887 = vmatpush.bf16.msra.mxu0 0
      %888 = vmatpush.bf16.msra.mxu0 0
      %889 = vmatpush.bf16.msra.mxu0 0
      %890 = vmatpush.bf16.msra.mxu0 0
      %891 = vmatpush.bf16.msra.mxu0 %v878
      %892 = vmatmul.bf16.gmra.mxu0 %v882
      %v893 = vpop.f32.mrf.mxu0
      %v894 = vadd.f32 0.0, %v893
      %v895 = vpop.f32.mrf.mxu0
      %896 = vdwg.mxu0
      %v897 = vld [vmem:[%s435] sm:$0x3]
      %v898 = vunpack.c.l.bf16 %v897
      %v899 = vadd.f32 %v898, %v894
      %v900 = vld [vmem:[%s7] sm:$0x1]
      %v902 = vperm.slane %v900, 0
      %v904 = vadd.f32 %v899, %v902
      %vm905 = vcmp.ge.f32.partialorder %v904, 0.0
      %v906 = vmul.f32 %v904, 0.2
      %v907 = vsel %vm905, %v904, %v906
      %v908 = vpack.c.bf16 %v907, %v907
      %vm909 = vcmask 254976
      %910 = vst.msk [vmem:[%s443] sm:$0x3] %vm909, %v908
      %p911 = scmp.lt.s32.totalorder %s23, 1
      %s912 = scalar_select %p911, %s23, 1
      %p913 = scmp.lt.s32.totalorder %s24, 1
      %s914 = scalar_select %p913, %s24, 1
      %s915 = smul.addr %s912, 2
      %s916 = sadd.s32 %s914, %s915
      %s917 = smul.addr %s916, 2
      %s918 = scalar_lea.vmem %s8, %s917
      // Predicated region
      $region53: #{decoder_forward_pallas.4} parent=51 // pred_check
        %p919 = pneg %p251
      $region54: #{decoder_forward_pallas.4} parent=51 // pred_check_branch
        %921 = sbr.rel (%p919) target = $region56
      $region55: #{decoder_forward_pallas.4} parent=51 // pred_region
        _
      $region56: #{decoder_forward_pallas.4} parent=51 // pred_fallthru
        _
    $region52: #{decoder_forward_pallas.4} parent=5 // pred_fallthru
      _
    %p922 = scmp.le.s32.totalorder 2, %s14
    // Predicated region
    $region57: #{decoder_forward_pallas.4} parent=5 // pred_check
      %p923 = pneg %p922
    $region58: #{decoder_forward_pallas.4} parent=5 // pred_check_branch
      %925 = sbr.rel (%p923) target = $region60
    $region59: #{decoder_forward_pallas.4} parent=5 // pred_region
      %s926 = ssub.s32 %s14, 2
      // Predicated region
      $region61: #{decoder_forward_pallas.4} parent=59 // pred_check
        %p927 = pneg %p257
      $region62: #{decoder_forward_pallas.4} parent=59 // pred_check_branch
        %929 = sbr.rel (%p927) target = $region64
      $region63: #{decoder_forward_pallas.4} parent=59 // pred_region
        %p930 = scmp.lt.s32.totalorder %s25, 1
        %s931 = scalar_select %p930, %s25, 1
        %p932 = scmp.lt.s32.totalorder %s26, 1
        %s933 = scalar_select %p932, %s26, 1
        %s934 = smul.addr %s931, 2
        %s935 = sadd.s32 %s933, %s934
        %s936 = smul.addr %s935, 2
        %s937 = scalar_lea.vmem %s8, %s936
      $region64: #{decoder_forward_pallas.4} parent=59 // pred_fallthru
        _
    $region60: #{decoder_forward_pallas.4} parent=5 // pred_fallthru
      _
  $region6: #{decoder_forward_pallas.4} parent=0 // loop_footer
    %s18 = sadd.s32 1, %s14
  $region7: #{decoder_forward_pallas.4} parent=0 // loop_footer_branch
    %13 = sbr.rel target = $region3
  $region8: #{decoder_forward_pallas.4} parent=0 // loop_exit
    _

// kernel: tile.38
$region0: #{tile.38}
  #allocation0 [shape = 's32[1]{0}', space=sflag, size = 0x4, scoped, tag = 'scoped memory for tile.38']
  %s0 = inlined_call_operand.vmem [shape: f32[4], index: 0, kind: input, shape index: {}]
  %s1 = inlined_call_operand.vmem [shape: f32[128,4], index: 1, kind: output, shape index: {}]
  // Predicated region
  $region2: #{tile.38} parent=0 // pred_check
    _
  $region3: #{tile.38} parent=0 // pred_check_branch
    %3 = sbr.rel (0) target = $region5
  $region4: #{tile.38} parent=0 // pred_region
    _
  $region5: #{tile.38} parent=0 // pred_fallthru
    _
  %v4 = vld [vmem:[%s0] ss:$0 sm:$0xff]
  %5 = vst [vmem:[%s1] sm:$0xff] %v4
  %s6 = scalar_lea.vmem %s1, 8
  %7 = vst [vmem:[%s6] sm:$0xff] %v4
  %s8 = scalar_lea.vmem %s1, 16
  %9 = vst [vmem:[%s8] sm:$0xff] %v4
  %s10 = scalar_lea.vmem %s1, 24
  %11 = vst [vmem:[%s10] sm:$0xff] %v4
  %s12 = scalar_lea.vmem %s1, 32
  %13 = vst [vmem:[%s12] sm:$0xff] %v4
  %s14 = scalar_lea.vmem %s1, 40
  %15 = vst [vmem:[%s14] sm:$0xff] %v4
  %s16 = scalar_lea.vmem %s1, 48
  %17 = vst [vmem:[%s16] sm:$0xff] %v4
  %s18 = scalar_lea.vmem %s1, 56
  %19 = vst [vmem:[%s18] sm:$0xff] %v4
  %s20 = scalar_lea.vmem %s1, 64
  %21 = vst [vmem:[%s20] sm:$0xff] %v4
  %s22 = scalar_lea.vmem %s1, 72
  %23 = vst [vmem:[%s22] sm:$0xff] %v4
  %s24 = scalar_lea.vmem %s1, 80
  %25 = vst [vmem:[%s24] sm:$0xff] %v4
  %s26 = scalar_lea.vmem %s1, 88
  %27 = vst [vmem:[%s26] sm:$0xff] %v4
  %s28 = scalar_lea.vmem %s1, 96
  %29 = vst [vmem:[%s28] sm:$0xff] %v4
  %s30 = scalar_lea.vmem %s1, 104
  %31 = vst [vmem:[%s30] sm:$0xff] %v4
  %s32 = scalar_lea.vmem %s1, 112
  %33 = vst [vmem:[%s32] sm:$0xff] %v4
  %s34 = scalar_lea.vmem %s1, 120
  %35 = vst [vmem:[%s34] sm:$0xff] %v4

// kernel: tile.39
$region0: #{tile.39}
  %s0 = inlined_call_operand.vmem [shape: f32[128,4], index: 0, kind: input, shape index: {}]
  %s1 = inlined_call_operand.vmem [shape: f32[1,512], index: 1, kind: output, shape index: {}]
  $region1: #{tile.39} parent=0
    #allocation0 [shape = 'u8[16384]{0}', space=vmem, size = 0x4000, scoped, tag = 'scoped mem for output reshape']
    %v2 = vld [vmem:[%s0] sm:$0x1]
    %s3 = scalar_lea.vmem %s0, 31
    %v4 = vld [vmem:[%s3] sm:$0x2]
    %vm5 = vcmask 1041409
    %v6 = vsel %vm5, %v4, %v2
    %s7 = scalar_lea.vmem %s0, 62
    %v8 = vld [vmem:[%s7] sm:$0x4]
    %vm9 = vcmask 1042434
    %v10 = vsel %vm9, %v8, %v6
    %s11 = scalar_lea.vmem %s0, 93
    %v12 = vld [vmem:[%s11] sm:$0x8]
    %vm13 = vcmask 1043459
    %v14 = vsel %vm13, %v12, %v10
    %vm15 = vcmask 31744
    %16 = vst.msk [vmem:[#allocation0] ss:$8 sm:$0xf] %vm15, %v14
    %s17 = scalar_lea.vmem %s0, 31
    %v18 = vld [vmem:[%s17] sm:$0x1]
    %s19 = scalar_lea.vmem %s0, 62
    %v20 = vld [vmem:[%s19] sm:$0x2]
    %vm21 = vcmask 1041409
    %v22 = vsel %vm21, %v20, %v18
    %s23 = scalar_lea.vmem %s0, 93
    %v24 = vld [vmem:[%s23] sm:$0x4]
    %vm25 = vcmask 1042434
    %v26 = vsel %vm25, %v24, %v22
    %s27 = scalar_lea.vmem %s0, 124
    %v28 = vld [vmem:[%s27] sm:$0x8]
    %vm29 = vcmask 1043459
    %v30 = vsel %vm29, %v28, %v26
    %31 = vrot.lane.b32.xlu0 %v30, 124
    %v32 = vpop.permute.xlu0 %31
    %vm33 = vcmask 1048544
    %34 = vst.msk [vmem:[#allocation0] ss:$8 sm:$0xf] %vm33, %v32
    %s35 = scalar_lea.vmem %s0, 30
    %v36 = vld [vmem:[%s35] sm:$0x1]
    %s37 = scalar_lea.vmem %s0, 61
    %v38 = vld [vmem:[%s37] sm:$0x2]
    %vm39 = vcmask 1041409
    %v40 = vsel %vm39, %v38, %v36
    %s41 = scalar_lea.vmem %s0, 92
    %v42 = vld [vmem:[%s41] sm:$0x4]
    %vm43 = vcmask 1042434
    %v44 = vsel %vm43, %v42, %v40
    %s45 = scalar_lea.vmem %s0, 123
    %v46 = vld [vmem:[%s45] sm:$0x8]
    %vm47 = vcmask 1043459
    %v48 = vsel %vm47, %v46, %v44
    %49 = vrot.lane.b32.xlu0 %v48, 120
    %v50 = vpop.permute.xlu0 %49
    %vm51 = vcmask 1015744
    %52 = vst.msk [vmem:[#allocation0] ss:$8 sm:$0xf] %vm51, %v50
    %s53 = scalar_lea.vmem %s0, 29
    %v54 = vld [vmem:[%s53] sm:$0x1]
    %s55 = scalar_lea.vmem %s0, 60
    %v56 = vld [vmem:[%s55] sm:$0x2]
    %vm57 = vcmask 1041409
    %v58 = vsel %vm57, %v56, %v54
    %s59 = scalar_lea.vmem %s0, 91
    %v60 = vld [vmem:[%s59] sm:$0x4]
    %vm61 = vcmask 1042434
    %v62 = vsel %vm61, %v60, %v58
    %s63 = scalar_lea.vmem %s0, 122
    %v64 = vld [vmem:[%s63] sm:$0x8]
    %vm65 = vcmask 1043459
    %v66 = vsel %vm65, %v64, %v62
    %67 = vrot.lane.b32.xlu0 %v66, 116
    %v68 = vpop.permute.xlu0 %67
    %vm69 = vcmask 982944
    %70 = vst.msk [vmem:[#allocation0] ss:$8 sm:$0xf] %vm69, %v68
    %s71 = scalar_lea.vmem %s0, 28
    %v72 = vld [vmem:[%s71] sm:$0x1]
    %s73 = scalar_lea.vmem %s0, 59
    %v74 = vld [vmem:[%s73] sm:$0x2]
    %vm75 = vcmask 1041409
    %v76 = vsel %vm75, %v74, %v72
    %s77 = scalar_lea.vmem %s0, 90
    %v78 = vld [vmem:[%s77] sm:$0x4]
    %vm79 = vcmask 1042434
    %v80 = vsel %vm79, %v78, %v76
    %s81 = scalar_lea.vmem %s0, 121
    %v82 = vld [vmem:[%s81] sm:$0x8]
    %vm83 = vcmask 1043459
    %v84 = vsel %vm83, %v82, %v80
    %85 = vrot.lane.b32.xlu0 %v84, 112
    %v86 = vpop.permute.xlu0 %85
    %vm87 = vcmask 950144
    %88 = vst.msk [vmem:[#allocation0] ss:$8 sm:$0xf] %vm87, %v86
    %s89 = scalar_lea.vmem %s0, 27
    %v90 = vld [vmem:[%s89] sm:$0x1]
    %s91 = scalar_lea.vmem %s0, 58
    %v92 = vld [vmem:[%s91] sm:$0x2]
    %vm93 = vcmask 1041409
    %v94 = vsel %vm93, %v92, %v90
    %s95 = scalar_lea.vmem %s0, 89
    %v96 = vld [vmem:[%s95] sm:$0x4]
    %vm97 = vcmask 1042434
    %v98 = vsel %vm97, %v96, %v94
    %s99 = scalar_lea.vmem %s0, 120
    %v100 = vld [vmem:[%s99] sm:$0x8]
    %vm101 = vcmask 1043459
    %v102 = vsel %vm101, %v100, %v98
    %103 = vrot.lane.b32.xlu0 %v102, 108
    %v104 = vpop.permute.xlu0 %103
    %vm105 = vcmask 917344
    %106 = vst.msk [vmem:[#allocation0] ss:$8 sm:$0xf] %vm105, %v104
    %s107 = scalar_lea.vmem %s0, 26
    %v108 = vld [vmem:[%s107] sm:$0x1]
    %s109 = scalar_lea.vmem %s0, 57
    %v110 = vld [vmem:[%s109] sm:$0x2]
    %vm111 = vcmask 1041409
    %v112 = vsel %vm111, %v110, %v108
    %s113 = scalar_lea.vmem %s0, 88
    %v114 = vld [vmem:[%s113] sm:$0x4]
    %vm115 = vcmask 1042434
    %v116 = vsel %vm115, %v114, %v112
    %s117 = scalar_lea.vmem %s0, 119
    %v118 = vld [vmem:[%s117] sm:$0x8]
    %vm119 = vcmask 1043459
    %v120 = vsel %vm119, %v118, %v116
    %121 = vrot.lane.b32.xlu0 %v120, 104
    %v122 = vpop.permute.xlu0 %121
    %vm123 = vcmask 884544
    %124 = vst.msk [vmem:[#allocation0] ss:$8 sm:$0xf] %vm123, %v122
    %s125 = scalar_lea.vmem %s0, 25
    %v126 = vld [vmem:[%s125] sm:$0x1]
    %s127 = scalar_lea.vmem %s0, 56
    %v128 = vld [vmem:[%s127] sm:$0x2]
    %vm129 = vcmask 1041409
    %v130 = vsel %vm129, %v128, %v126
    %s131 = scalar_lea.vmem %s0, 87
    %v132 = vld [vmem:[%s131] sm:$0x4]
    %vm133 = vcmask 1042434
    %v134 = vsel %vm133, %v132, %v130
    %s135 = scalar_lea.vmem %s0, 118
    %v136 = vld [vmem:[%s135] sm:$0x8]
    %vm137 = vcmask 1043459
    %v138 = vsel %vm137, %v136, %v134
    %139 = vrot.lane.b32.xlu0 %v138, 100
    %v140 = vpop.permute.xlu0 %139
    %vm141 = vcmask 851744
    %142 = vst.msk [vmem:[#allocation0] ss:$8 sm:$0xf] %vm141, %v140
    %s143 = scalar_lea.vmem %s0, 24
    %v144 = vld [vmem:[%s143] sm:$0x1]
    %s145 = scalar_lea.vmem %s0, 55
    %v146 = vld [vmem:[%s145] sm:$0x2]
    %vm147 = vcmask 1041409
    %v148 = vsel %vm147, %v146, %v144
    %s149 = scalar_lea.vmem %s0, 86
    %v150 = vld [vmem:[%s149] sm:$0x4]
    %vm151 = vcmask 1042434
    %v152 = vsel %vm151, %v150, %v148
    %s153 = scalar_lea.vmem %s0, 117
    %v154 = vld [vmem:[%s153] sm:$0x8]
    %vm155 = vcmask 1043459
    %v156 = vsel %vm155, %v154, %v152
    %157 = vrot.lane.b32.xlu0 %v156, 96
    %v158 = vpop.permute.xlu0 %157
    %vm159 = vcmask 818944
    %160 = vst.msk [vmem:[#allocation0] ss:$8 sm:$0xf] %vm159, %v158
    %s161 = scalar_lea.vmem %s0, 23
    %v162 = vld [vmem:[%s161] sm:$0x1]
    %s163 = scalar_lea.vmem %s0, 54
    %v164 = vld [vmem:[%s163] sm:$0x2]
    %vm165 = vcmask 1041409
    %v166 = vsel %vm165, %v164, %v162
    %s167 = scalar_lea.vmem %s0, 85
    %v168 = vld [vmem:[%s167] sm:$0x4]
    %vm169 = vcmask 1042434
    %v170 = vsel %vm169, %v168, %v166
    %s171 = scalar_lea.vmem %s0, 116
    %v172 = vld [vmem:[%s171] sm:$0x8]
    %vm173 = vcmask 1043459
    %v174 = vsel %vm173, %v172, %v170
    %175 = vrot.lane.b32.xlu0 %v174, 92
    %v176 = vpop.permute.xlu0 %175
    %vm177 = vcmask 786144
    %178 = vst.msk [vmem:[#allocation0] ss:$8 sm:$0xf] %vm177, %v176
    %s179 = scalar_lea.vmem %s0, 22
    %v180 = vld [vmem:[%s179] sm:$0x1]
    %s181 = scalar_lea.vmem %s0, 53
    %v182 = vld [vmem:[%s181] sm:$0x2]
    %vm183 = vcmask 1041409
    %v184 = vsel %vm183, %v182, %v180
    %s185 = scalar_lea.vmem %s0, 84
    %v186 = vld [vmem:[%s185] sm:$0x4]
    %vm187 = vcmask 1042434
    %v188 = vsel %vm187, %v186, %v184
    %s189 = scalar_lea.vmem %s0, 115
    %v190 = vld [vmem:[%s189] sm:$0x8]
    %vm191 = vcmask 1043459
    %v192 = vsel %vm191, %v190, %v188
    %193 = vrot.lane.b32.xlu0 %v192, 88
    %v194 = vpop.permute.xlu0 %193
    %vm195 = vcmask 753344
    %196 = vst.msk [vmem:[#allocation0] ss:$8 sm:$0xf] %vm195, %v194
    %s197 = scalar_lea.vmem %s0, 21
    %v198 = vld [vmem:[%s197] sm:$0x1]
    %s199 = scalar_lea.vmem %s0, 52
    %v200 = vld [vmem:[%s199] sm:$0x2]
    %vm201 = vcmask 1041409
    %v202 = vsel %vm201, %v200, %v198
    %s203 = scalar_lea.vmem %s0, 83
    %v204 = vld [vmem:[%s203] sm:$0x4]
    %vm205 = vcmask 1042434
    %v206 = vsel %vm205, %v204, %v202
    %s207 = scalar_lea.vmem %s0, 114
    %v208 = vld [vmem:[%s207] sm:$0x8]
    %vm209 = vcmask 1043459
    %v210 = vsel %vm209, %v208, %v206
    %211 = vrot.lane.b32.xlu0 %v210, 84
    %v212 = vpop.permute.xlu0 %211
    %vm213 = vcmask 720544
    %214 = vst.msk [vmem:[#allocation0] ss:$8 sm:$0xf] %vm213, %v212
    %s215 = scalar_lea.vmem %s0, 20
    %v216 = vld [vmem:[%s215] sm:$0x1]
    %s217 = scalar_lea.vmem %s0, 51
    %v218 = vld [vmem:[%s217] sm:$0x2]
    %vm219 = vcmask 1041409
    %v220 = vsel %vm219, %v218, %v216
    %s221 = scalar_lea.vmem %s0, 82
    %v222 = vld [vmem:[%s221] sm:$0x4]
    %vm223 = vcmask 1042434
    %v224 = vsel %vm223, %v222, %v220
    %s225 = scalar_lea.vmem %s0, 113
    %v226 = vld [vmem:[%s225] sm:$0x8]
    %vm227 = vcmask 1043459
    %v228 = vsel %vm227, %v226, %v224
    %229 = vrot.lane.b32.xlu0 %v228, 80
    %v230 = vpop.permute.xlu0 %229
    %vm231 = vcmask 687744
    %232 = vst.msk [vmem:[#allocation0] ss:$8 sm:$0xf] %vm231, %v230
    %s233 = scalar_lea.vmem %s0, 19
    %v234 = vld [vmem:[%s233] sm:$0x1]
    %s235 = scalar_lea.vmem %s0, 50
    %v236 = vld [vmem:[%s235] sm:$0x2]
    %vm237 = vcmask 1041409
    %v238 = vsel %vm237, %v236, %v234
    %s239 = scalar_lea.vmem %s0, 81
    %v240 = vld [vmem:[%s239] sm:$0x4]
    %vm241 = vcmask 1042434
    %v242 = vsel %vm241, %v240, %v238
    %s243 = scalar_lea.vmem %s0, 112
    %v244 = vld [vmem:[%s243] sm:$0x8]
    %vm245 = vcmask 1043459
    %v246 = vsel %vm245, %v244, %v242
    %247 = vrot.lane.b32.xlu0 %v246, 76
    %v248 = vpop.permute.xlu0 %247
    %vm249 = vcmask 654944
    %250 = vst.msk [vmem:[#allocation0] ss:$8 sm:$0xf] %vm249, %v248
    %s251 = scalar_lea.vmem %s0, 18
    %v252 = vld [vmem:[%s251] sm:$0x1]
    %s253 = scalar_lea.vmem %s0, 49
    %v254 = vld [vmem:[%s253] sm:$0x2]
    %vm255 = vcmask 1041409
    %v256 = vsel %vm255, %v254, %v252
    %s257 = scalar_lea.vmem %s0, 80
    %v258 = vld [vmem:[%s257] sm:$0x4]
    %vm259 = vcmask 1042434
    %v260 = vsel %vm259, %v258, %v256
    %s261 = scalar_lea.vmem %s0, 111
    %v262 = vld [vmem:[%s261] sm:$0x8]
    %vm263 = vcmask 1043459
    %v264 = vsel %vm263, %v262, %v260
    %265 = vrot.lane.b32.xlu0 %v264, 72
    %v266 = vpop.permute.xlu0 %265
    %vm267 = vcmask 622144
    %268 = vst.msk [vmem:[#allocation0] ss:$8 sm:$0xf] %vm267, %v266
    %s269 = scalar_lea.vmem %s0, 17
    %v270 = vld [vmem:[%s269] sm:$0x1]
    %s271 = scalar_lea.vmem %s0, 48
    %v272 = vld [vmem:[%s271] sm:$0x2]
    %vm273 = vcmask 1041409
    %v274 = vsel %vm273, %v272, %v270
    %s275 = scalar_lea.vmem %s0, 79
    %v276 = vld [vmem:[%s275] sm:$0x4]
    %vm277 = vcmask 1042434
    %v278 = vsel %vm277, %v276, %v274
    %s279 = scalar_lea.vmem %s0, 110
    %v280 = vld [vmem:[%s279] sm:$0x8]
    %vm281 = vcmask 1043459
    %v282 = vsel %vm281, %v280, %v278
    %283 = vrot.lane.b32.xlu0 %v282, 68
    %v284 = vpop.permute.xlu0 %283
    %vm285 = vcmask 589344
    %286 = vst.msk [vmem:[#allocation0] ss:$8 sm:$0xf] %vm285, %v284
    %s287 = scalar_lea.vmem %s0, 16
    %v288 = vld [vmem:[%s287] sm:$0x1]
    %s289 = scalar_lea.vmem %s0, 47
    %v290 = vld [vmem:[%s289] sm:$0x2]
    %vm291 = vcmask 1041409
    %v292 = vsel %vm291, %v290, %v288
    %s293 = scalar_lea.vmem %s0, 78
    %v294 = vld [vmem:[%s293] sm:$0x4]
    %vm295 = vcmask 1042434
    %v296 = vsel %vm295, %v294, %v292
    %s297 = scalar_lea.vmem %s0, 109
    %v298 = vld [vmem:[%s297] sm:$0x8]
    %vm299 = vcmask 1043459
    %v300 = vsel %vm299, %v298, %v296
    %301 = vrot.lane.b32.xlu0 %v300, 64
    %v302 = vpop.permute.xlu0 %301
    %vm303 = vcmask 556544
    %304 = vst.msk [vmem:[#allocation0] ss:$8 sm:$0xf] %vm303, %v302
    %s305 = scalar_lea.vmem %s0, 15
    %v306 = vld [vmem:[%s305] sm:$0x1]
    %s307 = scalar_lea.vmem %s0, 46
    %v308 = vld [vmem:[%s307] sm:$0x2]
    %vm309 = vcmask 1041409
    %v310 = vsel %vm309, %v308, %v306
    %s311 = scalar_lea.vmem %s0, 77
    %v312 = vld [vmem:[%s311] sm:$0x4]
    %vm313 = vcmask 1042434
    %v314 = vsel %vm313, %v312, %v310
    %s315 = scalar_lea.vmem %s0, 108
    %v316 = vld [vmem:[%s315] sm:$0x8]
    %vm317 = vcmask 1043459
    %v318 = vsel %vm317, %v316, %v314
    %319 = vrot.lane.b32.xlu0 %v318, 60
    %v320 = vpop.permute.xlu0 %319
    %vm321 = vcmask 523744
    %322 = vst.msk [vmem:[#allocation0] ss:$8 sm:$0xf] %vm321, %v320
    %s323 = scalar_lea.vmem %s0, 14
    %v324 = vld [vmem:[%s323] sm:$0x1]
    %s325 = scalar_lea.vmem %s0, 45
    %v326 = vld [vmem:[%s325] sm:$0x2]
    %vm327 = vcmask 1041409
    %v328 = vsel %vm327, %v326, %v324
    %s329 = scalar_lea.vmem %s0, 76
    %v330 = vld [vmem:[%s329] sm:$0x4]
    %vm331 = vcmask 1042434
    %v332 = vsel %vm331, %v330, %v328
    %s333 = scalar_lea.vmem %s0, 107
    %v334 = vld [vmem:[%s333] sm:$0x8]
    %vm335 = vcmask 1043459
    %v336 = vsel %vm335, %v334, %v332
    %337 = vrot.lane.b32.xlu0 %v336, 56
    %v338 = vpop.permute.xlu0 %337
    %vm339 = vcmask 490944
    %340 = vst.msk [vmem:[#allocation0] ss:$8 sm:$0xf] %vm339, %v338
    %s341 = scalar_lea.vmem %s0, 13
    %v342 = vld [vmem:[%s341] sm:$0x1]
    %s343 = scalar_lea.vmem %s0, 44
    %v344 = vld [vmem:[%s343] sm:$0x2]
    %vm345 = vcmask 1041409
    %v346 = vsel %vm345, %v344, %v342
    %s347 = scalar_lea.vmem %s0, 75
    %v348 = vld [vmem:[%s347] sm:$0x4]
    %vm349 = vcmask 1042434
    %v350 = vsel %vm349, %v348, %v346
    %s351 = scalar_lea.vmem %s0, 106
    %v352 = vld [vmem:[%s351] sm:$0x8]
    %vm353 = vcmask 1043459
    %v354 = vsel %vm353, %v352, %v350
    %355 = vrot.lane.b32.xlu0 %v354, 52
    %v356 = vpop.permute.xlu0 %355
    %vm357 = vcmask 458144
    %358 = vst.msk [vmem:[#allocation0] ss:$8 sm:$0xf] %vm357, %v356
    %s359 = scalar_lea.vmem %s0, 12
    %v360 = vld [vmem:[%s359] sm:$0x1]
    %s361 = scalar_lea.vmem %s0, 43
    %v362 = vld [vmem:[%s361] sm:$0x2]
    %vm363 = vcmask 1041409
    %v364 = vsel %vm363, %v362, %v360
    %s365 = scalar_lea.vmem %s0, 74
    %v366 = vld [vmem:[%s365] sm:$0x4]
    %vm367 = vcmask 1042434
    %v368 = vsel %vm367, %v366, %v364
    %s369 = scalar_lea.vmem %s0, 105
    %v370 = vld [vmem:[%s369] sm:$0x8]
    %vm371 = vcmask 1043459
    %v372 = vsel %vm371, %v370, %v368
    %373 = vrot.lane.b32.xlu0 %v372, 48
    %v374 = vpop.permute.xlu0 %373
    %vm375 = vcmask 425344
    %376 = vst.msk [vmem:[#allocation0] ss:$8 sm:$0xf] %vm375, %v374
    %s377 = scalar_lea.vmem %s0, 11
    %v378 = vld [vmem:[%s377] sm:$0x1]
    %s379 = scalar_lea.vmem %s0, 42
    %v380 = vld [vmem:[%s379] sm:$0x2]
    %vm381 = vcmask 1041409
    %v382 = vsel %vm381, %v380, %v378
    %s383 = scalar_lea.vmem %s0, 73
    %v384 = vld [vmem:[%s383] sm:$0x4]
    %vm385 = vcmask 1042434
    %v386 = vsel %vm385, %v384, %v382
    %s387 = scalar_lea.vmem %s0, 104
    %v388 = vld [vmem:[%s387] sm:$0x8]
    %vm389 = vcmask 1043459
    %v390 = vsel %vm389, %v388, %v386
    %391 = vrot.lane.b32.xlu0 %v390, 44
    %v392 = vpop.permute.xlu0 %391
    %vm393 = vcmask 392544
    %394 = vst.msk [vmem:[#allocation0] ss:$8 sm:$0xf] %vm393, %v392
    %s395 = scalar_lea.vmem %s0, 10
    %v396 = vld [vmem:[%s395] sm:$0x1]
    %s397 = scalar_lea.vmem %s0, 41
    %v398 = vld [vmem:[%s397] sm:$0x2]
    %vm399 = vcmask 1041409
    %v400 = vsel %vm399, %v398, %v396
    %s401 = scalar_lea.vmem %s0, 72
    %v402 = vld [vmem:[%s401] sm:$0x4]
    %vm403 = vcmask 1042434
    %v404 = vsel %vm403, %v402, %v400
    %s405 = scalar_lea.vmem %s0, 103
    %v406 = vld [vmem:[%s405] sm:$0x8]
    %vm407 = vcmask 1043459
    %v408 = vsel %vm407, %v406, %v404
    %409 = vrot.lane.b32.xlu0 %v408, 40
    %v410 = vpop.permute.xlu0 %409
    %vm411 = vcmask 359744
    %412 = vst.msk [vmem:[#allocation0] ss:$8 sm:$0xf] %vm411, %v410
    %s413 = scalar_lea.vmem %s0, 9
    %v414 = vld [vmem:[%s413] sm:$0x1]
    %s415 = scalar_lea.vmem %s0, 40
    %v416 = vld [vmem:[%s415] sm:$0x2]
    %vm417 = vcmask 1041409
    %v418 = vsel %vm417, %v416, %v414
    %s419 = scalar_lea.vmem %s0, 71
    %v420 = vld [vmem:[%s419] sm:$0x4]
    %vm421 = vcmask 1042434
    %v422 = vsel %vm421, %v420, %v418
    %s423 = scalar_lea.vmem %s0, 102
    %v424 = vld [vmem:[%s423] sm:$0x8]
    %vm425 = vcmask 1043459
    %v426 = vsel %vm425, %v424, %v422
    %427 = vrot.lane.b32.xlu0 %v426, 36
    %v428 = vpop.permute.xlu0 %427
    %vm429 = vcmask 326944
    %430 = vst.msk [vmem:[#allocation0] ss:$8 sm:$0xf] %vm429, %v428
    %s431 = scalar_lea.vmem %s0, 8
    %v432 = vld [vmem:[%s431] sm:$0x1]
    %s433 = scalar_lea.vmem %s0, 39
    %v434 = vld [vmem:[%s433] sm:$0x2]
    %vm435 = vcmask 1041409
    %v436 = vsel %vm435, %v434, %v432
    %s437 = scalar_lea.vmem %s0, 70
    %v438 = vld [vmem:[%s437] sm:$0x4]
    %vm439 = vcmask 1042434
    %v440 = vsel %vm439, %v438, %v436
    %s441 = scalar_lea.vmem %s0, 101
    %v442 = vld [vmem:[%s441] sm:$0x8]
    %vm443 = vcmask 1043459
    %v444 = vsel %vm443, %v442, %v440
    %445 = vrot.lane.b32.xlu0 %v444, 32
    %v446 = vpop.permute.xlu0 %445
    %vm447 = vcmask 294144
    %448 = vst.msk [vmem:[#allocation0] ss:$8 sm:$0xf] %vm447, %v446
    %s449 = scalar_lea.vmem %s0, 7
    %v450 = vld [vmem:[%s449] sm:$0x1]
    %s451 = scalar_lea.vmem %s0, 38
    %v452 = vld [vmem:[%s451] sm:$0x2]
    %vm453 = vcmask 1041409
    %v454 = vsel %vm453, %v452, %v450
    %s455 = scalar_lea.vmem %s0, 69
    %v456 = vld [vmem:[%s455] sm:$0x4]
    %vm457 = vcmask 1042434
    %v458 = vsel %vm457, %v456, %v454
    %s459 = scalar_lea.vmem %s0, 100
    %v460 = vld [vmem:[%s459] sm:$0x8]
    %vm461 = vcmask 1043459
    %v462 = vsel %vm461, %v460, %v458
    %463 = vrot.lane.b32.xlu0 %v462, 28
    %v464 = vpop.permute.xlu0 %463
    %vm465 = vcmask 261344
    %466 = vst.msk [vmem:[#allocation0] ss:$8 sm:$0xf] %vm465, %v464
    %s467 = scalar_lea.vmem %s0, 6
    %v468 = vld [vmem:[%s467] sm:$0x1]
    %s469 = scalar_lea.vmem %s0, 37
    %v470 = vld [vmem:[%s469] sm:$0x2]
    %vm471 = vcmask 1041409
    %v472 = vsel %vm471, %v470, %v468
    %s473 = scalar_lea.vmem %s0, 68
    %v474 = vld [vmem:[%s473] sm:$0x4]
    %vm475 = vcmask 1042434
    %v476 = vsel %vm475, %v474, %v472
    %s477 = scalar_lea.vmem %s0, 99
    %v478 = vld [vmem:[%s477] sm:$0x8]
    %vm479 = vcmask 1043459
    %v480 = vsel %vm479, %v478, %v476
    %481 = vrot.lane.b32.xlu0 %v480, 24
    %v482 = vpop.permute.xlu0 %481
    %vm483 = vcmask 228544
    %484 = vst.msk [vmem:[#allocation0] ss:$8 sm:$0xf] %vm483, %v482
    %s485 = scalar_lea.vmem %s0, 5
    %v486 = vld [vmem:[%s485] sm:$0x1]
    %s487 = scalar_lea.vmem %s0, 36
    %v488 = vld [vmem:[%s487] sm:$0x2]
    %vm489 = vcmask 1041409
    %v490 = vsel %vm489, %v488, %v486
    %s491 = scalar_lea.vmem %s0, 67
    %v492 = vld [vmem:[%s491] sm:$0x4]
    %vm493 = vcmask 1042434
    %v494 = vsel %vm493, %v492, %v490
    %s495 = scalar_lea.vmem %s0, 98
    %v496 = vld [vmem:[%s495] sm:$0x8]
    %vm497 = vcmask 1043459
    %v498 = vsel %vm497, %v496, %v494
    %499 = vrot.lane.b32.xlu0 %v498, 20
    %v500 = vpop.permute.xlu0 %499
    %vm501 = vcmask 195744
    %502 = vst.msk [vmem:[#allocation0] ss:$8 sm:$0xf] %vm501, %v500
    %s503 = scalar_lea.vmem %s0, 4
    %v504 = vld [vmem:[%s503] sm:$0x1]
    %s505 = scalar_lea.vmem %s0, 35
    %v506 = vld [vmem:[%s505] sm:$0x2]
    %vm507 = vcmask 1041409
    %v508 = vsel %vm507, %v506, %v504
    %s509 = scalar_lea.vmem %s0, 66
    %v510 = vld [vmem:[%s509] sm:$0x4]
    %vm511 = vcmask 1042434
    %v512 = vsel %vm511, %v510, %v508
    %s513 = scalar_lea.vmem %s0, 97
    %v514 = vld [vmem:[%s513] sm:$0x8]
    %vm515 = vcmask 1043459
    %v516 = vsel %vm515, %v514, %v512
    %517 = vrot.lane.b32.xlu0 %v516, 16
    %v518 = vpop.permute.xlu0 %517
    %vm519 = vcmask 162944
    %520 = vst.msk [vmem:[#allocation0] ss:$8 sm:$0xf] %vm519, %v518
    %s521 = scalar_lea.vmem %s0, 3
    %v522 = vld [vmem:[%s521] sm:$0x1]
    %s523 = scalar_lea.vmem %s0, 34
    %v524 = vld [vmem:[%s523] sm:$0x2]
    %vm525 = vcmask 1041409
    %v526 = vsel %vm525, %v524, %v522
    %s527 = scalar_lea.vmem %s0, 65
    %v528 = vld [vmem:[%s527] sm:$0x4]
    %vm529 = vcmask 1042434
    %v530 = vsel %vm529, %v528, %v526
    %s531 = scalar_lea.vmem %s0, 96
    %v532 = vld [vmem:[%s531] sm:$0x8]
    %vm533 = vcmask 1043459
    %v534 = vsel %vm533, %v532, %v530
    %535 = vrot.lane.b32.xlu0 %v534, 12
    %v536 = vpop.permute.xlu0 %535
    %vm537 = vcmask 130144
    %538 = vst.msk [vmem:[#allocation0] ss:$8 sm:$0xf] %vm537, %v536
    %s539 = scalar_lea.vmem %s0, 2
    %v540 = vld [vmem:[%s539] sm:$0x1]
    %s541 = scalar_lea.vmem %s0, 33
    %v542 = vld [vmem:[%s541] sm:$0x2]
    %vm543 = vcmask 1041409
    %v544 = vsel %vm543, %v542, %v540
    %s545 = scalar_lea.vmem %s0, 64
    %v546 = vld [vmem:[%s545] sm:$0x4]
    %vm547 = vcmask 1042434
    %v548 = vsel %vm547, %v546, %v544
    %s549 = scalar_lea.vmem %s0, 95
    %v550 = vld [vmem:[%s549] sm:$0x8]
    %vm551 = vcmask 1043459
    %v552 = vsel %vm551, %v550, %v548
    %553 = vrot.lane.b32.xlu0 %v552, 8
    %v554 = vpop.permute.xlu0 %553
    %vm555 = vcmask 97344
    %556 = vst.msk [vmem:[#allocation0] ss:$8 sm:$0xf] %vm555, %v554
    %s557 = scalar_lea.vmem %s0, 1
    %v558 = vld [vmem:[%s557] sm:$0x1]
    %s559 = scalar_lea.vmem %s0, 32
    %v560 = vld [vmem:[%s559] sm:$0x2]
    %vm561 = vcmask 1041409
    %v562 = vsel %vm561, %v560, %v558
    %s563 = scalar_lea.vmem %s0, 63
    %v564 = vld [vmem:[%s563] sm:$0x4]
    %vm565 = vcmask 1042434
    %v566 = vsel %vm565, %v564, %v562
    %s567 = scalar_lea.vmem %s0, 94
    %v568 = vld [vmem:[%s567] sm:$0x8]
    %vm569 = vcmask 1043459
    %v570 = vsel %vm569, %v568, %v566
    %571 = vrot.lane.b32.xlu0 %v570, 4
    %v572 = vpop.permute.xlu0 %571
    %vm573 = vcmask 64544
    %574 = vst.msk [vmem:[#allocation0] ss:$8 sm:$0xf] %vm573, %v572
    %s576 = ssub.s32 2, 1
    %v577 = vld [vmem:[#allocation0] sm:%s576]
    %s579 = ssub.s32 2, 1
    %580 = vst [vmem:[%s1] sm:%s579] %v577
    %s581 = scalar_lea.vmem [#allocation0], 8
    %v582 = vld [vmem:[%s581] sm:%s576]
    %s584 = ssub.s32 2, 1
    %s585 = scalar_lea.vmem %s1, 1
    %586 = vst [vmem:[%s585] sm:%s584] %v582
    %s587 = scalar_lea.vmem [#allocation0], 16
    %v588 = vld [vmem:[%s587] sm:%s576]
    %s590 = ssub.s32 2, 1
    %s591 = scalar_lea.vmem %s1, 2
    %592 = vst [vmem:[%s591] sm:%s590] %v588
    %s593 = scalar_lea.vmem [#allocation0], 24
    %v594 = vld [vmem:[%s593] sm:%s576]
    %s596 = ssub.s32 2, 1
    %s597 = scalar_lea.vmem %s1, 3
    %598 = vst [vmem:[%s597] sm:%s596] %v594

// kernel: decoder_forward_pallas.5
$region0: #{decoder_forward_pallas.5}
  #allocation0 [shape = 'u32[]', space=smem, size = 0x4, offset = 0x4, fixed_abs, tag = 'smem constant byte address 0x4 - core index']
  #allocation1 [shape = 'u32[72,128]{1,0:T(1,128)}', space=vmem, size = 0x9000, scoped, tag = 'internal scratch']
  %s0 = inlined_call_operand.vmem [shape: bf16[2,4,6,48], index: 0, kind: input, shape index: {}, may-alias: {0,1,2}]
  %s1 = inlined_call_operand.vmem [shape: bf16[2,4,6,48], index: 1, kind: input, shape index: {}, may-alias: {0,1,2}]
  %s2 = inlined_call_operand.vmem [shape: bf16[2,4,6,48], index: 2, kind: input, shape index: {}, may-alias: {0,1,2}]
  %s3 = inlined_call_operand.vmem [shape: bf16[3,3,48,512], index: 3, kind: input, shape index: {}]
  %s4 = inlined_call_operand.vmem [shape: f32[1,512], index: 4, kind: input, shape index: {}]
  %s5 = inlined_call_operand.vmem [shape: f32[2,2,4,512], index: 5, kind: output, shape index: {}]
  %s6 = sld [smem:[#allocation0]]
  $region53: #{decoder_forward_pallas.5} parent=0
    _
  %s8 = ssub.s32 1, %s6
  %s9 = scalar_select 0, %s8, %s6
  loop: start=0, step=1, limit=6
  $region2: #{decoder_forward_pallas.5} parent=0 // loop_pre_header
    _
  $region3: #{decoder_forward_pallas.5} parent=0 // loop_header
    %s11 = sphi 0, %s15
    %p12 = scmp.ge.s32.totalorder %s11, 6
    %s18 = sphi 0, %s30
    %s19 = sphi 0, %s26
    %s20 = sphi 0, %s18
    %s21 = sphi 0, %s19
    %s22 = sphi 0, %s20
    %s23 = sphi 0, %s21
    %s35 = sphi 0, %s37
    %s38 = sphi 0, %s35
    %s39 = sphi 0, %s38
    %s55 = sphi 0, %s39
    %s65 = sphi 0, %s67
    %s68 = sphi 0, %s65
    %s69 = sphi 0, %s68
    %s85 = sphi 0, %s69
    %s95 = sphi 0, %s97
    %s98 = sphi 0, %s95
    %s99 = sphi 0, %s98
    %s115 = sphi 0, %s99
    %s119 = sphi 0, %s119
    %s121 = sphi 0, %s119
    %s122 = sphi 0, %s121
    %s136 = sphi 0, %s122
    %s140 = sphi 0, %s140
    %s142 = sphi 0, %s140
    %s143 = sphi 0, %s142
    %s157 = sphi 0, %s143
    %s165 = sphi 0, %s167
    %s168 = sphi 0, %s165
    %s169 = sphi 0, %s168
    %s185 = sphi 0, %s169
  $region4: #{decoder_forward_pallas.5} parent=0 // loop_header_branch
    %14 = sbr.rel (%p12) target = $region8
  $region5: #{decoder_forward_pallas.5} parent=0 // loop_body
    %s16 = ssub.s32 %s11, 1
    %s17 = ssub.s32 %s11, 2
    %s24 = sadd.s32 1, %s19
    %p25 = scmp.ge.s32.totalorder %s24, 2
    %s26 = scalar_select %p25, 0, %s24
    %s27 = sadd.s32 1, %s18
    %s28 = scalar_select %p25, %s27, %s18
    %p29 = scmp.ge.s32.totalorder %s28, 2
    %s30 = scalar_select %p29, 0, %s28
    %s31 = ssub.s32 %s18, %s30
    %s32 = ssub.s32 %s19, %s26
    %s33 = sor.u32 %s31, %s32
    %p34 = scmp.eq.s32.totalorder %s33, 0
    %s36 = sadd.s32 %s35, 1
    %s37 = scalar_select %p34, %s35, %s36
    %p40 = pneg %p34
    %p41 = scmp.eq.s32.totalorder %s11, 3
    %p42 = por %p40, %p41
    %p43 = scmp.ne.s32.totalorder %s35, %s38
    %p44 = scmp.eq.s32.totalorder %s11, 0
    %p45 = por %p43, %p44
    %p46 = scmp.ne.s32.totalorder %s35, %s38
    %p47 = scmp.eq.s32.totalorder %s16, 3
    %p48 = por %p46, %p47
    %p49 = scmp.ne.s32.totalorder %s38, %s39
    %p50 = scmp.eq.s32.totalorder %s16, 0
    %p51 = por %p49, %p50
    %p52 = scmp.ne.s32.totalorder %s38, %s39
    %p53 = scmp.eq.s32.totalorder %s17, 3
    %p54 = por %p52, %p53
    %p56 = scmp.ne.s32.totalorder %s39, %s55
    %p57 = scmp.eq.s32.totalorder %s17, 0
    %p58 = por %p56, %p57
    %s59 = sadd.s32 %s19, 1
    %s60 = sadd.s32 %s26, 1
    %s61 = ssub.s32 %s18, %s30
    %s62 = ssub.s32 %s59, %s60
    %s63 = sor.u32 %s61, %s62
    %p64 = scmp.eq.s32.totalorder %s63, 0
    %s66 = sadd.s32 %s65, 1
    %s67 = scalar_select %p64, %s65, %s66
    %p70 = pneg %p64
    %p71 = scmp.eq.s32.totalorder %s11, 3
    %p72 = por %p70, %p71
    %p73 = scmp.ne.s32.totalorder %s65, %s68
    %p74 = scmp.eq.s32.totalorder %s11, 0
    %p75 = por %p73, %p74
    %p76 = scmp.ne.s32.totalorder %s65, %s68
    %p77 = scmp.eq.s32.totalorder %s16, 3
    %p78 = por %p76, %p77
    %p79 = scmp.ne.s32.totalorder %s68, %s69
    %p80 = scmp.eq.s32.totalorder %s16, 0
    %p81 = por %p79, %p80
    %p82 = scmp.ne.s32.totalorder %s68, %s69
    %p83 = scmp.eq.s32.totalorder %s17, 3
    %p84 = por %p82, %p83
    %p86 = scmp.ne.s32.totalorder %s69, %s85
    %p87 = scmp.eq.s32.totalorder %s17, 0
    %p88 = por %p86, %p87
    %s89 = sadd.s32 %s19, 2
    %s90 = sadd.s32 %s26, 2
    %s91 = ssub.s32 %s18, %s30
    %s92 = ssub.s32 %s89, %s90
    %s93 = sor.u32 %s91, %s92
    %p94 = scmp.eq.s32.totalorder %s93, 0
    %s96 = sadd.s32 %s95, 1
    %s97 = scalar_select %p94, %s95, %s96
    %p100 = pneg %p94
    %p101 = scmp.eq.s32.totalorder %s11, 3
    %p102 = por %p100, %p101
    %p103 = scmp.ne.s32.totalorder %s95, %s98
    %p104 = scmp.eq.s32.totalorder %s11, 0
    %p105 = por %p103, %p104
    %p106 = scmp.ne.s32.totalorder %s95, %s98
    %p107 = scmp.eq.s32.totalorder %s16, 3
    %p108 = por %p106, %p107
    %p109 = scmp.ne.s32.totalorder %s98, %s99
    %p110 = scmp.eq.s32.totalorder %s16, 0
    %p111 = por %p109, %p110
    %p112 = scmp.ne.s32.totalorder %s98, %s99
    %p113 = scmp.eq.s32.totalorder %s17, 3
    %p114 = por %p112, %p113
    %p116 = scmp.ne.s32.totalorder %s99, %s115
    %p117 = scmp.eq.s32.totalorder %s17, 0
    %p118 = por %p116, %p117
    %s120 = sadd.s32 %s119, 1
    %p123 = scmp.eq.s32.totalorder %s11, 3
    %p124 = scmp.ne.s32.totalorder %s119, %s121
    %p125 = scmp.eq.s32.totalorder %s11, 0
    %p126 = por %p124, %p125
    %p127 = scmp.ne.s32.totalorder %s119, %s121
    %p128 = scmp.eq.s32.totalorder %s16, 3
    %p129 = por %p127, %p128
    %p130 = scmp.ne.s32.totalorder %s121, %s122
    %p131 = scmp.eq.s32.totalorder %s16, 0
    %p132 = por %p130, %p131
    %p133 = scmp.ne.s32.totalorder %s121, %s122
    %p134 = scmp.eq.s32.totalorder %s17, 3
    %p135 = por %p133, %p134
    %p137 = scmp.ne.s32.totalorder %s122, %s136
    %p138 = scmp.eq.s32.totalorder %s17, 0
    %p139 = por %p137, %p138
    %s141 = sadd.s32 %s140, 1
    %p144 = scmp.eq.s32.totalorder %s11, 3
    %p145 = scmp.ne.s32.totalorder %s140, %s142
    %p146 = scmp.eq.s32.totalorder %s11, 0
    %p147 = por %p145, %p146
    %p148 = scmp.ne.s32.totalorder %s140, %s142
    %p149 = scmp.eq.s32.totalorder %s16, 3
    %p150 = por %p148, %p149
    %p151 = scmp.ne.s32.totalorder %s142, %s143
    %p152 = scmp.eq.s32.totalorder %s16, 0
    %p153 = por %p151, %p152
    %p154 = scmp.ne.s32.totalorder %s142, %s143
    %p155 = scmp.eq.s32.totalorder %s17, 3
    %p156 = por %p154, %p155
    %p158 = scmp.ne.s32.totalorder %s143, %s157
    %p159 = scmp.eq.s32.totalorder %s17, 0
    %p160 = por %p158, %p159
    %s161 = ssub.s32 %s18, %s30
    %s162 = ssub.s32 %s19, %s26
    %s163 = sor.u32 %s161, %s162
    %p164 = scmp.eq.s32.totalorder %s163, 0
    %s166 = sadd.s32 %s165, 1
    %s167 = scalar_select %p164, %s165, %s166
    %p170 = pneg %p164
    %p171 = scmp.eq.s32.totalorder %s11, 3
    %p172 = por %p170, %p171
    %p173 = scmp.ne.s32.totalorder %s165, %s168
    %p174 = scmp.eq.s32.totalorder %s11, 0
    %p175 = por %p173, %p174
    %p176 = scmp.ne.s32.totalorder %s165, %s168
    %p177 = scmp.eq.s32.totalorder %s16, 3
    %p178 = por %p176, %p177
    %p179 = scmp.ne.s32.totalorder %s168, %s169
    %p180 = scmp.eq.s32.totalorder %s16, 0
    %p181 = por %p179, %p180
    %p182 = scmp.ne.s32.totalorder %s168, %s169
    %p183 = scmp.eq.s32.totalorder %s17, 3
    %p184 = por %p182, %p183
    %p186 = scmp.ne.s32.totalorder %s169, %s185
    %p187 = scmp.eq.s32.totalorder %s17, 0
    %p188 = por %p186, %p187
    %p189 = scmp.le.s32.totalorder 1, %s11
    %p190 = scmp.lt.s32.totalorder %s11, 5
    %p191 = pnand %p189, %p190
    %p192 = pneg %p191
    // Predicated region
    $region9: #{decoder_forward_pallas.5} parent=5 // pred_check
      _
    $region10: #{decoder_forward_pallas.5} parent=5 // pred_check_branch
      %194 = sbr.rel (%p191) target = $region12
    $region11: #{decoder_forward_pallas.5} parent=5 // pred_region
      %s195 = ssub.s32 %s11, 1
      // Predicated region
      $region13: #{decoder_forward_pallas.5} parent=11 // pred_check
        %p196 = pneg %p132
      $region14: #{decoder_forward_pallas.5} parent=11 // pred_check_branch
        %198 = sbr.rel (%p196) target = $region16
      $region15: #{decoder_forward_pallas.5} parent=11 // pred_region
        _
      $region16: #{decoder_forward_pallas.5} parent=11 // pred_fallthru
        _
      // Predicated region
      $region17: #{decoder_forward_pallas.5} parent=11 // pred_check
        %p199 = pneg %p153
      $region18: #{decoder_forward_pallas.5} parent=11 // pred_check_branch
        %201 = sbr.rel (%p199) target = $region20
      $region19: #{decoder_forward_pallas.5} parent=11 // pred_region
        _
      $region20: #{decoder_forward_pallas.5} parent=11 // pred_fallthru
        _
    $region12: #{decoder_forward_pallas.5} parent=5 // pred_fallthru
      _
    %p202 = scmp.lt.s32.totalorder %s11, 4
    // Predicated region
    $region21: #{decoder_forward_pallas.5} parent=5 // pred_check
      %p203 = pneg %p202
    $region22: #{decoder_forward_pallas.5} parent=5 // pred_check_branch
      %205 = sbr.rel (%p203) target = $region24
    $region23: #{decoder_forward_pallas.5} parent=5 // pred_region
      // Predicated region
      $region25: #{decoder_forward_pallas.5} parent=23 // pred_check
        %p206 = pneg %p45
      $region26: #{decoder_forward_pallas.5} parent=23 // pred_check_branch
        %208 = sbr.rel (%p206) target = $region28
      $region27: #{decoder_forward_pallas.5} parent=23 // pred_region
        %p209 = scmp.lt.s32.totalorder %s18, 1
        %s210 = scalar_select %p209, %s18, 1
        %p211 = scmp.lt.s32.totalorder %s19, 3
        %s212 = scalar_select %p211, %s19, 3
        %s213 = smul.addr %s210, 4
        %s214 = sadd.s32 %s212, %s213
        %s215 = smul.addr %s214, 4
        %s216 = scalar_lea.vmem %s0, %s215
      $region28: #{decoder_forward_pallas.5} parent=23 // pred_fallthru
        _
      // Predicated region
      $region29: #{decoder_forward_pallas.5} parent=23 // pred_check
        %p217 = pneg %p75
      $region30: #{decoder_forward_pallas.5} parent=23 // pred_check_branch
        %219 = sbr.rel (%p217) target = $region32
      $region31: #{decoder_forward_pallas.5} parent=23 // pred_region
        %s220 = sadd.s32 %s19, 1
        %p221 = scmp.lt.s32.totalorder %s18, 1
        %s222 = scalar_select %p221, %s18, 1
        %p223 = scmp.lt.s32.totalorder %s220, 3
        %s224 = scalar_select %p223, %s220, 3
        %s225 = smul.addr %s222, 4
        %s226 = sadd.s32 %s224, %s225
        %s227 = smul.addr %s226, 4
        %s228 = scalar_lea.vmem %s1, %s227
        %s229 = sadd.s32 %s19, 1
      $region32: #{decoder_forward_pallas.5} parent=23 // pred_fallthru
        _
      // Predicated region
      $region33: #{decoder_forward_pallas.5} parent=23 // pred_check
        %p230 = pneg %p105
      $region34: #{decoder_forward_pallas.5} parent=23 // pred_check_branch
        %232 = sbr.rel (%p230) target = $region36
      $region35: #{decoder_forward_pallas.5} parent=23 // pred_region
        %s233 = sadd.s32 %s19, 2
        %p234 = scmp.lt.s32.totalorder %s18, 1
        %s235 = scalar_select %p234, %s18, 1
        %p236 = scmp.lt.s32.totalorder %s233, 3
        %s237 = scalar_select %p236, %s233, 3
        %s238 = smul.addr %s235, 4
        %s239 = sadd.s32 %s237, %s238
        %s240 = smul.addr %s239, 4
        %s241 = scalar_lea.vmem %s2, %s240
        %s242 = sadd.s32 %s19, 2
      $region36: #{decoder_forward_pallas.5} parent=23 // pred_fallthru
        _
    $region24: #{decoder_forward_pallas.5} parent=5 // pred_fallthru
      _
    %p243 = scmp.le.s32.totalorder 1, %s11
    %p244 = scmp.lt.s32.totalorder %s11, 5
    %p245 = pnand %p243, %p244
    %p246 = pneg %p245
    // Predicated region
    $region37: #{decoder_forward_pallas.5} parent=5 // pred_check
      _
    $region38: #{decoder_forward_pallas.5} parent=5 // pred_check_branch
      %248 = sbr.rel (%p245) target = $region40
    $region39: #{decoder_forward_pallas.5} parent=5 // pred_region
      %s249 = ssub.s32 %s11, 1
      %p250 = scmp.lt.s32.totalorder %s20, 1
      %s251 = scalar_select %p250, %s20, 1
      %p252 = scmp.lt.s32.totalorder %s21, 3
      %s253 = scalar_select %p252, %s21, 3
      %s254 = smul.addr %s251, 4
      %s255 = sadd.s32 %s253, %s254
      %s256 = smul.addr %s255, 4
      %s257 = scalar_lea.vmem %s0, %s256
      %p258 = pneg %p51
      %p259 = pneg %p48
      %s260 = sadd.s32 %s21, 1
      %p261 = scmp.lt.s32.totalorder %s20, 1
      %s262 = scalar_select %p261, %s20, 1
      %p263 = scmp.lt.s32.totalorder %s260, 3
      %s264 = scalar_select %p263, %s260, 3
      %s265 = smul.addr %s262, 4
      %s266 = sadd.s32 %s264, %s265
      %s267 = smul.addr %s266, 4
      %s268 = scalar_lea.vmem %s1, %s267
      %p269 = pneg %p81
      %p270 = pneg %p78
      %s271 = sadd.s32 %s21, 2
      %p272 = scmp.lt.s32.totalorder %s20, 1
      %s273 = scalar_select %p272, %s20, 1
      %p274 = scmp.lt.s32.totalorder %s271, 3
      %s275 = scalar_select %p274, %s271, 3
      %s276 = smul.addr %s273, 4
      %s277 = sadd.s32 %s275, %s276
      %s278 = smul.addr %s277, 4
      %s279 = scalar_lea.vmem %s2, %s278
      %p280 = pneg %p111
      %p281 = pneg %p108
      %p282 = pneg %p132
      %p283 = pneg %p129
      %p284 = pneg %p153
      %p285 = pneg %p150
      %p286 = pneg %p181
      %p287 = pneg %p178
      %p288 = scmp.lt.s32.totalorder %s20, 1
      %s289 = scalar_select %p288, %s20, 1
      %p290 = scmp.lt.s32.totalorder %s21, 1
      %s291 = scalar_select %p290, %s21, 1
      %s292 = smul.addr %s291, 4
      %s293 = smul.addr %s289, 8
      %s294 = sadd.s32 %s292, %s293
      %s295 = smul.addr %s294, 4
      %s296 = scalar_lea.vmem %s5, %s295
      %p297 = scmp.lt.s32.totalorder %s20, 1
      %s298 = scalar_select %p297, %s20, 1
      %p299 = scmp.lt.s32.totalorder %s21, 3
      %s300 = scalar_select %p299, %s21, 3
      %s301 = smul.addr %s298, 4
      %s302 = sadd.s32 %s300, %s301
      %s303 = smul.addr %s302, 4
      %s304 = scalar_lea.vmem %s0, %s303
      %s305 = sadd.s32 %s21, 1
      %p306 = scmp.lt.s32.totalorder %s20, 1
      %s307 = scalar_select %p306, %s20, 1
      %p308 = scmp.lt.s32.totalorder %s305, 3
      %s309 = scalar_select %p308, %s305, 3
      %s310 = smul.addr %s307, 4
      %s311 = sadd.s32 %s309, %s310
      %s312 = smul.addr %s311, 4
      %s313 = scalar_lea.vmem %s1, %s312
      %s314 = sadd.s32 %s21, 1
      %s315 = sadd.s32 %s21, 2
      %p316 = scmp.lt.s32.totalorder %s20, 1
      %s317 = scalar_select %p316, %s20, 1
      %p318 = scmp.lt.s32.totalorder %s315, 3
      %s319 = scalar_select %p318, %s315, 3
      %s320 = smul.addr %s317, 4
      %s321 = sadd.s32 %s319, %s320
      %s322 = smul.addr %s321, 4
      %s323 = scalar_lea.vmem %s2, %s322
      %s324 = sadd.s32 %s21, 2
      %p325 = scmp.lt.s32.totalorder %s20, 1
      %s326 = scalar_select %p325, %s20, 1
      %p327 = scmp.lt.s32.totalorder %s21, 1
      %s328 = scalar_select %p327, %s21, 1
      %s329 = smul.addr %s328, 4
      %s330 = smul.addr %s326, 8
      %s331 = sadd.s32 %s329, %s330
      %s332 = smul.addr %s331, 4
      %s333 = scalar_lea.vmem %s5, %s332
      %v335 = vld [vmem:[%s304] sm:$0x7]
      %v336 = vunpack.c.l.bf16 %v335
      %v337 = vpack.c.bf16 %v336, %v336
      %v338 = vld [vmem:[%s3] sm:$0xff]
      %v339 = vld [vmem:[%s3 + $0x8] sm:$0xff]
      %v340 = vld [vmem:[%s3 + $0x10] sm:$0xff]
      %v341 = vld [vmem:[%s3 + $0x18] sm:$0xff]
      %v342 = vld [vmem:[%s3 + $0x20] sm:$0xff]
      %v343 = vld [vmem:[%s3 + $0x28] sm:$0xff]
      %v344 = vld [vmem:[%s3 + $0x30] sm:$0xff]
      %v345 = vld [vmem:[%s3 + $0x38] sm:$0xff]
      %v346 = vld [vmem:[%s3 + $0x40] sm:$0xff]
      %v347 = vld [vmem:[%s3 + $0x48] sm:$0xff]
      %v348 = vld [vmem:[%s3 + $0x50] sm:$0xff]
      %v349 = vld [vmem:[%s3 + $0x58] sm:$0xff]
      %s350 = scalar_lea.vmem %s3, 96
      %v351 = vld [vmem:[%s350] sm:$0xff]
      %v352 = vld [vmem:[%s350 + $0x8] sm:$0xff]
      %v353 = vld [vmem:[%s350 + $0x10] sm:$0xff]
      %v354 = vld [vmem:[%s350 + $0x18] sm:$0xff]
      %v355 = vld [vmem:[%s350 + $0x20] sm:$0xff]
      %v356 = vld [vmem:[%s350 + $0x28] sm:$0xff]
      %v357 = vld [vmem:[%s350 + $0x30] sm:$0xff]
      %v358 = vld [vmem:[%s350 + $0x38] sm:$0xff]
      %v359 = vld [vmem:[%s350 + $0x40] sm:$0xff]
      %v360 = vld [vmem:[%s350 + $0x48] sm:$0xff]
      %v361 = vld [vmem:[%s350 + $0x50] sm:$0xff]
      %v362 = vld [vmem:[%s350 + $0x58] sm:$0xff]
      %v364 = vshrl.u32 %v337, 16
      %v366 = vshll.u32 %v337, 16
      %v368 = vrot.slane %v366, 1
      %v369 = vor.u32 %v364, %v368
      %v382 = vunpack.c.l.b16 %v351
      %v383 = vunpack.c.h.b16 %v351
      %v384 = vunpack.c.l.b16 %v352
      %v385 = vunpack.c.h.b16 %v352
      %v386 = vunpack.c.l.b16 %v353
      %v387 = vunpack.c.h.b16 %v353
      %v388 = vunpack.c.l.b16 %v354
      %v389 = vunpack.c.h.b16 %v354
      %v390 = vunpack.c.l.b16 %v355
      %v391 = vunpack.c.h.b16 %v355
      %v392 = vunpack.c.l.b16 %v356
      %v393 = vunpack.c.h.b16 %v356
      %v394 = vunpack.c.l.b16 %v357
      %v395 = vunpack.c.h.b16 %v357
      %v396 = vunpack.c.l.b16 %v358
      %v397 = vunpack.c.h.b16 %v358
      %v398 = vunpack.c.l.b16 %v359
      %v399 = vunpack.c.h.b16 %v359
      %v400 = vunpack.c.l.b16 %v360
      %v401 = vunpack.c.h.b16 %v360
      %v402 = vunpack.c.l.b16 %v361
      %v403 = vunpack.c.h.b16 %v361
      %v404 = vunpack.c.l.b16 %v362
      %v405 = vunpack.c.h.b16 %v362
      %v406 = vpack.c.b16 %v386, %v382
      %v407 = vpack.c.b16 %v387, %v383
      %v408 = vpack.c.b16 %v388, %v384
      %v409 = vpack.c.b16 %v389, %v385
      %v410 = vpack.c.b16 %v394, %v390
      %v411 = vpack.c.b16 %v395, %v391
      %v412 = vpack.c.b16 %v396, %v392
      %v413 = vpack.c.b16 %v397, %v393
      %v414 = vpack.c.b16 %v402, %v398
      %v415 = vpack.c.b16 %v403, %v399
      %v416 = vpack.c.b16 %v404, %v400
      %v417 = vpack.c.b16 %v405, %v401
      %vm430 = vcmask 392192
      %v432 = vsel %vm430, %v369, 0
      %434 = vmatpush.bf16.msra.mxu0 0
      %435 = vmatpush.bf16.msra.mxu0 0
      %436 = vmatpush.bf16.msra.mxu0 0
      %437 = vmatpush.bf16.msra.mxu0 0
      %438 = vmatpush.bf16.msra.mxu0 0
      %439 = vmatpush.bf16.msra.mxu0 %v414
      %440 = vmatpush.bf16.msra.mxu0 %v410
      %441 = vmatpush.bf16.msra.mxu0 %v406
      %442 = vmatmul.bf16.gmra.mxu0 %v432
      %v443 = vpop.f32.mrf.mxu0
      %v444 = vadd.f32 0.0, %v443
      %v445 = vpop.f32.mrf.mxu0
      %446 = vdwg.mxu0
      %447 = vmatpush.bf16.msra.mxu0 0
      %448 = vmatpush.bf16.msra.mxu0 0
      %449 = vmatpush.bf16.msra.mxu0 0
      %450 = vmatpush.bf16.msra.mxu0 0
      %451 = vmatpush.bf16.msra.mxu0 0
      %452 = vmatpush.bf16.msra.mxu0 %v415
      %453 = vmatpush.bf16.msra.mxu0 %v411
      %454 = vmatpush.bf16.msra.mxu0 %v407
      %455 = vmatmul.bf16.gmra.mxu0 %v432
      %v456 = vpop.f32.mrf.mxu0
      %v457 = vadd.f32 0.0, %v456
      %v458 = vpop.f32.mrf.mxu0
      %459 = vdwg.mxu0
      %460 = vmatpush.bf16.msra.mxu0 0
      %461 = vmatpush.bf16.msra.mxu0 0
      %462 = vmatpush.bf16.msra.mxu0 0
      %463 = vmatpush.bf16.msra.mxu0 0
      %464 = vmatpush.bf16.msra.mxu0 0
      %465 = vmatpush.bf16.msra.mxu0 %v416
      %466 = vmatpush.bf16.msra.mxu0 %v412
      %467 = vmatpush.bf16.msra.mxu0 %v408
      %468 = vmatmul.bf16.gmra.mxu0 %v432
      %v469 = vpop.f32.mrf.mxu0
      %v470 = vadd.f32 0.0, %v469
      %v471 = vpop.f32.mrf.mxu0
      %472 = vdwg.mxu0
      %473 = vmatpush.bf16.msra.mxu0 0
      %474 = vmatpush.bf16.msra.mxu0 0
      %475 = vmatpush.bf16.msra.mxu0 0
      %476 = vmatpush.bf16.msra.mxu0 0
      %477 = vmatpush.bf16.msra.mxu0 0
      %478 = vmatpush.bf16.msra.mxu0 %v417
      %479 = vmatpush.bf16.msra.mxu0 %v413
      %480 = vmatpush.bf16.msra.mxu0 %v409
      %481 = vmatmul.bf16.gmra.mxu0 %v432
      %v482 = vpop.f32.mrf.mxu0
      %v483 = vadd.f32 0.0, %v482
      %v484 = vpop.f32.mrf.mxu0
      %485 = vdwg.mxu0
      %v498 = vunpack.c.l.b16 %v338
      %v499 = vunpack.c.h.b16 %v338
      %v500 = vunpack.c.l.b16 %v339
      %v501 = vunpack.c.h.b16 %v339
      %v502 = vunpack.c.l.b16 %v340
      %v503 = vunpack.c.h.b16 %v340
      %v504 = vunpack.c.l.b16 %v341
      %v505 = vunpack.c.h.b16 %v341
      %v506 = vunpack.c.l.b16 %v342
      %v507 = vunpack.c.h.b16 %v342
      %v508 = vunpack.c.l.b16 %v343
      %v509 = vunpack.c.h.b16 %v343
      %v510 = vunpack.c.l.b16 %v344
      %v511 = vunpack.c.h.b16 %v344
      %v512 = vunpack.c.l.b16 %v345
      %v513 = vunpack.c.h.b16 %v345
      %v514 = vunpack.c.l.b16 %v346
      %v515 = vunpack.c.h.b16 %v346
      %v516 = vunpack.c.l.b16 %v347
      %v517 = vunpack.c.h.b16 %v347
      %v518 = vunpack.c.l.b16 %v348
      %v519 = vunpack.c.h.b16 %v348
      %v520 = vunpack.c.l.b16 %v349
      %v521 = vunpack.c.h.b16 %v349
      %v522 = vpack.c.b16 %v502, %v498
      %v523 = vpack.c.b16 %v503, %v499
      %v524 = vpack.c.b16 %v504, %v500
      %v525 = vpack.c.b16 %v505, %v501
      %v526 = vpack.c.b16 %v510, %v506
      %v527 = vpack.c.b16 %v511, %v507
      %v528 = vpack.c.b16 %v512, %v508
      %v529 = vpack.c.b16 %v513, %v509
      %v530 = vpack.c.b16 %v518, %v514
      %v531 = vpack.c.b16 %v519, %v515
      %v532 = vpack.c.b16 %v520, %v516
      %v533 = vpack.c.b16 %v521, %v517
      %v546 = vsel %vm430, %v337, 0
      %548 = vmatpush.bf16.msra.mxu0 0
      %549 = vmatpush.bf16.msra.mxu0 0
      %550 = vmatpush.bf16.msra.mxu0 0
      %551 = vmatpush.bf16.msra.mxu0 0
      %552 = vmatpush.bf16.msra.mxu0 0
      %553 = vmatpush.bf16.msra.mxu0 %v530
      %554 = vmatpush.bf16.msra.mxu0 %v526
      %555 = vmatpush.bf16.msra.mxu0 %v522
      %556 = vmatmul.bf16.gmra.mxu0 %v546
      %v557 = vpop.f32.mrf.mxu0
      %v558 = vadd.f32 %v444, %v557
      %v559 = vpop.f32.mrf.mxu0
      %560 = vdwg.mxu0
      %561 = vmatpush.bf16.msra.mxu0 0
      %562 = vmatpush.bf16.msra.mxu0 0
      %563 = vmatpush.bf16.msra.mxu0 0
      %564 = vmatpush.bf16.msra.mxu0 0
      %565 = vmatpush.bf16.msra.mxu0 0
      %566 = vmatpush.bf16.msra.mxu0 %v531
      %567 = vmatpush.bf16.msra.mxu0 %v527
      %568 = vmatpush.bf16.msra.mxu0 %v523
      %569 = vmatmul.bf16.gmra.mxu0 %v546
      %v570 = vpop.f32.mrf.mxu0
      %v571 = vadd.f32 %v457, %v570
      %v572 = vpop.f32.mrf.mxu0
      %573 = vdwg.mxu0
      %574 = vmatpush.bf16.msra.mxu0 0
      %575 = vmatpush.bf16.msra.mxu0 0
      %576 = vmatpush.bf16.msra.mxu0 0
      %577 = vmatpush.bf16.msra.mxu0 0
      %578 = vmatpush.bf16.msra.mxu0 0
      %579 = vmatpush.bf16.msra.mxu0 %v532
      %580 = vmatpush.bf16.msra.mxu0 %v528
      %581 = vmatpush.bf16.msra.mxu0 %v524
      %582 = vmatmul.bf16.gmra.mxu0 %v546
      %v583 = vpop.f32.mrf.mxu0
      %v584 = vadd.f32 %v470, %v583
      %v585 = vpop.f32.mrf.mxu0
      %586 = vdwg.mxu0
      %587 = vmatpush.bf16.msra.mxu0 0
      %588 = vmatpush.bf16.msra.mxu0 0
      %589 = vmatpush.bf16.msra.mxu0 0
      %590 = vmatpush.bf16.msra.mxu0 0
      %591 = vmatpush.bf16.msra.mxu0 0
      %592 = vmatpush.bf16.msra.mxu0 %v533
      %593 = vmatpush.bf16.msra.mxu0 %v529
      %594 = vmatpush.bf16.msra.mxu0 %v525
      %595 = vmatmul.bf16.gmra.mxu0 %v546
      %v596 = vpop.f32.mrf.mxu0
      %v597 = vadd.f32 %v483, %v596
      %v598 = vpop.f32.mrf.mxu0
      %599 = vdwg.mxu0
      %s600 = scalar_lea.vmem %s3, 192
      %v601 = vld [vmem:[%s600] sm:$0xff]
      %v602 = vld [vmem:[%s600 + $0x8] sm:$0xff]
      %v603 = vld [vmem:[%s600 + $0x10] sm:$0xff]
      %v604 = vld [vmem:[%s600 + $0x18] sm:$0xff]
      %v605 = vld [vmem:[%s600 + $0x20] sm:$0xff]
      %v606 = vld [vmem:[%s600 + $0x28] sm:$0xff]
      %v607 = vld [vmem:[%s600 + $0x30] sm:$0xff]
      %v608 = vld [vmem:[%s600 + $0x38] sm:$0xff]
      %v609 = vld [vmem:[%s600 + $0x40] sm:$0xff]
      %v610 = vld [vmem:[%s600 + $0x48] sm:$0xff]
      %v611 = vld [vmem:[%s600 + $0x50] sm:$0xff]
      %v612 = vld [vmem:[%s600 + $0x58] sm:$0xff]
      %v614 = vrot.slane %v337, 1
      %v627 = vunpack.c.l.b16 %v601
      %v628 = vunpack.c.h.b16 %v601
      %v629 = vunpack.c.l.b16 %v602
      %v630 = vunpack.c.h.b16 %v602
      %v631 = vunpack.c.l.b16 %v603
      %v632 = vunpack.c.h.b16 %v603
      %v633 = vunpack.c.l.b16 %v604
      %v634 = vunpack.c.h.b16 %v604
      %v635 = vunpack.c.l.b16 %v605
      %v636 = vunpack.c.h.b16 %v605
      %v637 = vunpack.c.l.b16 %v606
      %v638 = vunpack.c.h.b16 %v606
      %v639 = vunpack.c.l.b16 %v607
      %v640 = vunpack.c.h.b16 %v607
      %v641 = vunpack.c.l.b16 %v608
      %v642 = vunpack.c.h.b16 %v608
      %v643 = vunpack.c.l.b16 %v609
      %v644 = vunpack.c.h.b16 %v609
      %v645 = vunpack.c.l.b16 %v610
      %v646 = vunpack.c.h.b16 %v610
      %v647 = vunpack.c.l.b16 %v611
      %v648 = vunpack.c.h.b16 %v611
      %v649 = vunpack.c.l.b16 %v612
      %v650 = vunpack.c.h.b16 %v612
      %v651 = vpack.c.b16 %v631, %v627
      %v652 = vpack.c.b16 %v632, %v628
      %v653 = vpack.c.b16 %v633, %v629
      %v654 = vpack.c.b16 %v634, %v630
      %v655 = vpack.c.b16 %v639, %v635
      %v656 = vpack.c.b16 %v640, %v636
      %v657 = vpack.c.b16 %v641, %v637
      %v658 = vpack.c.b16 %v642, %v638
      %v659 = vpack.c.b16 %v647, %v643
      %v660 = vpack.c.b16 %v648, %v644
      %v661 = vpack.c.b16 %v649, %v645
      %v662 = vpack.c.b16 %v650, %v646
      %v676 = vsel %vm430, %v614, 0
      %678 = vmatpush.bf16.msra.mxu0 0
      %679 = vmatpush.bf16.msra.mxu0 0
      %680 = vmatpush.bf16.msra.mxu0 0
      %681 = vmatpush.bf16.msra.mxu0 0
      %682 = vmatpush.bf16.msra.mxu0 0
      %683 = vmatpush.bf16.msra.mxu0 %v659
      %684 = vmatpush.bf16.msra.mxu0 %v655
      %685 = vmatpush.bf16.msra.mxu0 %v651
      %686 = vmatmul.bf16.gmra.mxu0 %v676
      %v687 = vpop.f32.mrf.mxu0
      %v688 = vadd.f32 0.0, %v687
      %v689 = vpop.f32.mrf.mxu0
      %690 = vdwg.mxu0
      %691 = vmatpush.bf16.msra.mxu0 0
      %692 = vmatpush.bf16.msra.mxu0 0
      %693 = vmatpush.bf16.msra.mxu0 0
      %694 = vmatpush.bf16.msra.mxu0 0
      %695 = vmatpush.bf16.msra.mxu0 0
      %696 = vmatpush.bf16.msra.mxu0 %v660
      %697 = vmatpush.bf16.msra.mxu0 %v656
      %698 = vmatpush.bf16.msra.mxu0 %v652
      %699 = vmatmul.bf16.gmra.mxu0 %v676
      %v700 = vpop.f32.mrf.mxu0
      %v701 = vadd.f32 0.0, %v700
      %v702 = vpop.f32.mrf.mxu0
      %703 = vdwg.mxu0
      %704 = vmatpush.bf16.msra.mxu0 0
      %705 = vmatpush.bf16.msra.mxu0 0
      %706 = vmatpush.bf16.msra.mxu0 0
      %707 = vmatpush.bf16.msra.mxu0 0
      %708 = vmatpush.bf16.msra.mxu0 0
      %709 = vmatpush.bf16.msra.mxu0 %v661
      %710 = vmatpush.bf16.msra.mxu0 %v657
      %711 = vmatpush.bf16.msra.mxu0 %v653
      %712 = vmatmul.bf16.gmra.mxu0 %v676
      %v713 = vpop.f32.mrf.mxu0
      %v714 = vadd.f32 0.0, %v713
      %v715 = vpop.f32.mrf.mxu0
      %716 = vdwg.mxu0
      %717 = vmatpush.bf16.msra.mxu0 0
      %718 = vmatpush.bf16.msra.mxu0 0
      %719 = vmatpush.bf16.msra.mxu0 0
      %720 = vmatpush.bf16.msra.mxu0 0
      %721 = vmatpush.bf16.msra.mxu0 0
      %722 = vmatpush.bf16.msra.mxu0 %v662
      %723 = vmatpush.bf16.msra.mxu0 %v658
      %724 = vmatpush.bf16.msra.mxu0 %v654
      %725 = vmatmul.bf16.gmra.mxu0 %v676
      %v726 = vpop.f32.mrf.mxu0
      %v727 = vadd.f32 0.0, %v726
      %v728 = vpop.f32.mrf.mxu0
      %729 = vdwg.mxu0
      %v730 = vadd.f32 %v558, %v688
      %v731 = vadd.f32 %v571, %v701
      %v732 = vadd.f32 %v584, %v714
      %v733 = vadd.f32 %v597, %v727
      %v734 = vld [vmem:[%s313] sm:$0x7]
      %v735 = vunpack.c.l.bf16 %v734
      %v736 = vpack.c.bf16 %v735, %v735
      %s737 = scalar_lea.vmem %s3, 288
      %v738 = vld [vmem:[%s737] sm:$0xff]
      %v739 = vld [vmem:[%s737 + $0x8] sm:$0xff]
      %v740 = vld [vmem:[%s737 + $0x10] sm:$0xff]
      %v741 = vld [vmem:[%s737 + $0x18] sm:$0xff]
      %v742 = vld [vmem:[%s737 + $0x20] sm:$0xff]
      %v743 = vld [vmem:[%s737 + $0x28] sm:$0xff]
      %v744 = vld [vmem:[%s737 + $0x30] sm:$0xff]
      %v745 = vld [vmem:[%s737 + $0x38] sm:$0xff]
      %v746 = vld [vmem:[%s737 + $0x40] sm:$0xff]
      %v747 = vld [vmem:[%s737 + $0x48] sm:$0xff]
      %v748 = vld [vmem:[%s737 + $0x50] sm:$0xff]
      %v749 = vld [vmem:[%s737 + $0x58] sm:$0xff]
      %v762 = vunpack.c.l.b16 %v738
      %v763 = vunpack.c.h.b16 %v738
      %v764 = vunpack.c.l.b16 %v739
      %v765 = vunpack.c.h.b16 %v739
      %v766 = vunpack.c.l.b16 %v740
      %v767 = vunpack.c.h.b16 %v740
      %v768 = vunpack.c.l.b16 %v741
      %v769 = vunpack.c.h.b16 %v741
      %v770 = vunpack.c.l.b16 %v742
      %v771 = vunpack.c.h.b16 %v742
      %v772 = vunpack.c.l.b16 %v743
      %v773 = vunpack.c.h.b16 %v743
      %v774 = vunpack.c.l.b16 %v744
      %v775 = vunpack.c.h.b16 %v744
      %v776 = vunpack.c.l.b16 %v745
      %v777 = vunpack.c.h.b16 %v745
      %v778 = vunpack.c.l.b16 %v746
      %v779 = vunpack.c.h.b16 %v746
      %v780 = vunpack.c.l.b16 %v747
      %v781 = vunpack.c.h.b16 %v747
      %v782 = vunpack.c.l.b16 %v748
      %v783 = vunpack.c.h.b16 %v748
      %v784 = vunpack.c.l.b16 %v749
      %v785 = vunpack.c.h.b16 %v749
      %v786 = vpack.c.b16 %v766, %v762
      %v787 = vpack.c.b16 %v767, %v763
      %v788 = vpack.c.b16 %v768, %v764
      %v789 = vpack.c.b16 %v769, %v765
      %v790 = vpack.c.b16 %v774, %v770
      %v791 = vpack.c.b16 %v775, %v771
      %v792 = vpack.c.b16 %v776, %v772
      %v793 = vpack.c.b16 %v777, %v773
      %v794 = vpack.c.b16 %v782, %v778
      %v795 = vpack.c.b16 %v783, %v779
      %v796 = vpack.c.b16 %v784, %v780
      %v797 = vpack.c.b16 %v785, %v781
      %v811 = vsel %vm430, %v736, 0
      %813 = vmatpush.bf16.msra.mxu0 0
      %814 = vmatpush.bf16.msra.mxu0 0
      %815 = vmatpush.bf16.msra.mxu0 0
      %816 = vmatpush.bf16.msra.mxu0 0
      %817 = vmatpush.bf16.msra.mxu0 0
      %818 = vmatpush.bf16.msra.mxu0 %v794
      %819 = vmatpush.bf16.msra.mxu0 %v790
      %820 = vmatpush.bf16.msra.mxu0 %v786
      %821 = vmatmul.bf16.gmra.mxu0 %v811
      %v822 = vpop.f32.mrf.mxu0
      %v823 = vadd.f32 0.0, %v822
      %v824 = vpop.f32.mrf.mxu0
      %825 = vdwg.mxu0
      %826 = vmatpush.bf16.msra.mxu0 0
      %827 = vmatpush.bf16.msra.mxu0 0
      %828 = vmatpush.bf16.msra.mxu0 0
      %829 = vmatpush.bf16.msra.mxu0 0
      %830 = vmatpush.bf16.msra.mxu0 0
      %831 = vmatpush.bf16.msra.mxu0 %v795
      %832 = vmatpush.bf16.msra.mxu0 %v791
      %833 = vmatpush.bf16.msra.mxu0 %v787
      %834 = vmatmul.bf16.gmra.mxu0 %v811
      %v835 = vpop.f32.mrf.mxu0
      %v836 = vadd.f32 0.0, %v835
      %v837 = vpop.f32.mrf.mxu0
      %838 = vdwg.mxu0
      %839 = vmatpush.bf16.msra.mxu0 0
      %840 = vmatpush.bf16.msra.mxu0 0
      %841 = vmatpush.bf16.msra.mxu0 0
      %842 = vmatpush.bf16.msra.mxu0 0
      %843 = vmatpush.bf16.msra.mxu0 0
      %844 = vmatpush.bf16.msra.mxu0 %v796
      %845 = vmatpush.bf16.msra.mxu0 %v792
      %846 = vmatpush.bf16.msra.mxu0 %v788
      %847 = vmatmul.bf16.gmra.mxu0 %v811
      %v848 = vpop.f32.mrf.mxu0
      %v849 = vadd.f32 0.0, %v848
      %v850 = vpop.f32.mrf.mxu0
      %851 = vdwg.mxu0
      %852 = vmatpush.bf16.msra.mxu0 0
      %853 = vmatpush.bf16.msra.mxu0 0
      %854 = vmatpush.bf16.msra.mxu0 0
      %855 = vmatpush.bf16.msra.mxu0 0
      %856 = vmatpush.bf16.msra.mxu0 0
      %857 = vmatpush.bf16.msra.mxu0 %v797
      %858 = vmatpush.bf16.msra.mxu0 %v793
      %859 = vmatpush.bf16.msra.mxu0 %v789
      %860 = vmatmul.bf16.gmra.mxu0 %v811
      %v861 = vpop.f32.mrf.mxu0
      %v862 = vadd.f32 0.0, %v861
      %v863 = vpop.f32.mrf.mxu0
      %864 = vdwg.mxu0
      %v865 = vadd.f32 %v730, %v823
      %v866 = vadd.f32 %v731, %v836
      %v867 = vadd.f32 %v732, %v849
      %v868 = vadd.f32 %v733, %v862
      %s869 = scalar_lea.vmem %s3, 384
      %v870 = vld [vmem:[%s869] sm:$0xff]
      %v871 = vld [vmem:[%s869 + $0x8] sm:$0xff]
      %v872 = vld [vmem:[%s869 + $0x10] sm:$0xff]
      %v873 = vld [vmem:[%s869 + $0x18] sm:$0xff]
      %v874 = vld [vmem:[%s869 + $0x20] sm:$0xff]
      %v875 = vld [vmem:[%s869 + $0x28] sm:$0xff]
      %v876 = vld [vmem:[%s869 + $0x30] sm:$0xff]
      %v877 = vld [vmem:[%s869 + $0x38] sm:$0xff]
      %v878 = vld [vmem:[%s869 + $0x40] sm:$0xff]
      %v879 = vld [vmem:[%s869 + $0x48] sm:$0xff]
      %v880 = vld [vmem:[%s869 + $0x50] sm:$0xff]
      %v881 = vld [vmem:[%s869 + $0x58] sm:$0xff]
      %v882 = vshrl.u32 %v736, 16
      %v884 = vshll.u32 %v736, 16
      %v886 = vrot.slane %v884, 1
      %v887 = vor.u32 %v882, %v886
      %v900 = vunpack.c.l.b16 %v870
      %v901 = vunpack.c.h.b16 %v870
      %v902 = vunpack.c.l.b16 %v871
      %v903 = vunpack.c.h.b16 %v871
      %v904 = vunpack.c.l.b16 %v872
      %v905 = vunpack.c.h.b16 %v872
      %v906 = vunpack.c.l.b16 %v873
      %v907 = vunpack.c.h.b16 %v873
      %v908 = vunpack.c.l.b16 %v874
      %v909 = vunpack.c.h.b16 %v874
      %v910 = vunpack.c.l.b16 %v875
      %v911 = vunpack.c.h.b16 %v875
      %v912 = vunpack.c.l.b16 %v876
      %v913 = vunpack.c.h.b16 %v876
      %v914 = vunpack.c.l.b16 %v877
      %v915 = vunpack.c.h.b16 %v877
      %v916 = vunpack.c.l.b16 %v878
      %v917 = vunpack.c.h.b16 %v878
      %v918 = vunpack.c.l.b16 %v879
      %v919 = vunpack.c.h.b16 %v879
      %v920 = vunpack.c.l.b16 %v880
      %v921 = vunpack.c.h.b16 %v880
      %v922 = vunpack.c.l.b16 %v881
      %v923 = vunpack.c.h.b16 %v881
      %v924 = vpack.c.b16 %v904, %v900
      %v925 = vpack.c.b16 %v905, %v901
      %v926 = vpack.c.b16 %v906, %v902
      %v927 = vpack.c.b16 %v907, %v903
      %v928 = vpack.c.b16 %v912, %v908
      %v929 = vpack.c.b16 %v913, %v909
      %v930 = vpack.c.b16 %v914, %v910
      %v931 = vpack.c.b16 %v915, %v911
      %v932 = vpack.c.b16 %v920, %v916
      %v933 = vpack.c.b16 %v921, %v917
      %v934 = vpack.c.b16 %v922, %v918
      %v935 = vpack.c.b16 %v923, %v919
      %v949 = vsel %vm430, %v887, 0
      %951 = vmatpush.bf16.msra.mxu0 0
      %952 = vmatpush.bf16.msra.mxu0 0
      %953 = vmatpush.bf16.msra.mxu0 0
      %954 = vmatpush.bf16.msra.mxu0 0
      %955 = vmatpush.bf16.msra.mxu0 0
      %956 = vmatpush.bf16.msra.mxu0 %v932
      %957 = vmatpush.bf16.msra.mxu0 %v928
      %958 = vmatpush.bf16.msra.mxu0 %v924
      %959 = vmatmul.bf16.gmra.mxu0 %v949
      %v960 = vpop.f32.mrf.mxu0
      %v961 = vadd.f32 0.0, %v960
      %v962 = vpop.f32.mrf.mxu0
      %963 = vdwg.mxu0
      %964 = vmatpush.bf16.msra.mxu0 0
      %965 = vmatpush.bf16.msra.mxu0 0
      %966 = vmatpush.bf16.msra.mxu0 0
      %967 = vmatpush.bf16.msra.mxu0 0
      %968 = vmatpush.bf16.msra.mxu0 0
      %969 = vmatpush.bf16.msra.mxu0 %v933
      %970 = vmatpush.bf16.msra.mxu0 %v929
      %971 = vmatpush.bf16.msra.mxu0 %v925
      %972 = vmatmul.bf16.gmra.mxu0 %v949
      %v973 = vpop.f32.mrf.mxu0
      %v974 = vadd.f32 0.0, %v973
      %v975 = vpop.f32.mrf.mxu0
      %976 = vdwg.mxu0
      %977 = vmatpush.bf16.msra.mxu0 0
      %978 = vmatpush.bf16.msra.mxu0 0
      %979 = vmatpush.bf16.msra.mxu0 0
      %980 = vmatpush.bf16.msra.mxu0 0
      %981 = vmatpush.bf16.msra.mxu0 0
      %982 = vmatpush.bf16.msra.mxu0 %v934
      %983 = vmatpush.bf16.msra.mxu0 %v930
      %984 = vmatpush.bf16.msra.mxu0 %v926
      %985 = vmatmul.bf16.gmra.mxu0 %v949
      %v986 = vpop.f32.mrf.mxu0
      %v987 = vadd.f32 0.0, %v986
      %v988 = vpop.f32.mrf.mxu0
      %989 = vdwg.mxu0
      %990 = vmatpush.bf16.msra.mxu0 0
      %991 = vmatpush.bf16.msra.mxu0 0
      %992 = vmatpush.bf16.msra.mxu0 0
      %993 = vmatpush.bf16.msra.mxu0 0
      %994 = vmatpush.bf16.msra.mxu0 0
      %995 = vmatpush.bf16.msra.mxu0 %v935
      %996 = vmatpush.bf16.msra.mxu0 %v931
      %997 = vmatpush.bf16.msra.mxu0 %v927
      %998 = vmatmul.bf16.gmra.mxu0 %v949
      %v999 = vpop.f32.mrf.mxu0
      %v1000 = vadd.f32 0.0, %v999
      %v1001 = vpop.f32.mrf.mxu0
      %1002 = vdwg.mxu0
      %v1003 = vadd.f32 %v865, %v961
      %v1004 = vadd.f32 %v866, %v974
      %v1005 = vadd.f32 %v867, %v987
      %v1006 = vadd.f32 %v868, %v1000
      %s1007 = scalar_lea.vmem %s3, 480
      %v1008 = vld [vmem:[%s1007] sm:$0xff]
      %v1009 = vld [vmem:[%s1007 + $0x8] sm:$0xff]
      %v1010 = vld [vmem:[%s1007 + $0x10] sm:$0xff]
      %v1011 = vld [vmem:[%s1007 + $0x18] sm:$0xff]
      %v1012 = vld [vmem:[%s1007 + $0x20] sm:$0xff]
      %v1013 = vld [vmem:[%s1007 + $0x28] sm:$0xff]
      %v1014 = vld [vmem:[%s1007 + $0x30] sm:$0xff]
      %v1015 = vld [vmem:[%s1007 + $0x38] sm:$0xff]
      %v1016 = vld [vmem:[%s1007 + $0x40] sm:$0xff]
      %v1017 = vld [vmem:[%s1007 + $0x48] sm:$0xff]
      %v1018 = vld [vmem:[%s1007 + $0x50] sm:$0xff]
      %v1019 = vld [vmem:[%s1007 + $0x58] sm:$0xff]
      %v1021 = vrot.slane %v736, 1
      %v1034 = vunpack.c.l.b16 %v1008
      %v1035 = vunpack.c.h.b16 %v1008
      %v1036 = vunpack.c.l.b16 %v1009
      %v1037 = vunpack.c.h.b16 %v1009
      %v1038 = vunpack.c.l.b16 %v1010
      %v1039 = vunpack.c.h.b16 %v1010
      %v1040 = vunpack.c.l.b16 %v1011
      %v1041 = vunpack.c.h.b16 %v1011
      %v1042 = vunpack.c.l.b16 %v1012
      %v1043 = vunpack.c.h.b16 %v1012
      %v1044 = vunpack.c.l.b16 %v1013
      %v1045 = vunpack.c.h.b16 %v1013
      %v1046 = vunpack.c.l.b16 %v1014
      %v1047 = vunpack.c.h.b16 %v1014
      %v1048 = vunpack.c.l.b16 %v1015
      %v1049 = vunpack.c.h.b16 %v1015
      %v1050 = vunpack.c.l.b16 %v1016
      %v1051 = vunpack.c.h.b16 %v1016
      %v1052 = vunpack.c.l.b16 %v1017
      %v1053 = vunpack.c.h.b16 %v1017
      %v1054 = vunpack.c.l.b16 %v1018
      %v1055 = vunpack.c.h.b16 %v1018
      %v1056 = vunpack.c.l.b16 %v1019
      %v1057 = vunpack.c.h.b16 %v1019
      %v1058 = vpack.c.b16 %v1038, %v1034
      %v1059 = vpack.c.b16 %v1039, %v1035
      %v1060 = vpack.c.b16 %v1040, %v1036
      %v1061 = vpack.c.b16 %v1041, %v1037
      %v1062 = vpack.c.b16 %v1046, %v1042
      %v1063 = vpack.c.b16 %v1047, %v1043
      %v1064 = vpack.c.b16 %v1048, %v1044
      %v1065 = vpack.c.b16 %v1049, %v1045
      %v1066 = vpack.c.b16 %v1054, %v1050
      %v1067 = vpack.c.b16 %v1055, %v1051
      %v1068 = vpack.c.b16 %v1056, %v1052
      %v1069 = vpack.c.b16 %v1057, %v1053
      %v1083 = vsel %vm430, %v1021, 0
      %1085 = vmatpush.bf16.msra.mxu0 0
      %1086 = vmatpush.bf16.msra.mxu0 0
      %1087 = vmatpush.bf16.msra.mxu0 0
      %1088 = vmatpush.bf16.msra.mxu0 0
      %1089 = vmatpush.bf16.msra.mxu0 0
      %1090 = vmatpush.bf16.msra.mxu0 %v1066
      %1091 = vmatpush.bf16.msra.mxu0 %v1062
      %1092 = vmatpush.bf16.msra.mxu0 %v1058
      %1093 = vmatmul.bf16.gmra.mxu0 %v1083
      %v1094 = vpop.f32.mrf.mxu0
      %v1095 = vadd.f32 0.0, %v1094
      %v1096 = vpop.f32.mrf.mxu0
      %1097 = vdwg.mxu0
      %1098 = vmatpush.bf16.msra.mxu0 0
      %1099 = vmatpush.bf16.msra.mxu0 0
      %1100 = vmatpush.bf16.msra.mxu0 0
      %1101 = vmatpush.bf16.msra.mxu0 0
      %1102 = vmatpush.bf16.msra.mxu0 0
      %1103 = vmatpush.bf16.msra.mxu0 %v1067
      %1104 = vmatpush.bf16.msra.mxu0 %v1063
      %1105 = vmatpush.bf16.msra.mxu0 %v1059
      %1106 = vmatmul.bf16.gmra.mxu0 %v1083
      %v1107 = vpop.f32.mrf.mxu0
      %v1108 = vadd.f32 0.0, %v1107
      %v1109 = vpop.f32.mrf.mxu0
      %1110 = vdwg.mxu0
      %1111 = vmatpush.bf16.msra.mxu0 0
      %1112 = vmatpush.bf16.msra.mxu0 0
      %1113 = vmatpush.bf16.msra.mxu0 0
      %1114 = vmatpush.bf16.msra.mxu0 0
      %1115 = vmatpush.bf16.msra.mxu0 0
      %1116 = vmatpush.bf16.msra.mxu0 %v1068
      %1117 = vmatpush.bf16.msra.mxu0 %v1064
      %1118 = vmatpush.bf16.msra.mxu0 %v1060
      %1119 = vmatmul.bf16.gmra.mxu0 %v1083
      %v1120 = vpop.f32.mrf.mxu0
      %v1121 = vadd.f32 0.0, %v1120
      %v1122 = vpop.f32.mrf.mxu0
      %1123 = vdwg.mxu0
      %1124 = vmatpush.bf16.msra.mxu0 0
      %1125 = vmatpush.bf16.msra.mxu0 0
      %1126 = vmatpush.bf16.msra.mxu0 0
      %1127 = vmatpush.bf16.msra.mxu0 0
      %1128 = vmatpush.bf16.msra.mxu0 0
      %1129 = vmatpush.bf16.msra.mxu0 %v1069
      %1130 = vmatpush.bf16.msra.mxu0 %v1065
      %1131 = vmatpush.bf16.msra.mxu0 %v1061
      %1132 = vmatmul.bf16.gmra.mxu0 %v1083
      %v1133 = vpop.f32.mrf.mxu0
      %v1134 = vadd.f32 0.0, %v1133
      %v1135 = vpop.f32.mrf.mxu0
      %1136 = vdwg.mxu0
      %v1137 = vadd.f32 %v1003, %v1095
      %v1138 = vadd.f32 %v1004, %v1108
      %v1139 = vadd.f32 %v1005, %v1121
      %v1140 = vadd.f32 %v1006, %v1134
      %v1141 = vld [vmem:[%s323] sm:$0x7]
      %v1142 = vunpack.c.l.bf16 %v1141
      %v1143 = vpack.c.bf16 %v1142, %v1142
      %s1144 = scalar_lea.vmem %s3, 576
      %v1145 = vld [vmem:[%s1144] sm:$0xff]
      %v1146 = vld [vmem:[%s1144 + $0x8] sm:$0xff]
      %v1147 = vld [vmem:[%s1144 + $0x10] sm:$0xff]
      %v1148 = vld [vmem:[%s1144 + $0x18] sm:$0xff]
      %v1149 = vld [vmem:[%s1144 + $0x20] sm:$0xff]
      %v1150 = vld [vmem:[%s1144 + $0x28] sm:$0xff]
      %v1151 = vld [vmem:[%s1144 + $0x30] sm:$0xff]
      %v1152 = vld [vmem:[%s1144 + $0x38] sm:$0xff]
      %v1153 = vld [vmem:[%s1144 + $0x40] sm:$0xff]
      %v1154 = vld [vmem:[%s1144 + $0x48] sm:$0xff]
      %v1155 = vld [vmem:[%s1144 + $0x50] sm:$0xff]
      %v1156 = vld [vmem:[%s1144 + $0x58] sm:$0xff]
      %v1169 = vunpack.c.l.b16 %v1145
      %v1170 = vunpack.c.h.b16 %v1145
      %v1171 = vunpack.c.l.b16 %v1146
      %v1172 = vunpack.c.h.b16 %v1146
      %v1173 = vunpack.c.l.b16 %v1147
      %v1174 = vunpack.c.h.b16 %v1147
      %v1175 = vunpack.c.l.b16 %v1148
      %v1176 = vunpack.c.h.b16 %v1148
      %v1177 = vunpack.c.l.b16 %v1149
      %v1178 = vunpack.c.h.b16 %v1149
      %v1179 = vunpack.c.l.b16 %v1150
      %v1180 = vunpack.c.h.b16 %v1150
      %v1181 = vunpack.c.l.b16 %v1151
      %v1182 = vunpack.c.h.b16 %v1151
      %v1183 = vunpack.c.l.b16 %v1152
      %v1184 = vunpack.c.h.b16 %v1152
      %v1185 = vunpack.c.l.b16 %v1153
      %v1186 = vunpack.c.h.b16 %v1153
      %v1187 = vunpack.c.l.b16 %v1154
      %v1188 = vunpack.c.h.b16 %v1154
      %v1189 = vunpack.c.l.b16 %v1155
      %v1190 = vunpack.c.h.b16 %v1155
      %v1191 = vunpack.c.l.b16 %v1156
      %v1192 = vunpack.c.h.b16 %v1156
      %v1193 = vpack.c.b16 %v1173, %v1169
      %v1194 = vpack.c.b16 %v1174, %v1170
      %v1195 = vpack.c.b16 %v1175, %v1171
      %v1196 = vpack.c.b16 %v1176, %v1172
      %v1197 = vpack.c.b16 %v1181, %v1177
      %v1198 = vpack.c.b16 %v1182, %v1178
      %v1199 = vpack.c.b16 %v1183, %v1179
      %v1200 = vpack.c.b16 %v1184, %v1180
      %v1201 = vpack.c.b16 %v1189, %v1185
      %v1202 = vpack.c.b16 %v1190, %v1186
      %v1203 = vpack.c.b16 %v1191, %v1187
      %v1204 = vpack.c.b16 %v1192, %v1188
      %v1218 = vsel %vm430, %v1143, 0
      %1220 = vmatpush.bf16.msra.mxu0 0
      %1221 = vmatpush.bf16.msra.mxu0 0
      %1222 = vmatpush.bf16.msra.mxu0 0
      %1223 = vmatpush.bf16.msra.mxu0 0
      %1224 = vmatpush.bf16.msra.mxu0 0
      %1225 = vmatpush.bf16.msra.mxu0 %v1201
      %1226 = vmatpush.bf16.msra.mxu0 %v1197
      %1227 = vmatpush.bf16.msra.mxu0 %v1193
      %1228 = vmatmul.bf16.gmra.mxu0 %v1218
      %v1229 = vpop.f32.mrf.mxu0
      %v1230 = vadd.f32 0.0, %v1229
      %v1231 = vpop.f32.mrf.mxu0
      %1232 = vdwg.mxu0
      %1233 = vmatpush.bf16.msra.mxu0 0
      %1234 = vmatpush.bf16.msra.mxu0 0
      %1235 = vmatpush.bf16.msra.mxu0 0
      %1236 = vmatpush.bf16.msra.mxu0 0
      %1237 = vmatpush.bf16.msra.mxu0 0
      %1238 = vmatpush.bf16.msra.mxu0 %v1202
      %1239 = vmatpush.bf16.msra.mxu0 %v1198
      %1240 = vmatpush.bf16.msra.mxu0 %v1194
      %1241 = vmatmul.bf16.gmra.mxu0 %v1218
      %v1242 = vpop.f32.mrf.mxu0
      %v1243 = vadd.f32 0.0, %v1242
      %v1244 = vpop.f32.mrf.mxu0
      %1245 = vdwg.mxu0
      %1246 = vmatpush.bf16.msra.mxu0 0
      %1247 = vmatpush.bf16.msra.mxu0 0
      %1248 = vmatpush.bf16.msra.mxu0 0
      %1249 = vmatpush.bf16.msra.mxu0 0
      %1250 = vmatpush.bf16.msra.mxu0 0
      %1251 = vmatpush.bf16.msra.mxu0 %v1203
      %1252 = vmatpush.bf16.msra.mxu0 %v1199
      %1253 = vmatpush.bf16.msra.mxu0 %v1195
      %1254 = vmatmul.bf16.gmra.mxu0 %v1218
      %v1255 = vpop.f32.mrf.mxu0
      %v1256 = vadd.f32 0.0, %v1255
      %v1257 = vpop.f32.mrf.mxu0
      %1258 = vdwg.mxu0
      %1259 = vmatpush.bf16.msra.mxu0 0
      %1260 = vmatpush.bf16.msra.mxu0 0
      %1261 = vmatpush.bf16.msra.mxu0 0
      %1262 = vmatpush.bf16.msra.mxu0 0
      %1263 = vmatpush.bf16.msra.mxu0 0
      %1264 = vmatpush.bf16.msra.mxu0 %v1204
      %1265 = vmatpush.bf16.msra.mxu0 %v1200
      %1266 = vmatpush.bf16.msra.mxu0 %v1196
      %1267 = vmatmul.bf16.gmra.mxu0 %v1218
      %v1268 = vpop.f32.mrf.mxu0
      %v1269 = vadd.f32 0.0, %v1268
      %v1270 = vpop.f32.mrf.mxu0
      %1271 = vdwg.mxu0
      %v1272 = vadd.f32 %v1137, %v1230
      %v1273 = vadd.f32 %v1138, %v1243
      %v1274 = vadd.f32 %v1139, %v1256
      %v1275 = vadd.f32 %v1140, %v1269
      %s1276 = scalar_lea.vmem %s3, 672
      %v1277 = vld [vmem:[%s1276] sm:$0xff]
      %v1278 = vld [vmem:[%s1276 + $0x8] sm:$0xff]
      %v1279 = vld [vmem:[%s1276 + $0x10] sm:$0xff]
      %v1280 = vld [vmem:[%s1276 + $0x18] sm:$0xff]
      %v1281 = vld [vmem:[%s1276 + $0x20] sm:$0xff]
      %v1282 = vld [vmem:[%s1276 + $0x28] sm:$0xff]
      %v1283 = vld [vmem:[%s1276 + $0x30] sm:$0xff]
      %v1284 = vld [vmem:[%s1276 + $0x38] sm:$0xff]
      %v1285 = vld [vmem:[%s1276 + $0x40] sm:$0xff]
      %v1286 = vld [vmem:[%s1276 + $0x48] sm:$0xff]
      %v1287 = vld [vmem:[%s1276 + $0x50] sm:$0xff]
      %v1288 = vld [vmem:[%s1276 + $0x58] sm:$0xff]
      %v1289 = vshrl.u32 %v1143, 16
      %v1291 = vshll.u32 %v1143, 16
      %v1293 = vrot.slane %v1291, 1
      %v1294 = vor.u32 %v1289, %v1293
      %v1307 = vunpack.c.l.b16 %v1277
      %v1308 = vunpack.c.h.b16 %v1277
      %v1309 = vunpack.c.l.b16 %v1278
      %v1310 = vunpack.c.h.b16 %v1278
      %v1311 = vunpack.c.l.b16 %v1279
      %v1312 = vunpack.c.h.b16 %v1279
      %v1313 = vunpack.c.l.b16 %v1280
      %v1314 = vunpack.c.h.b16 %v1280
      %v1315 = vunpack.c.l.b16 %v1281
      %v1316 = vunpack.c.h.b16 %v1281
      %v1317 = vunpack.c.l.b16 %v1282
      %v1318 = vunpack.c.h.b16 %v1282
      %v1319 = vunpack.c.l.b16 %v1283
      %v1320 = vunpack.c.h.b16 %v1283
      %v1321 = vunpack.c.l.b16 %v1284
      %v1322 = vunpack.c.h.b16 %v1284
      %v1323 = vunpack.c.l.b16 %v1285
      %v1324 = vunpack.c.h.b16 %v1285
      %v1325 = vunpack.c.l.b16 %v1286
      %v1326 = vunpack.c.h.b16 %v1286
      %v1327 = vunpack.c.l.b16 %v1287
      %v1328 = vunpack.c.h.b16 %v1287
      %v1329 = vunpack.c.l.b16 %v1288
      %v1330 = vunpack.c.h.b16 %v1288
      %v1331 = vpack.c.b16 %v1311, %v1307
      %v1332 = vpack.c.b16 %v1312, %v1308
      %v1333 = vpack.c.b16 %v1313, %v1309
      %v1334 = vpack.c.b16 %v1314, %v1310
      %v1335 = vpack.c.b16 %v1319, %v1315
      %v1336 = vpack.c.b16 %v1320, %v1316
      %v1337 = vpack.c.b16 %v1321, %v1317
      %v1338 = vpack.c.b16 %v1322, %v1318
      %v1339 = vpack.c.b16 %v1327, %v1323
      %v1340 = vpack.c.b16 %v1328, %v1324
      %v1341 = vpack.c.b16 %v1329, %v1325
      %v1342 = vpack.c.b16 %v1330, %v1326
      %v1356 = vsel %vm430, %v1294, 0
      %1358 = vmatpush.bf16.msra.mxu0 0
      %1359 = vmatpush.bf16.msra.mxu0 0
      %1360 = vmatpush.bf16.msra.mxu0 0
      %1361 = vmatpush.bf16.msra.mxu0 0
      %1362 = vmatpush.bf16.msra.mxu0 0
      %1363 = vmatpush.bf16.msra.mxu0 %v1339
      %1364 = vmatpush.bf16.msra.mxu0 %v1335
      %1365 = vmatpush.bf16.msra.mxu0 %v1331
      %1366 = vmatmul.bf16.gmra.mxu0 %v1356
      %v1367 = vpop.f32.mrf.mxu0
      %v1368 = vadd.f32 0.0, %v1367
      %v1369 = vpop.f32.mrf.mxu0
      %1370 = vdwg.mxu0
      %1371 = vmatpush.bf16.msra.mxu0 0
      %1372 = vmatpush.bf16.msra.mxu0 0
      %1373 = vmatpush.bf16.msra.mxu0 0
      %1374 = vmatpush.bf16.msra.mxu0 0
      %1375 = vmatpush.bf16.msra.mxu0 0
      %1376 = vmatpush.bf16.msra.mxu0 %v1340
      %1377 = vmatpush.bf16.msra.mxu0 %v1336
      %1378 = vmatpush.bf16.msra.mxu0 %v1332
      %1379 = vmatmul.bf16.gmra.mxu0 %v1356
      %v1380 = vpop.f32.mrf.mxu0
      %v1381 = vadd.f32 0.0, %v1380
      %v1382 = vpop.f32.mrf.mxu0
      %1383 = vdwg.mxu0
      %1384 = vmatpush.bf16.msra.mxu0 0
      %1385 = vmatpush.bf16.msra.mxu0 0
      %1386 = vmatpush.bf16.msra.mxu0 0
      %1387 = vmatpush.bf16.msra.mxu0 0
      %1388 = vmatpush.bf16.msra.mxu0 0
      %1389 = vmatpush.bf16.msra.mxu0 %v1341
      %1390 = vmatpush.bf16.msra.mxu0 %v1337
      %1391 = vmatpush.bf16.msra.mxu0 %v1333
      %1392 = vmatmul.bf16.gmra.mxu0 %v1356
      %v1393 = vpop.f32.mrf.mxu0
      %v1394 = vadd.f32 0.0, %v1393
      %v1395 = vpop.f32.mrf.mxu0
      %1396 = vdwg.mxu0
      %1397 = vmatpush.bf16.msra.mxu0 0
      %1398 = vmatpush.bf16.msra.mxu0 0
      %1399 = vmatpush.bf16.msra.mxu0 0
      %1400 = vmatpush.bf16.msra.mxu0 0
      %1401 = vmatpush.bf16.msra.mxu0 0
      %1402 = vmatpush.bf16.msra.mxu0 %v1342
      %1403 = vmatpush.bf16.msra.mxu0 %v1338
      %1404 = vmatpush.bf16.msra.mxu0 %v1334
      %1405 = vmatmul.bf16.gmra.mxu0 %v1356
      %v1406 = vpop.f32.mrf.mxu0
      %v1407 = vadd.f32 0.0, %v1406
      %v1408 = vpop.f32.mrf.mxu0
      %1409 = vdwg.mxu0
      %v1410 = vadd.f32 %v1272, %v1368
      %v1411 = vadd.f32 %v1273, %v1381
      %v1412 = vadd.f32 %v1274, %v1394
      %v1413 = vadd.f32 %v1275, %v1407
      %s1414 = scalar_lea.vmem %s3, 768
      %v1415 = vld [vmem:[%s1414] sm:$0xff]
      %v1416 = vld [vmem:[%s1414 + $0x8] sm:$0xff]
      %v1417 = vld [vmem:[%s1414 + $0x10] sm:$0xff]
      %v1418 = vld [vmem:[%s1414 + $0x18] sm:$0xff]
      %v1419 = vld [vmem:[%s1414 + $0x20] sm:$0xff]
      %v1420 = vld [vmem:[%s1414 + $0x28] sm:$0xff]
      %v1421 = vld [vmem:[%s1414 + $0x30] sm:$0xff]
      %v1422 = vld [vmem:[%s1414 + $0x38] sm:$0xff]
      %v1423 = vld [vmem:[%s1414 + $0x40] sm:$0xff]
      %v1424 = vld [vmem:[%s1414 + $0x48] sm:$0xff]
      %v1425 = vld [vmem:[%s1414 + $0x50] sm:$0xff]
      %v1426 = vld [vmem:[%s1414 + $0x58] sm:$0xff]
      %v1428 = vrot.slane %v1143, 1
      %v1441 = vunpack.c.l.b16 %v1415
      %v1442 = vunpack.c.h.b16 %v1415
      %v1443 = vunpack.c.l.b16 %v1416
      %v1444 = vunpack.c.h.b16 %v1416
      %v1445 = vunpack.c.l.b16 %v1417
      %v1446 = vunpack.c.h.b16 %v1417
      %v1447 = vunpack.c.l.b16 %v1418
      %v1448 = vunpack.c.h.b16 %v1418
      %v1449 = vunpack.c.l.b16 %v1419
      %v1450 = vunpack.c.h.b16 %v1419
      %v1451 = vunpack.c.l.b16 %v1420
      %v1452 = vunpack.c.h.b16 %v1420
      %v1453 = vunpack.c.l.b16 %v1421
      %v1454 = vunpack.c.h.b16 %v1421
      %v1455 = vunpack.c.l.b16 %v1422
      %v1456 = vunpack.c.h.b16 %v1422
      %v1457 = vunpack.c.l.b16 %v1423
      %v1458 = vunpack.c.h.b16 %v1423
      %v1459 = vunpack.c.l.b16 %v1424
      %v1460 = vunpack.c.h.b16 %v1424
      %v1461 = vunpack.c.l.b16 %v1425
      %v1462 = vunpack.c.h.b16 %v1425
      %v1463 = vunpack.c.l.b16 %v1426
      %v1464 = vunpack.c.h.b16 %v1426
      %v1465 = vpack.c.b16 %v1445, %v1441
      %v1466 = vpack.c.b16 %v1446, %v1442
      %v1467 = vpack.c.b16 %v1447, %v1443
      %v1468 = vpack.c.b16 %v1448, %v1444
      %v1469 = vpack.c.b16 %v1453, %v1449
      %v1470 = vpack.c.b16 %v1454, %v1450
      %v1471 = vpack.c.b16 %v1455, %v1451
      %v1472 = vpack.c.b16 %v1456, %v1452
      %v1473 = vpack.c.b16 %v1461, %v1457
      %v1474 = vpack.c.b16 %v1462, %v1458
      %v1475 = vpack.c.b16 %v1463, %v1459
      %v1476 = vpack.c.b16 %v1464, %v1460
      %v1490 = vsel %vm430, %v1428, 0
      %1492 = vmatpush.bf16.msra.mxu0 0
      %1493 = vmatpush.bf16.msra.mxu0 0
      %1494 = vmatpush.bf16.msra.mxu0 0
      %1495 = vmatpush.bf16.msra.mxu0 0
      %1496 = vmatpush.bf16.msra.mxu0 0
      %1497 = vmatpush.bf16.msra.mxu0 %v1473
      %1498 = vmatpush.bf16.msra.mxu0 %v1469
      %1499 = vmatpush.bf16.msra.mxu0 %v1465
      %1500 = vmatmul.bf16.gmra.mxu0 %v1490
      %v1501 = vpop.f32.mrf.mxu0
      %v1502 = vadd.f32 0.0, %v1501
      %v1503 = vpop.f32.mrf.mxu0
      %1504 = vdwg.mxu0
      %1505 = vmatpush.bf16.msra.mxu0 0
      %1506 = vmatpush.bf16.msra.mxu0 0
      %1507 = vmatpush.bf16.msra.mxu0 0
      %1508 = vmatpush.bf16.msra.mxu0 0
      %1509 = vmatpush.bf16.msra.mxu0 0
      %1510 = vmatpush.bf16.msra.mxu0 %v1474
      %1511 = vmatpush.bf16.msra.mxu0 %v1470
      %1512 = vmatpush.bf16.msra.mxu0 %v1466
      %1513 = vmatmul.bf16.gmra.mxu0 %v1490
      %v1514 = vpop.f32.mrf.mxu0
      %v1515 = vadd.f32 0.0, %v1514
      %v1516 = vpop.f32.mrf.mxu0
      %1517 = vdwg.mxu0
      %1518 = vmatpush.bf16.msra.mxu0 0
      %1519 = vmatpush.bf16.msra.mxu0 0
      %1520 = vmatpush.bf16.msra.mxu0 0
      %1521 = vmatpush.bf16.msra.mxu0 0
      %1522 = vmatpush.bf16.msra.mxu0 0
      %1523 = vmatpush.bf16.msra.mxu0 %v1475
      %1524 = vmatpush.bf16.msra.mxu0 %v1471
      %1525 = vmatpush.bf16.msra.mxu0 %v1467
      %1526 = vmatmul.bf16.gmra.mxu0 %v1490
      %v1527 = vpop.f32.mrf.mxu0
      %v1528 = vadd.f32 0.0, %v1527
      %v1529 = vpop.f32.mrf.mxu0
      %1530 = vdwg.mxu0
      %1531 = vmatpush.bf16.msra.mxu0 0
      %1532 = vmatpush.bf16.msra.mxu0 0
      %1533 = vmatpush.bf16.msra.mxu0 0
      %1534 = vmatpush.bf16.msra.mxu0 0
      %1535 = vmatpush.bf16.msra.mxu0 0
      %1536 = vmatpush.bf16.msra.mxu0 %v1476
      %1537 = vmatpush.bf16.msra.mxu0 %v1472
      %1538 = vmatpush.bf16.msra.mxu0 %v1468
      %1539 = vmatmul.bf16.gmra.mxu0 %v1490
      %v1540 = vpop.f32.mrf.mxu0
      %v1541 = vadd.f32 0.0, %v1540
      %v1542 = vpop.f32.mrf.mxu0
      %1543 = vdwg.mxu0
      %v1544 = vadd.f32 %v1410, %v1502
      %v1545 = vadd.f32 %v1411, %v1515
      %v1546 = vadd.f32 %v1412, %v1528
      %v1547 = vadd.f32 %v1413, %v1541
      %v1548 = vld [vmem:[%s4] sm:$0xf]
      %v1550 = vperm.slane %v1548, 0
      %v1551 = vperm.slane %v1548, 1
      %v1552 = vperm.slane %v1548, 2
      %v1553 = vperm.slane %v1548, 3
      %v1558 = vadd.f32 %v1544, %v1550
      %v1559 = vadd.f32 %v1545, %v1551
      %v1560 = vadd.f32 %v1546, %v1552
      %v1561 = vadd.f32 %v1547, %v1553
      %v1566 = vrot.slane %v1559, 4
      %v1567 = vrot.slane %v1561, 4
      %vm1568 = vcmask 1043456
      %v1569 = vsel %vm1568, %v1558, %v1566
      %v1570 = vsel %vm1568, %v1560, %v1567
      %1573 = vst [vmem:[%s333] sm:$0xff] %v1569
      %1574 = vst [vmem:[%s333 + $0x8] sm:$0xff] %v1570
      %p1575 = scmp.lt.s32.totalorder %s20, 1
      %s1576 = scalar_select %p1575, %s20, 1
      %p1577 = scmp.lt.s32.totalorder %s21, 1
      %s1578 = scalar_select %p1577, %s21, 1
      %s1579 = smul.addr %s1578, 4
      %s1580 = smul.addr %s1576, 8
      %s1581 = sadd.s32 %s1579, %s1580
      %s1582 = smul.addr %s1581, 4
      %s1583 = scalar_lea.vmem %s5, %s1582
      // Predicated region
      $region41: #{decoder_forward_pallas.5} parent=39 // pred_check
        %p1584 = pneg %p178
      $region42: #{decoder_forward_pallas.5} parent=39 // pred_check_branch
        %1586 = sbr.rel (%p1584) target = $region44
      $region43: #{decoder_forward_pallas.5} parent=39 // pred_region
        _
      $region44: #{decoder_forward_pallas.5} parent=39 // pred_fallthru
        _
    $region40: #{decoder_forward_pallas.5} parent=5 // pred_fallthru
      _
    %p1587 = scmp.le.s32.totalorder 2, %s11
    // Predicated region
    $region45: #{decoder_forward_pallas.5} parent=5 // pred_check
      %p1588 = pneg %p1587
    $region46: #{decoder_forward_pallas.5} parent=5 // pred_check_branch
      %1590 = sbr.rel (%p1588) target = $region48
    $region47: #{decoder_forward_pallas.5} parent=5 // pred_region
      %s1591 = ssub.s32 %s11, 2
      // Predicated region
      $region49: #{decoder_forward_pallas.5} parent=47 // pred_check
        %p1592 = pneg %p184
      $region50: #{decoder_forward_pallas.5} parent=47 // pred_check_branch
        %1594 = sbr.rel (%p1592) target = $region52
      $region51: #{decoder_forward_pallas.5} parent=47 // pred_region
        %p1595 = scmp.lt.s32.totalorder %s22, 1
        %s1596 = scalar_select %p1595, %s22, 1
        %p1597 = scmp.lt.s32.totalorder %s23, 1
        %s1598 = scalar_select %p1597, %s23, 1
        %s1599 = smul.addr %s1598, 4
        %s1600 = smul.addr %s1596, 8
        %s1601 = sadd.s32 %s1599, %s1600
        %s1602 = smul.addr %s1601, 4
        %s1603 = scalar_lea.vmem %s5, %s1602
      $region52: #{decoder_forward_pallas.5} parent=47 // pred_fallthru
        _
    $region48: #{decoder_forward_pallas.5} parent=5 // pred_fallthru
      _
  $region6: #{decoder_forward_pallas.5} parent=0 // loop_footer
    %s15 = sadd.s32 1, %s11
  $region7: #{decoder_forward_pallas.5} parent=0 // loop_footer_branch
    %10 = sbr.rel target = $region3
  $region8: #{decoder_forward_pallas.5} parent=0 // loop_exit
    _

</llo_original>
